<compile_context>
chip_gen: v7x
topology: tpu7x:2x2x1
jax: 0.10.0
libtpu: 0.0.40
codegen_flags: <defaults>
</compile_context>

<pallas_src>
import math
import functools

import jax
import jax.numpy as jnp
from jax.experimental import pallas as pl
from jax.experimental.pallas import tpu as pltpu


# ----------------------------------------------------------------------------
# Small helpers
# ----------------------------------------------------------------------------
def _round_up(x, m):
    return ((x + m - 1) // m) * m


def _cdiv(a, b):
    return (a + b - 1) // b


def _pad_to(a, shape):
    pads = [(0, s - d) for d, s in zip(a.shape, shape)]
    if all(p == (0, 0) for p in pads):
        return a
    return jnp.pad(a, pads)


def _tpu_vmem_bytes():
    try:
        v = int(pltpu.get_tpu_info().vmem_capacity_bytes)
        if v > 0:
            return v
    except Exception:
        pass
    return 64 * 1024 * 1024  # conservative default: v7x-class (64 MiB / TensorCore)


# ----------------------------------------------------------------------------
# Kernel: one GRU step for one block of links at one time step.
# Grid = (link_block, t); weights/biases are resident across t, the hidden
# state is carried across t in the f32 VMEM scratch `carry_ref`.
# ----------------------------------------------------------------------------
def _gru_seq_kernel(h0_ref, x_ref, wh_ref, wx_ref, bh_ref, bx_ref,
                    hseq_ref, carry_ref, *, hidden_pad):
    Hp = hidden_pad
    f32 = jnp.float32
    t = pl.program_id(1)

    @pl.when(t == 0)
    def _():
        carry_ref[...] = h0_ref[...].astype(f32)

    h = carry_ref[...]                      # [Lt, Bp, Hp] f32 (recurrent carry)
    x = x_ref[...][0]                       # [Lt, Bp, F]
    wh = wh_ref[...]                        # [Lt, Hp, 3Hp]   (reset|update|new)
    wx = wx_ref[...]                        # [Lt, F,  3Hp]
    b_h = bh_ref[...][:, None, :]           # [Lt, 1, 3Hp] f32 (hidden-path biases)
    b_x = bx_ref[...][:, None, :]           # [Lt, 1, 3Hp] f32 (input-path biases)

    # MXU-native: activations fed in the weight dtype, f32 accumulation.
    gh = jnp.einsum("lbh,lhg->lbg", h.astype(wh.dtype), wh,
                    preferred_element_type=f32) + b_h          # [Lt, Bp, 3Hp]
    gx = jnp.einsum("lbf,lfg->lbg", x.astype(wx.dtype), wx,
                    preferred_element_type=f32) + b_x          # [Lt, Bp, 3Hp]

    # Gate slices are 128-lane aligned (Hp is a multiple of 128).
    reset = jax.nn.sigmoid(gh[..., 0:Hp] + gx[..., 0:Hp])
    update = jax.nn.sigmoid(gh[..., Hp:2 * Hp] + gx[..., Hp:2 * Hp])
    # reset multiplies ONLY the hidden path (incl. its bias), matching PyTorch.
    new = jnp.tanh(reset * gh[..., 2 * Hp:3 * Hp] + gx[..., 2 * Hp:3 * Hp])

    h_new = (1.0 - update) * new + update * h                  # [Lt, Bp, Hp] f32
    carry_ref[...] = h_new
    hseq_ref[...] = h_new[None, ...].astype(hseq_ref.dtype)


# ----------------------------------------------------------------------------
# Blocking heuristic (generation-aware)
# ----------------------------------------------------------------------------
def _choose_blocking(L, Bp, F, Hp, weight_bytes):
    vmem = _tpu_vmem_bytes()
    small_vmem = vmem <= 96 * 2 ** 20            # v7x-class: 64 MiB / TC, 2 TCs
    budget = (20 if small_vmem else 48) * 2 ** 20
    vmem_limit = (48 if small_vmem else 100) * 2 ** 20

    per_link = (
        4 * 2 * Bp * Hp                          # h0 blocks (double-buffered, f32)
        + 4 * 2 * Bp * F                         # x blocks
        + weight_bytes * 2 * 3 * Hp * (Hp + F)   # fused weight blocks (resident)
        + 4 * 2 * 2 * 3 * Hp                     # bias blocks
        + 4 * 2 * Bp * Hp                        # hidden-sequence output blocks
        + 4 * Bp * Hp                            # carry scratch
    )
    lt = max(1, budget // per_link)

    # v7x (2 TensorCores): aim for >=4 link blocks so the "parallel" axis keeps
    # both cores busy with prefetch overlap.  v5e/v6e (1 TC): no forced split.
    if small_vmem and L >= 32:
        lt = min(lt, _round_up(_cdiv(L, 4), 8))

    if lt >= L:
        lt, nb = L, 1                            # single full-extent block
    else:
        lt = max(8, (lt // 8) * 8)               # multiple of 8: 2D bias tiles stay dense
        if lt >= L:
            lt, nb = L, 1
        else:
            nb = _cdiv(L, lt)
            if small_vmem and nb % 2 and nb > 1:
                nb += 1                          # even grid: neither v7x core idles on a tail

    Lp = nb * lt
    needed = lt * per_link
    vmem_limit = int(min(int(0.9 * vmem), max(vmem_limit, needed + (8 << 20))))
    return int(lt), int(nb), int(Lp), int(vmem_limit)


# ----------------------------------------------------------------------------
# Parameter packing (call ONCE, outside any time-step loop)
# ----------------------------------------------------------------------------
def pack_params(params, batch_size, weight_dtype=jnp.float32, links_per_block=None):
    """Fuse the 12 per-gate parameters into 4 padded arrays (gate order r,u,n)."""
    L, H, _ = params["reset_hidden_weight"].shape
    F = params["reset_input_weight"].shape[1]
    Hp = _round_up(H, 128)                        # lane-dense gates / stores
    Bp = _round_up(max(int(batch_size), 8), 8)    # sublane-dense activations
    wbytes = jnp.dtype(weight_dtype).itemsize

    if links_per_block is None:
        Lt, nb, Lp, vmem_limit = _choose_blocking(L, Bp, F, Hp, wbytes)
    else:
        Lt = int(links_per_block)
        nb = _cdiv(L, Lt)
        Lp = nb * Lt
        assert nb == 1 or Lt % 8 == 0, \
            "links_per_block must be a multiple of 8 (or >= num_links)"
        small = _tpu_vmem_bytes() <= 96 * 2 ** 20
        vmem_limit = (48 if small else 100) * 2 ** 20

    def pad_hidden_w(w):   # [L, H, H] -> [Lp, Hp, Hp]
        return _pad_to(w, (Lp, Hp, Hp))

    def pad_input_w(w):    # [L, F, H] -> [Lp, F, Hp]
        return _pad_to(w, (Lp, F, Hp))

    def pad_bias(b):       # [H, L] -> [Lp, Hp]
        return _pad_to(jnp.transpose(b, (1, 0)), (Lp, Hp))

    wh = jnp.concatenate([pad_hidden_w(params["reset_hidden_weight"]),
                          pad_hidden_w(params["update_hidden_weight"]),
                          pad_hidden_w(params["new_hidden_weight"])],
                         axis=-1).astype(weight_dtype)               # [Lp, Hp, 3Hp]
    wx = jnp.concatenate([pad_input_w(params["reset_input_weight"]),
                          pad_input_w(params["update_input_weight"]),
                          pad_input_w(params["new_input_weight"])],
                         axis=-1).astype(weight_dtype)               # [Lp, F, 3Hp]
    bh = jnp.concatenate([pad_bias(params["reset_hidden_bias"]),
                          pad_bias(params["update_hidden_bias"]),
                          pad_bias(params["new_hidden_bias"])],
                         axis=-1).astype(jnp.float32)                # [Lp, 3Hp]
    bx = jnp.concatenate([pad_bias(params["reset_input_bias"]),
                          pad_bias(params["update_input_bias"]),
                          pad_bias(params["new_input_bias"])],
                         axis=-1).astype(jnp.float32)                # [Lp, 3Hp]

    meta = dict(L=L, H=H, F=F, Hp=Hp, Bp=Bp, Lp=Lp, Lt=Lt, nb=nb,
                vmem_limit=int(vmem_limit))
    return {"wh": wh, "wx": wx, "bh": bh, "bx": bx, "meta": meta}


# ----------------------------------------------------------------------------
# pallas_call wrapper (padded, link-major layout)
# ----------------------------------------------------------------------------
def _run_sequence(h0_pad, xs_pad, packed):
    m = packed["meta"]
    Lt, nb, Bp, Hp, F = m["Lt"], m["nb"], m["Bp"], m["Hp"], m["F"]
    Hp3 = 3 * Hp
    T = xs_pad.shape[0]

    link_idx = lambda i, t: (i, 0, 0)             # ignores t -> resident across time
    grid_spec = pltpu.PrefetchScalarGridSpec(
        num_scalar_prefetch=0,
        grid=(nb, T),
        in_specs=[
            pl.BlockSpec((Lt, Bp, Hp), link_idx),                       # initial hidden
            pl.BlockSpec((1, Lt, Bp, F), lambda i, t: (t, i, 0, 0)),    # x_t
            pl.BlockSpec((Lt, Hp, Hp3), link_idx),                      # fused hidden-path weights
            pl.BlockSpec((Lt, F, Hp3), link_idx),                       # fused input-path weights
            pl.BlockSpec((Lt, Hp3), lambda i, t: (i, 0)),               # hidden-path biases
            pl.BlockSpec((Lt, Hp3), lambda i, t: (i, 0)),               # input-path biases
        ],
        out_specs=pl.BlockSpec((1, Lt, Bp, Hp), lambda i, t: (t, i, 0, 0)),
        scratch_shapes=[pltpu.VMEM((Lt, Bp, Hp), jnp.float32)],         # hidden carry
    )

    return pl.pallas_call(
        functools.partial(_gru_seq_kernel, hidden_pad=Hp),
        out_shape=jax.ShapeDtypeStruct((T, m["Lp"], Bp, Hp), h0_pad.dtype),
        grid_spec=grid_spec,
        compiler_params=pltpu.CompilerParams(
            dimension_semantics=("parallel", "arbitrary"),
            vmem_limit_bytes=m["vmem_limit"],
        ),
    )(h0_pad, xs_pad, packed["wh"], packed["wx"], packed["bh"], packed["bx"])


# ----------------------------------------------------------------------------
# Public entry points (PyTorch layout)
# ----------------------------------------------------------------------------
def local_gcrnn_sequence(hidden0, inputs, packed):
    """Run T GRU steps with weights resident across time.

    hidden0: [B, H, L], inputs: [T, B, F, L]  ->  all hidden states [T, B, H, L].
    """
    m = packed["meta"]
    B, H, L = hidden0.shape
    T = inputs.shape[0]
    assert (H, L) == (m["H"], m["L"]), "hidden shape does not match packed params"
    assert inputs.shape[1:] == (B, m["F"], L), "input shape does not match packed params"
    assert B <= m["Bp"], "pack_params was packed for a smaller batch size"

    h0 = jnp.transpose(hidden0, (2, 0, 1))                  # [L, B, H]
    xs = jnp.transpose(inputs, (0, 3, 1, 2))                # [T, L, B, F]
    h0 = _pad_to(h0, (m["Lp"], m["Bp"], m["Hp"]))
    xs = _pad_to(xs, (T, m["Lp"], m["Bp"], m["F"]))

    out = _run_sequence(h0, xs, packed)                     # [T, Lp, Bp, Hp]
    out = out[:, :L, :B, :H]                                # drop padding
    return jnp.transpose(out, (0, 2, 3, 1))                 # [T, B, H, L]


def local_gcrnn_cell_forward(hidden, in_i, packed):
    """Single GRU step, PyTorch layout: hidden [B,H,L], in_i [B,F,L] -> [B,H,L]."""
    return local_gcrnn_sequence(hidden, in_i[None], packed)[0]


# ----------------------------------------------------------------------------
# Init + pure-JAX reference (mirrors the PyTorch module exactly)
# ----------------------------------------------------------------------------
def init_params(key, num_links, num_features, hidden_size, dtype=jnp.float32):
    stdv = 1.0 / math.sqrt(hidden_size)
    shapes = {
        "reset_hidden_weight":  (num_links, hidden_size, hidden_size),
        "reset_hidden_bias":    (hidden_size, num_links),
        "reset_input_weight":   (num_links, num_features, hidden_size),
        "reset_input_bias":     (hidden_size, num_links),
        "update_hidden_weight": (num_links, hidden_size, hidden_size),
        "update_hidden_bias":   (hidden_size, num_links),
        "update_input_weight":  (num_links, num_features, hidden_size),
        "update_input_bias":    (hidden_size, num_links),
        "new_hidden_weight":    (num_links, hidden_size, hidden_size),
        "new_hidden_bias":      (hidden_size, num_links),
        "new_input_weight":     (num_links, num_features, hidden_size),
        "new_input_bias":       (hidden_size, num_links),
    }
    params = {}
    for i, (name, shape) in enumerate(shapes.items()):
        k = jax.random.fold_in(key, i)
        params[name] = jax.random.uniform(k, shape, dtype, minval=-stdv, maxval=stdv)
    return params


def reference_forward(hidden, in_i, p):
    ein = lambda a, w: jnp.einsum("bij,jik->bkj", a, w)
    reset = jax.nn.sigmoid(
        ein(hidden, p["reset_hidden_weight"]) + p["reset_hidden_bias"]
        + ein(in_i, p["reset_input_weight"]) + p["reset_input_bias"])
    update = jax.nn.sigmoid(
        ein(hidden, p["update_hidden_weight"]) + p["update_hidden_bias"]
        + ein(in_i, p["update_input_weight"]) + p["update_input_bias"])
    new = jnp.tanh(
        reset * (ein(hidden, p["new_hidden_weight"]) + p["new_hidden_bias"])
        + ein(in_i, p["new_input_weight"]) + p["new_input_bias"])
    return (1.0 - update) * new + update * hidden


if __name__ == "__main__":
    B, F, H, L, T = 2, 4, 32, 8, 6   # batch, features, hidden, links, time steps

    key = jax.random.PRNGKey(0)
    k_h, k_x, k_p = jax.random.split(key, 3)

    hidden0 = jax.random.normal(k_h, (B, H, L), jnp.float32)
    xs = jax.random.normal(k_x, (T, B, F, L), jnp.float32)
    params = init_params(k_p, L, F, H)

    # Pure-JAX reference: single step + unrolled sequence.
    ref_step = reference_forward(hidden0, xs[0], params)
    h = hidden0
    ref_seq = []
    for t in range(T):
        h = reference_forward(h, xs[t], params)
        ref_seq.append(h)
    ref_seq = jnp.stack(ref_seq, axis=0)

    # f32 weights: tight tolerance.
    packed_f32 = pack_params(params, batch_size=B, weight_dtype=jnp.float32)
    out_step = jax.block_until_ready(local_gcrnn_cell_forward(hidden0, xs[0], packed_f32))
    assert out_step.shape == (B, H, L)
    assert jnp.allclose(out_step, ref_step, atol=1e-5, rtol=1e-5), "f32 single-step mismatch"

    out_seq = jax.block_until_ready(local_gcrnn_sequence(hidden0, xs, packed_f32))
    assert out_seq.shape == (T, B, H, L)
    assert jnp.allclose(out_seq, ref_seq, atol=1e-4, rtol=1e-4), "f32 sequence mismatch"

    # bf16 weights (halves the weight-bandwidth-bound stream): loose tolerance.
    packed_bf16 = pack_params(params, batch_size=B, weight_dtype=jnp.bfloat16)
    out_bf16 = jax.block_until_ready(local_gcrnn_cell_forward(hidden0, xs[0], packed_bf16))
    assert jnp.allclose(out_bf16, ref_step, atol=5e-2, rtol=5e-2), "bf16 single-step mismatch"

    print("KERNEL_OK")
</pallas_src>

<mosaic_0001>
module attributes {stable_mosaic.version = 11 : i64} {
  func.func @_gru_seq_kernel(%arg0: i32, %arg1: i32, %arg2: memref<8x8x128xf32, #tpu.memory_space<vmem>>, %arg3: memref<1x8x8x4xf32, #tpu.memory_space<vmem>>, %arg4: memref<8x128x384xf32, #tpu.memory_space<vmem>>, %arg5: memref<8x4x384xf32, #tpu.memory_space<vmem>>, %arg6: memref<8x384xf32, #tpu.memory_space<vmem>>, %arg7: memref<8x384xf32, #tpu.memory_space<vmem>>, %arg8: memref<1x8x8x128xf32, #tpu.memory_space<vmem>>, %arg9: memref<8x8x128xf32, #tpu.memory_space<vmem>>) attributes {dimension_semantics = [#tpu.dimension_semantics<parallel>, #tpu.dimension_semantics<arbitrary>], iteration_bounds = array<i64: 1, 1>, scalar_prefetch = 0 : i64, scratch_operands = 1 : i64, tpu.core_type = #tpu.core_type<tc>, window_params = [{transform_indices = @transform_0, window_bounds = array<i64: 8, 8, 128>}, {transform_indices = @transform_1, window_bounds = array<i64: 1, 8, 8, 4>}, {transform_indices = @transform_2, window_bounds = array<i64: 8, 128, 384>}, {transform_indices = @transform_3, window_bounds = array<i64: 8, 4, 384>}, {transform_indices = @transform_4, window_bounds = array<i64: 8, 384>}, {transform_indices = @transform_5, window_bounds = array<i64: 8, 384>}, {transform_indices = @transform_6, window_bounds = array<i64: 1, 8, 8, 128>}]} {
    %c0_i32 = arith.constant 0 : i32
    %0 = arith.cmpi eq, %arg1, %c0_i32 : i32
    %1 = arith.extui %0 : i1 to i32
    %c0_i32_0 = arith.constant 0 : i32
    %2 = arith.cmpi ne, %1, %c0_i32_0 : i32
    scf.if %2 {
      %c0_28 = arith.constant 0 : index
      %c0_29 = arith.constant 0 : index
      %c0_30 = arith.constant 0 : index
      %47 = vector.load %arg2[%c0_28, %c0_29, %c0_30] : memref<8x8x128xf32, #tpu.memory_space<vmem>>, vector<8x8x128xf32>
      %c0_31 = arith.constant 0 : index
      %c0_32 = arith.constant 0 : index
      %c0_33 = arith.constant 0 : index
      %48 = vector.load %arg9[%c0_31, %c0_32, %c0_33] : memref<8x8x128xf32, #tpu.memory_space<vmem>>, vector<8x8x128xf32>
      tpu.vector_store %arg9[%c0_31, %c0_32, %c0_33], %47 {strides = array<i32>} : memref<8x8x128xf32, #tpu.memory_space<vmem>>, vector<8x8x128xf32>,
    } else {
    }
    %c0 = arith.constant 0 : index
    %c0_1 = arith.constant 0 : index
    %c0_2 = arith.constant 0 : index
    %3 = vector.load %arg9[%c0, %c0_1, %c0_2] : memref<8x8x128xf32, #tpu.memory_space<vmem>>, vector<8x8x128xf32>
    %c0_3 = arith.constant 0 : index
    %c0_4 = arith.constant 0 : index
    %c0_5 = arith.constant 0 : index
    %c0_6 = arith.constant 0 : index
    %4 = vector.load %arg3[%c0_3, %c0_4, %c0_5, %c0_6] : memref<1x8x8x4xf32, #tpu.memory_space<vmem>>, vector<1x8x8x4xf32>
    %5 = vector.shape_cast %4 : vector<1x8x8x4xf32> to vector<8x8x4xf32>
    %c0_7 = arith.constant 0 : index
    %c0_8 = arith.constant 0 : index
    %c0_9 = arith.constant 0 : index
    %6 = vector.load %arg4[%c0_7, %c0_8, %c0_9] : memref<8x128x384xf32, #tpu.memory_space<vmem>>, vector<8x128x384xf32>
    %c0_10 = arith.constant 0 : index
    %c0_11 = arith.constant 0 : index
    %c0_12 = arith.constant 0 : index
    %7 = vector.load %arg5[%c0_10, %c0_11, %c0_12] : memref<8x4x384xf32, #tpu.memory_space<vmem>>, vector<8x4x384xf32>
    %c0_13 = arith.constant 0 : index
    %c0_14 = arith.constant 0 : index
    %8 = vector.load %arg6[%c0_13, %c0_14] : memref<8x384xf32, #tpu.memory_space<vmem>>, vector<8x384xf32>
    %9 = vector.shape_cast %8 : vector<8x384xf32> to vector<8x1x384xf32>
    %c0_15 = arith.constant 0 : index
    %c0_16 = arith.constant 0 : index
    %10 = vector.load %arg7[%c0_15, %c0_16] : memref<8x384xf32, #tpu.memory_space<vmem>>, vector<8x384xf32>
    %11 = vector.shape_cast %10 : vector<8x384xf32> to vector<8x1x384xf32>
    "tpu.trace_start"() <{level = 10 : i32, message = "lbh,lhg->lbg"}> : () -> ()
    %cst = arith.constant dense<0.000000e+00> : vector<8x8x384xf32>
    %12 = tpu.matmul %3, %6, %cst {dimension_numbers = #tpu.dot_dimension_numbers<[2], [1], [1], [2], [0, 0, 0, 1, 1, 2], [0], [0]>} : vector<8x8x128xf32>, vector<8x128x384xf32>, vector<8x8x384xf32> -> vector<8x8x384xf32>
    "tpu.trace_stop"() : () -> ()
    %13 = vector.broadcast %9 : vector<8x1x384xf32> to vector<8x8x384xf32>
    %14 = arith.addf %12, %13 : vector<8x8x384xf32>
    "tpu.trace_start"() <{level = 10 : i32, message = "lbf,lfg->lbg"}> : () -> ()
    %cst_17 = arith.constant dense<0.000000e+00> : vector<8x8x384xf32>
    %15 = tpu.matmul %5, %7, %cst_17 {dimension_numbers = #tpu.dot_dimension_numbers<[2], [1], [1], [2], [0, 0, 0, 1, 1, 2], [0], [0]>} : vector<8x8x4xf32>, vector<8x4x384xf32>, vector<8x8x384xf32> -> vector<8x8x384xf32>
    "tpu.trace_stop"() : () -> ()
    %16 = vector.broadcast %11 : vector<8x1x384xf32> to vector<8x8x384xf32>
    %17 = arith.addf %15, %16 : vector<8x8x384xf32>
    %18 = vector.extract_strided_slice %14 {offsets = [0, 0, 0], sizes = [8, 8, 128], strides = [1, 1, 1]} : vector<8x8x384xf32> to vector<8x8x128xf32>
    %19 = vector.extract_strided_slice %17 {offsets = [0, 0, 0], sizes = [8, 8, 128], strides = [1, 1, 1]} : vector<8x8x384xf32> to vector<8x8x128xf32>
    %20 = arith.addf %18, %19 : vector<8x8x128xf32>
    %21 = arith.negf %20 : vector<8x8x128xf32>
    %22 = math.exp %21 : vector<8x8x128xf32>
    %cst_18 = arith.constant 1.000000e+00 : f32
    %23 = vector.broadcast %cst_18 : f32 to vector<8x8x128xf32>
    %24 = arith.addf %23, %22 : vector<8x8x128xf32>
    %25 = arith.divf %23, %24 : vector<8x8x128xf32>
    %26 = vector.extract_strided_slice %14 {offsets = [0, 0, 128], sizes = [8, 8, 128], strides = [1, 1, 1]} : vector<8x8x384xf32> to vector<8x8x128xf32>
    %27 = vector.extract_strided_slice %17 {offsets = [0, 0, 128], sizes = [8, 8, 128], strides = [1, 1, 1]} : vector<8x8x384xf32> to vector<8x8x128xf32>
    %28 = arith.addf %26, %27 : vector<8x8x128xf32>
    %29 = arith.negf %28 : vector<8x8x128xf32>
    %30 = math.exp %29 : vector<8x8x128xf32>
    %cst_19 = arith.constant 1.000000e+00 : f32
    %31 = vector.broadcast %cst_19 : f32 to vector<8x8x128xf32>
    %32 = arith.addf %31, %30 : vector<8x8x128xf32>
    %33 = arith.divf %31, %32 : vector<8x8x128xf32>
    %34 = vector.extract_strided_slice %14 {offsets = [0, 0, 256], sizes = [8, 8, 128], strides = [1, 1, 1]} : vector<8x8x384xf32> to vector<8x8x128xf32>
    %35 = arith.mulf %25, %34 : vector<8x8x128xf32>
    %36 = vector.extract_strided_slice %17 {offsets = [0, 0, 256], sizes = [8, 8, 128], strides = [1, 1, 1]} : vector<8x8x384xf32> to vector<8x8x128xf32>
    %37 = arith.addf %35, %36 : vector<8x8x128xf32>
    %38 = math.tanh %37 : vector<8x8x128xf32>
    %cst_20 = arith.constant 1.000000e+00 : f32
    %39 = vector.broadcast %cst_20 : f32 to vector<8x8x128xf32>
    %40 = arith.subf %39, %33 : vector<8x8x128xf32>
    %41 = arith.mulf %40, %38 : vector<8x8x128xf32>
    %42 = arith.mulf %33, %3 : vector<8x8x128xf32>
    %43 = arith.addf %41, %42 : vector<8x8x128xf32>
    %c0_21 = arith.constant 0 : index
    %c0_22 = arith.constant 0 : index
    %c0_23 = arith.constant 0 : index
    %44 = vector.load %arg9[%c0_21, %c0_22, %c0_23] : memref<8x8x128xf32, #tpu.memory_space<vmem>>, vector<8x8x128xf32>
    tpu.vector_store %arg9[%c0_21, %c0_22, %c0_23], %43 {strides = array<i32>} : memref<8x8x128xf32, #tpu.memory_space<vmem>>, vector<8x8x128xf32>,
    %45 = vector.shape_cast %43 : vector<8x8x128xf32> to vector<1x8x8x128xf32>
    %c0_24 = arith.constant 0 : index
    %c0_25 = arith.constant 0 : index
    %c0_26 = arith.constant 0 : index
    %c0_27 = arith.constant 0 : index
    %46 = vector.load %arg8[%c0_24, %c0_25, %c0_26, %c0_27] : memref<1x8x8x128xf32, #tpu.memory_space<vmem>>, vector<1x8x8x128xf32>
    tpu.vector_store %arg8[%c0_24, %c0_25, %c0_26, %c0_27], %45 {strides = array<i32>} : memref<1x8x8x128xf32, #tpu.memory_space<vmem>>, vector<1x8x8x128xf32>,
    return
  }
  func.func @transform_0(%arg0: i32, %arg1: i32) -> (i32, i32, i32) {
    %c0_i32 = arith.constant 0 : i32
    %c0_i32_0 = arith.constant 0 : i32
    %c0_i32_1 = arith.constant 0 : i32
    return %arg0, %c0_i32, %c0_i32_0 : i32, i32, i32
  }
  func.func @transform_1(%arg0: i32, %arg1: i32) -> (i32, i32, i32, i32) {
    %c0_i32 = arith.constant 0 : i32
    %c0_i32_0 = arith.constant 0 : i32
    %c0_i32_1 = arith.constant 0 : i32
    return %arg1, %arg0, %c0_i32, %c0_i32_0 : i32, i32, i32, i32
  }
  func.func @transform_2(%arg0: i32, %arg1: i32) -> (i32, i32, i32) {
    %c0_i32 = arith.constant 0 : i32
    %c0_i32_0 = arith.constant 0 : i32
    %c0_i32_1 = arith.constant 0 : i32
    return %arg0, %c0_i32, %c0_i32_0 : i32, i32, i32
  }
  func.func @transform_3(%arg0: i32, %arg1: i32) -> (i32, i32, i32) {
    %c0_i32 = arith.constant 0 : i32
    %c0_i32_0 = arith.constant 0 : i32
    %c0_i32_1 = arith.constant 0 : i32
    return %arg0, %c0_i32, %c0_i32_0 : i32, i32, i32
  }
  func.func @transform_4(%arg0: i32, %arg1: i32) -> (i32, i32) {
    %c0_i32 = arith.constant 0 : i32
    %c0_i32_0 = arith.constant 0 : i32
    return %arg0, %c0_i32 : i32, i32
  }
  func.func @transform_5(%arg0: i32, %arg1: i32) -> (i32, i32) {
    %c0_i32 = arith.constant 0 : i32
    %c0_i32_0 = arith.constant 0 : i32
    return %arg0, %c0_i32 : i32, i32
  }
  func.func @transform_6(%arg0: i32, %arg1: i32) -> (i32, i32, i32, i32) {
    %c0_i32 = arith.constant 0 : i32
    %c0_i32_0 = arith.constant 0 : i32
    %c0_i32_1 = arith.constant 0 : i32
    return %arg1, %arg0, %c0_i32, %c0_i32_0 : i32, i32, i32, i32
  }
}

</mosaic_0001>

<llo_original>
// kernel: tpu_custom_call.1
$region0: #{tpu_custom_call.1}
  #allocation0 [shape = 'u32[]', space=smem, size = 0x4, offset = 0x4, fixed_abs, tag = 'smem constant byte address 0x4 - core index']
  #allocation1 [shape = 'u32[144,128]{1,0:T(1,128)}', space=vmem, size = 0x12000, scoped, tag = 'internal scratch']
  #allocation2 [shape = 'f32[8,8,128]{2,1,0:T(8,128)}', space=vmem, size = 0x8000, scoped, tag = 'scratch operand']
  %s0 = inlined_call_operand.hbm [shape: f32[8,8,128], index: 0, kind: input, shape index: {}]
  %s1 = inlined_call_operand.vmem [shape: f32[1,8,8,4], index: 1, kind: input, shape index: {}]
  %s2 = inlined_call_operand.hbm [shape: f32[8,128,384], index: 2, kind: input, shape index: {}]
  %s3 = inlined_call_operand.hbm [shape: f32[8,4,384], index: 3, kind: input, shape index: {}]
  %s4 = inlined_call_operand.hbm [shape: f32[8,384], index: 4, kind: input, shape index: {}]
  %s5 = inlined_call_operand.hbm [shape: f32[8,384], index: 5, kind: input, shape index: {}]
  %s6 = inlined_call_operand.hbm [shape: f32[1,8,8,128], index: 6, kind: output, shape index: {}]
  %s7 = sld [smem:[#allocation0]]
  $region58: #{tpu_custom_call.1} parent=0
    _
  %s9 = ssub.s32 1, %s7
  %s10 = scalar_select 0, %s9, %s7
  $region1: #{tpu_custom_call.1} parent=0
    #allocation3 [shape = 'u8[32768]{0}', space=vmem, size = 0x8000, scoped, tag = 'input window, operand 0, single buffered']
    #allocation4 [shape = 's32[1]{0}', space=sflag, size = 0x4, scoped, tag = 'scoped memory for tpu_custom_call.1']
    #allocation5 [shape = 's32[1]{0}', space=sflag, size = 0x4, scoped, tag = 'scoped memory for tpu_custom_call.1']
    #allocation6 [shape = 'u8[1572864]{0}', space=vmem, size = 0x180000, scoped, tag = 'input window, operand 2, single buffered']
    #allocation7 [shape = 's32[1]{0}', space=sflag, size = 0x4, scoped, tag = 'scoped memory for tpu_custom_call.1']
    #allocation8 [shape = 'u8[49152]{0}', space=vmem, size = 0xc000, scoped, tag = 'input window, operand 3, single buffered']
    #allocation9 [shape = 'u8[12288]{0}', space=vmem, size = 0x3000, scoped, tag = 'input window, operand 4, single buffered']
    #allocation10 [shape = 's32[1]{0}', space=sflag, size = 0x4, scoped, tag = 'scoped memory for tpu_custom_call.1']
    #allocation11 [shape = 'u8[12288]{0}', space=vmem, size = 0x3000, scoped, tag = 'input window, operand 5, single buffered']
    #allocation12 [shape = 'u8[32768]{0}', space=vmem, size = 0x8000, scoped, tag = 'output window, operand 0, single buffered']
    %11 = vsyncpa [#allocation4], 0
    %12 = vsyncpa [#allocation7], 0
    %13 = vsyncpa [#allocation10], 0
    %14 = vsyncpa [#allocation5], 0
    // Predicated region
    $region2: #{tpu_custom_call.1} parent=1 // pred_check
      _
    $region3: #{tpu_custom_call.1} parent=1 // pred_check_branch
      %16 = sbr.rel (0) target = $region5
    $region4: #{tpu_custom_call.1} parent=1 // pred_region
      %s18 = ssub.s32 1024, 1024
      %19 = vsyncadd [#allocation4], %s18
      %s20 = sshll.u32 [#allocation3], 4
      %s21 = int_to_ptr.vmem [resolvable:$true] %s20
      %26 = dma.hbm_to_vmem [thread:$0]  %s0, 1024, %s21, [#allocation4], 128, 128, 8
    $region5: #{tpu_custom_call.1} parent=1 // pred_fallthru
      _
    // Predicated region
    $region6: #{tpu_custom_call.1} parent=1 // pred_check
      _
    $region7: #{tpu_custom_call.1} parent=1 // pred_check_branch
      %28 = sbr.rel (0) target = $region9
    $region8: #{tpu_custom_call.1} parent=1 // pred_region
      _
    $region9: #{tpu_custom_call.1} parent=1 // pred_fallthru
      _
    // Predicated region
    $region10: #{tpu_custom_call.1} parent=1 // pred_check
      _
    $region11: #{tpu_custom_call.1} parent=1 // pred_check_branch
      %30 = sbr.rel (0) target = $region13
    $region12: #{tpu_custom_call.1} parent=1 // pred_region
      %s32 = ssub.s32 49152, 49152
      %33 = vsyncadd [#allocation7], %s32
      %s34 = sshll.u32 [#allocation6], 4
      %s35 = int_to_ptr.vmem [resolvable:$true] %s34
      %40 = dma.hbm_to_vmem [thread:$0]  %s2, 49152, %s35, [#allocation7], 384, 384, 24
    $region13: #{tpu_custom_call.1} parent=1 // pred_fallthru
      _
    // Predicated region
    $region14: #{tpu_custom_call.1} parent=1 // pred_check
      _
    $region15: #{tpu_custom_call.1} parent=1 // pred_check_branch
      %42 = sbr.rel (0) target = $region17
    $region16: #{tpu_custom_call.1} parent=1 // pred_region
      %s44 = ssub.s32 1536, 1536
      %45 = vsyncadd [#allocation7], %s44
      %s46 = sshll.u32 [#allocation8], 4
      %s47 = int_to_ptr.vmem [resolvable:$true] %s46
      %52 = dma.hbm_to_vmem [thread:$0]  %s3, 1536, %s47, [#allocation7], 192, 192, 12
    $region17: #{tpu_custom_call.1} parent=1 // pred_fallthru
      _
    // Predicated region
    $region18: #{tpu_custom_call.1} parent=1 // pred_check
      _
    $region19: #{tpu_custom_call.1} parent=1 // pred_check_branch
      %54 = sbr.rel (0) target = $region21
    $region20: #{tpu_custom_call.1} parent=1 // pred_region
      %s56 = ssub.s32 384, 384
      %57 = vsyncadd [#allocation10], %s56
      %s59 = sshll.u32 [#allocation9], 4
      %s60 = int_to_ptr.vmem [resolvable:$true] %s59
      %62 = dma.hbm_to_vmem [thread:$0]  %s4, 384, %s60, [#allocation10]
    $region21: #{tpu_custom_call.1} parent=1 // pred_fallthru
      _
    // Predicated region
    $region22: #{tpu_custom_call.1} parent=1 // pred_check
      _
    $region23: #{tpu_custom_call.1} parent=1 // pred_check_branch
      %64 = sbr.rel (0) target = $region25
    $region24: #{tpu_custom_call.1} parent=1 // pred_region
      %s66 = ssub.s32 384, 384
      %67 = vsyncadd [#allocation10], %s66
      %s69 = sshll.u32 [#allocation11], 4
      %s70 = int_to_ptr.vmem [resolvable:$true] %s69
      %72 = dma.hbm_to_vmem [thread:$0]  %s5, 384, %s70, [#allocation10]
    $region25: #{tpu_custom_call.1} parent=1 // pred_fallthru
      _
    // Predicated region
    $region26: #{tpu_custom_call.1} parent=1 // pred_check
      _
    $region27: #{tpu_custom_call.1} parent=1 // pred_check_branch
      %74 = sbr.rel (0) target = $region29
    $region28: #{tpu_custom_call.1} parent=1 // pred_region
      %75 = dma.done [#allocation4], 1024
    $region29: #{tpu_custom_call.1} parent=1 // pred_fallthru
      _
    // Predicated region
    $region30: #{tpu_custom_call.1} parent=1 // pred_check
      _
    $region31: #{tpu_custom_call.1} parent=1 // pred_check_branch
      %77 = sbr.rel (0) target = $region33
    $region32: #{tpu_custom_call.1} parent=1 // pred_region
      %78 = dma.done [#allocation7], 49152
    $region33: #{tpu_custom_call.1} parent=1 // pred_fallthru
      _
    // Predicated region
    $region34: #{tpu_custom_call.1} parent=1 // pred_check
      _
    $region35: #{tpu_custom_call.1} parent=1 // pred_check_branch
      %80 = sbr.rel (0) target = $region37
    $region36: #{tpu_custom_call.1} parent=1 // pred_region
      %81 = dma.done [#allocation7], 1536
    $region37: #{tpu_custom_call.1} parent=1 // pred_fallthru
      _
    // Predicated region
    $region38: #{tpu_custom_call.1} parent=1 // pred_check
      _
    $region39: #{tpu_custom_call.1} parent=1 // pred_check_branch
      %83 = sbr.rel (0) target = $region41
    $region40: #{tpu_custom_call.1} parent=1 // pred_region
      %84 = dma.done [#allocation10], 384
    $region41: #{tpu_custom_call.1} parent=1 // pred_fallthru
      _
    // Predicated region
    $region42: #{tpu_custom_call.1} parent=1 // pred_check
      _
    $region43: #{tpu_custom_call.1} parent=1 // pred_check_branch
      %86 = sbr.rel (0) target = $region45
    $region44: #{tpu_custom_call.1} parent=1 // pred_region
      %87 = dma.done [#allocation10], 384
    $region45: #{tpu_custom_call.1} parent=1 // pred_fallthru
      _
    %p88 = scmp.eq.s32.totalorder 0, 0
    // Predicated region
    $region46: #{tpu_custom_call.1} parent=1 // pred_check
      %p89 = pneg %p88
    $region47: #{tpu_custom_call.1} parent=1 // pred_check_branch
      %91 = sbr.rel (%p89) target = $region49
    $region48: #{tpu_custom_call.1} parent=1 // pred_region
      %v92 = vld [vmem:[#allocation3] sm:$0xff]
      %v93 = vld [vmem:[#allocation3 + $0x8] sm:$0xff]
      %v94 = vld [vmem:[#allocation3 + $0x10] sm:$0xff]
      %v95 = vld [vmem:[#allocation3 + $0x18] sm:$0xff]
      %v96 = vld [vmem:[#allocation3 + $0x20] sm:$0xff]
      %v97 = vld [vmem:[#allocation3 + $0x28] sm:$0xff]
      %v98 = vld [vmem:[#allocation3 + $0x30] sm:$0xff]
      %v99 = vld [vmem:[#allocation3 + $0x38] sm:$0xff]
      %100 = vst [vmem:[#allocation2] sm:$0xff] %v92
      %101 = vst [vmem:[#allocation2 + $0x8] sm:$0xff] %v93
      %102 = vst [vmem:[#allocation2 + $0x10] sm:$0xff] %v94
      %103 = vst [vmem:[#allocation2 + $0x18] sm:$0xff] %v95
      %104 = vst [vmem:[#allocation2 + $0x20] sm:$0xff] %v96
      %105 = vst [vmem:[#allocation2 + $0x28] sm:$0xff] %v97
      %106 = vst [vmem:[#allocation2 + $0x30] sm:$0xff] %v98
      %107 = vst [vmem:[#allocation2 + $0x38] sm:$0xff] %v99
    $region49: #{tpu_custom_call.1} parent=1 // pred_fallthru
      _
    %v108 = vld [vmem:[#allocation2] sm:$0xff]
    %v109 = vld [vmem:[#allocation2 + $0x8] sm:$0xff]
    %v110 = vld [vmem:[#allocation2 + $0x10] sm:$0xff]
    %v111 = vld [vmem:[#allocation2 + $0x18] sm:$0xff]
    %v112 = vld [vmem:[#allocation2 + $0x20] sm:$0xff]
    %v113 = vld [vmem:[#allocation2 + $0x28] sm:$0xff]
    %v114 = vld [vmem:[#allocation2 + $0x30] sm:$0xff]
    %v115 = vld [vmem:[#allocation2 + $0x38] sm:$0xff]
    %v116 = vld [vmem:[%s1] sm:$0xff]
    %v117 = vld [vmem:[%s1 + $0x8] sm:$0xff]
    %v118 = vld [vmem:[%s1 + $0x10] sm:$0xff]
    %v119 = vld [vmem:[%s1 + $0x18] sm:$0xff]
    %v120 = vld [vmem:[%s1 + $0x20] sm:$0xff]
    %v121 = vld [vmem:[%s1 + $0x28] sm:$0xff]
    %v122 = vld [vmem:[%s1 + $0x30] sm:$0xff]
    %v123 = vld [vmem:[%s1 + $0x38] sm:$0xff]
    %v124 = vld [vmem:[#allocation6] sm:$0xff]
    %v125 = vld [vmem:[#allocation6 + $0x8] sm:$0xff]
    %v126 = vld [vmem:[#allocation6 + $0x10] sm:$0xff]
    %v127 = vld [vmem:[#allocation6 + $0x18] sm:$0xff]
    %v128 = vld [vmem:[#allocation6 + $0x20] sm:$0xff]
    %v129 = vld [vmem:[#allocation6 + $0x28] sm:$0xff]
    %v130 = vld [vmem:[#allocation6 + $0x30] sm:$0xff]
    %v131 = vld [vmem:[#allocation6 + $0x38] sm:$0xff]
    %v132 = vld [vmem:[#allocation6 + $0x40] sm:$0xff]
    %v133 = vld [vmem:[#allocation6 + $0x48] sm:$0xff]
    %v134 = vld [vmem:[#allocation6 + $0x50] sm:$0xff]
    %v135 = vld [vmem:[#allocation6 + $0x58] sm:$0xff]
    %v136 = vld [vmem:[#allocation6 + $0x60] sm:$0xff]
    %v137 = vld [vmem:[#allocation6 + $0x68] sm:$0xff]
    %v138 = vld [vmem:[#allocation6 + $0x70] sm:$0xff]
    %v139 = vld [vmem:[#allocation6 + $0x78] sm:$0xff]
    %v140 = vld [vmem:[#allocation6 + $0x80] sm:$0xff]
    %v141 = vld [vmem:[#allocation6 + $0x88] sm:$0xff]
    %v142 = vld [vmem:[#allocation6 + $0x90] sm:$0xff]
    %v143 = vld [vmem:[#allocation6 + $0x98] sm:$0xff]
    %v144 = vld [vmem:[#allocation6 + $0xa0] sm:$0xff]
    %v145 = vld [vmem:[#allocation6 + $0xa8] sm:$0xff]
    %v146 = vld [vmem:[#allocation6 + $0xb0] sm:$0xff]
    %v147 = vld [vmem:[#allocation6 + $0xb8] sm:$0xff]
    %v148 = vld [vmem:[#allocation6 + $0xc0] sm:$0xff]
    %v149 = vld [vmem:[#allocation6 + $0xc8] sm:$0xff]
    %v150 = vld [vmem:[#allocation6 + $0xd0] sm:$0xff]
    %v151 = vld [vmem:[#allocation6 + $0xd8] sm:$0xff]
    %v152 = vld [vmem:[#allocation6 + $0xe0] sm:$0xff]
    %v153 = vld [vmem:[#allocation6 + $0xe8] sm:$0xff]
    %v154 = vld [vmem:[#allocation6 + $0xf0] sm:$0xff]
    %v155 = vld [vmem:[#allocation6 + $0xf8] sm:$0xff]
    %v156 = vld [vmem:[#allocation6 + $0x100] sm:$0xff]
    %v157 = vld [vmem:[#allocation6 + $0x108] sm:$0xff]
    %v158 = vld [vmem:[#allocation6 + $0x110] sm:$0xff]
    %v159 = vld [vmem:[#allocation6 + $0x118] sm:$0xff]
    %v160 = vld [vmem:[#allocation6 + $0x120] sm:$0xff]
    %v161 = vld [vmem:[#allocation6 + $0x128] sm:$0xff]
    %v162 = vld [vmem:[#allocation6 + $0x130] sm:$0xff]
    %v163 = vld [vmem:[#allocation6 + $0x138] sm:$0xff]
    %v164 = vld [vmem:[#allocation6 + $0x140] sm:$0xff]
    %v165 = vld [vmem:[#allocation6 + $0x148] sm:$0xff]
    %v166 = vld [vmem:[#allocation6 + $0x150] sm:$0xff]
    %v167 = vld [vmem:[#allocation6 + $0x158] sm:$0xff]
    %v168 = vld [vmem:[#allocation6 + $0x160] sm:$0xff]
    %v169 = vld [vmem:[#allocation6 + $0x168] sm:$0xff]
    %v170 = vld [vmem:[#allocation6 + $0x170] sm:$0xff]
    %v171 = vld [vmem:[#allocation6 + $0x178] sm:$0xff]
    %v172 = vld [vmem:[#allocation6 + $0x180] sm:$0xff]
    %v173 = vld [vmem:[#allocation6 + $0x188] sm:$0xff]
    %v174 = vld [vmem:[#allocation6 + $0x190] sm:$0xff]
    %v175 = vld [vmem:[#allocation6 + $0x198] sm:$0xff]
    %v176 = vld [vmem:[#allocation6 + $0x1a0] sm:$0xff]
    %v177 = vld [vmem:[#allocation6 + $0x1a8] sm:$0xff]
    %v178 = vld [vmem:[#allocation6 + $0x1b0] sm:$0xff]
    %v179 = vld [vmem:[#allocation6 + $0x1b8] sm:$0xff]
    %v180 = vld [vmem:[#allocation6 + $0x1c0] sm:$0xff]
    %v181 = vld [vmem:[#allocation6 + $0x1c8] sm:$0xff]
    %v182 = vld [vmem:[#allocation6 + $0x1d0] sm:$0xff]
    %v183 = vld [vmem:[#allocation6 + $0x1d8] sm:$0xff]
    %v184 = vld [vmem:[#allocation6 + $0x1e0] sm:$0xff]
    %v185 = vld [vmem:[#allocation6 + $0x1e8] sm:$0xff]
    %v186 = vld [vmem:[#allocation6 + $0x1f0] sm:$0xff]
    %v187 = vld [vmem:[#allocation6 + $0x1f8] sm:$0xff]
    %v188 = vld [vmem:[#allocation6 + $0x200] sm:$0xff]
    %v189 = vld [vmem:[#allocation6 + $0x208] sm:$0xff]
    %v190 = vld [vmem:[#allocation6 + $0x210] sm:$0xff]
    %v191 = vld [vmem:[#allocation6 + $0x218] sm:$0xff]
    %v192 = vld [vmem:[#allocation6 + $0x220] sm:$0xff]
    %v193 = vld [vmem:[#allocation6 + $0x228] sm:$0xff]
    %v194 = vld [vmem:[#allocation6 + $0x230] sm:$0xff]
    %v195 = vld [vmem:[#allocation6 + $0x238] sm:$0xff]
    %v196 = vld [vmem:[#allocation6 + $0x240] sm:$0xff]
    %v197 = vld [vmem:[#allocation6 + $0x248] sm:$0xff]
    %v198 = vld [vmem:[#allocation6 + $0x250] sm:$0xff]
    %v199 = vld [vmem:[#allocation6 + $0x258] sm:$0xff]
    %v200 = vld [vmem:[#allocation6 + $0x260] sm:$0xff]
    %v201 = vld [vmem:[#allocation6 + $0x268] sm:$0xff]
    %v202 = vld [vmem:[#allocation6 + $0x270] sm:$0xff]
    %v203 = vld [vmem:[#allocation6 + $0x278] sm:$0xff]
    %v204 = vld [vmem:[#allocation6 + $0x280] sm:$0xff]
    %v205 = vld [vmem:[#allocation6 + $0x288] sm:$0xff]
    %v206 = vld [vmem:[#allocation6 + $0x290] sm:$0xff]
    %v207 = vld [vmem:[#allocation6 + $0x298] sm:$0xff]
    %v208 = vld [vmem:[#allocation6 + $0x2a0] sm:$0xff]
    %v209 = vld [vmem:[#allocation6 + $0x2a8] sm:$0xff]
    %v210 = vld [vmem:[#allocation6 + $0x2b0] sm:$0xff]
    %v211 = vld [vmem:[#allocation6 + $0x2b8] sm:$0xff]
    %v212 = vld [vmem:[#allocation6 + $0x2c0] sm:$0xff]
    %v213 = vld [vmem:[#allocation6 + $0x2c8] sm:$0xff]
    %v214 = vld [vmem:[#allocation6 + $0x2d0] sm:$0xff]
    %v215 = vld [vmem:[#allocation6 + $0x2d8] sm:$0xff]
    %v216 = vld [vmem:[#allocation6 + $0x2e0] sm:$0xff]
    %v217 = vld [vmem:[#allocation6 + $0x2e8] sm:$0xff]
    %v218 = vld [vmem:[#allocation6 + $0x2f0] sm:$0xff]
    %v219 = vld [vmem:[#allocation6 + $0x2f8] sm:$0xff]
    %v220 = vld [vmem:[#allocation6 + $0x300] sm:$0xff]
    %v221 = vld [vmem:[#allocation6 + $0x308] sm:$0xff]
    %v222 = vld [vmem:[#allocation6 + $0x310] sm:$0xff]
    %v223 = vld [vmem:[#allocation6 + $0x318] sm:$0xff]
    %v224 = vld [vmem:[#allocation6 + $0x320] sm:$0xff]
    %v225 = vld [vmem:[#allocation6 + $0x328] sm:$0xff]
    %v226 = vld [vmem:[#allocation6 + $0x330] sm:$0xff]
    %v227 = vld [vmem:[#allocation6 + $0x338] sm:$0xff]
    %v228 = vld [vmem:[#allocation6 + $0x340] sm:$0xff]
    %v229 = vld [vmem:[#allocation6 + $0x348] sm:$0xff]
    %v230 = vld [vmem:[#allocation6 + $0x350] sm:$0xff]
    %v231 = vld [vmem:[#allocation6 + $0x358] sm:$0xff]
    %v232 = vld [vmem:[#allocation6 + $0x360] sm:$0xff]
    %v233 = vld [vmem:[#allocation6 + $0x368] sm:$0xff]
    %v234 = vld [vmem:[#allocation6 + $0x370] sm:$0xff]
    %v235 = vld [vmem:[#allocation6 + $0x378] sm:$0xff]
    %v236 = vld [vmem:[#allocation6 + $0x380] sm:$0xff]
    %v237 = vld [vmem:[#allocation6 + $0x388] sm:$0xff]
    %v238 = vld [vmem:[#allocation6 + $0x390] sm:$0xff]
    %v239 = vld [vmem:[#allocation6 + $0x398] sm:$0xff]
    %v240 = vld [vmem:[#allocation6 + $0x3a0] sm:$0xff]
    %v241 = vld [vmem:[#allocation6 + $0x3a8] sm:$0xff]
    %v242 = vld [vmem:[#allocation6 + $0x3b0] sm:$0xff]
    %v243 = vld [vmem:[#allocation6 + $0x3b8] sm:$0xff]
    %v244 = vld [vmem:[#allocation6 + $0x3c0] sm:$0xff]
    %v245 = vld [vmem:[#allocation6 + $0x3c8] sm:$0xff]
    %v246 = vld [vmem:[#allocation6 + $0x3d0] sm:$0xff]
    %v247 = vld [vmem:[#allocation6 + $0x3d8] sm:$0xff]
    %v248 = vld [vmem:[#allocation6 + $0x3e0] sm:$0xff]
    %v249 = vld [vmem:[#allocation6 + $0x3e8] sm:$0xff]
    %v250 = vld [vmem:[#allocation6 + $0x3f0] sm:$0xff]
    %v251 = vld [vmem:[#allocation6 + $0x3f8] sm:$0xff]
    %v252 = vld [vmem:[#allocation6 + $0x400] sm:$0xff]
    %v253 = vld [vmem:[#allocation6 + $0x408] sm:$0xff]
    %v254 = vld [vmem:[#allocation6 + $0x410] sm:$0xff]
    %v255 = vld [vmem:[#allocation6 + $0x418] sm:$0xff]
    %v256 = vld [vmem:[#allocation6 + $0x420] sm:$0xff]
    %v257 = vld [vmem:[#allocation6 + $0x428] sm:$0xff]
    %v258 = vld [vmem:[#allocation6 + $0x430] sm:$0xff]
    %v259 = vld [vmem:[#allocation6 + $0x438] sm:$0xff]
    %v260 = vld [vmem:[#allocation6 + $0x440] sm:$0xff]
    %v261 = vld [vmem:[#allocation6 + $0x448] sm:$0xff]
    %v262 = vld [vmem:[#allocation6 + $0x450] sm:$0xff]
    %v263 = vld [vmem:[#allocation6 + $0x458] sm:$0xff]
    %v264 = vld [vmem:[#allocation6 + $0x460] sm:$0xff]
    %v265 = vld [vmem:[#allocation6 + $0x468] sm:$0xff]
    %v266 = vld [vmem:[#allocation6 + $0x470] sm:$0xff]
    %v267 = vld [vmem:[#allocation6 + $0x478] sm:$0xff]
    %v268 = vld [vmem:[#allocation6 + $0x480] sm:$0xff]
    %v269 = vld [vmem:[#allocation6 + $0x488] sm:$0xff]
    %v270 = vld [vmem:[#allocation6 + $0x490] sm:$0xff]
    %v271 = vld [vmem:[#allocation6 + $0x498] sm:$0xff]
    %v272 = vld [vmem:[#allocation6 + $0x4a0] sm:$0xff]
    %v273 = vld [vmem:[#allocation6 + $0x4a8] sm:$0xff]
    %v274 = vld [vmem:[#allocation6 + $0x4b0] sm:$0xff]
    %v275 = vld [vmem:[#allocation6 + $0x4b8] sm:$0xff]
    %v276 = vld [vmem:[#allocation6 + $0x4c0] sm:$0xff]
    %v277 = vld [vmem:[#allocation6 + $0x4c8] sm:$0xff]
    %v278 = vld [vmem:[#allocation6 + $0x4d0] sm:$0xff]
    %v279 = vld [vmem:[#allocation6 + $0x4d8] sm:$0xff]
    %v280 = vld [vmem:[#allocation6 + $0x4e0] sm:$0xff]
    %v281 = vld [vmem:[#allocation6 + $0x4e8] sm:$0xff]
    %v282 = vld [vmem:[#allocation6 + $0x4f0] sm:$0xff]
    %v283 = vld [vmem:[#allocation6 + $0x4f8] sm:$0xff]
    %v284 = vld [vmem:[#allocation6 + $0x500] sm:$0xff]
    %v285 = vld [vmem:[#allocation6 + $0x508] sm:$0xff]
    %v286 = vld [vmem:[#allocation6 + $0x510] sm:$0xff]
    %v287 = vld [vmem:[#allocation6 + $0x518] sm:$0xff]
    %v288 = vld [vmem:[#allocation6 + $0x520] sm:$0xff]
    %v289 = vld [vmem:[#allocation6 + $0x528] sm:$0xff]
    %v290 = vld [vmem:[#allocation6 + $0x530] sm:$0xff]
    %v291 = vld [vmem:[#allocation6 + $0x538] sm:$0xff]
    %v292 = vld [vmem:[#allocation6 + $0x540] sm:$0xff]
    %v293 = vld [vmem:[#allocation6 + $0x548] sm:$0xff]
    %v294 = vld [vmem:[#allocation6 + $0x550] sm:$0xff]
    %v295 = vld [vmem:[#allocation6 + $0x558] sm:$0xff]
    %v296 = vld [vmem:[#allocation6 + $0x560] sm:$0xff]
    %v297 = vld [vmem:[#allocation6 + $0x568] sm:$0xff]
    %v298 = vld [vmem:[#allocation6 + $0x570] sm:$0xff]
    %v299 = vld [vmem:[#allocation6 + $0x578] sm:$0xff]
    %v300 = vld [vmem:[#allocation6 + $0x580] sm:$0xff]
    %v301 = vld [vmem:[#allocation6 + $0x588] sm:$0xff]
    %v302 = vld [vmem:[#allocation6 + $0x590] sm:$0xff]
    %v303 = vld [vmem:[#allocation6 + $0x598] sm:$0xff]
    %v304 = vld [vmem:[#allocation6 + $0x5a0] sm:$0xff]
    %v305 = vld [vmem:[#allocation6 + $0x5a8] sm:$0xff]
    %v306 = vld [vmem:[#allocation6 + $0x5b0] sm:$0xff]
    %v307 = vld [vmem:[#allocation6 + $0x5b8] sm:$0xff]
    %v308 = vld [vmem:[#allocation6 + $0x5c0] sm:$0xff]
    %v309 = vld [vmem:[#allocation6 + $0x5c8] sm:$0xff]
    %v310 = vld [vmem:[#allocation6 + $0x5d0] sm:$0xff]
    %v311 = vld [vmem:[#allocation6 + $0x5d8] sm:$0xff]
    %v312 = vld [vmem:[#allocation6 + $0x5e0] sm:$0xff]
    %v313 = vld [vmem:[#allocation6 + $0x5e8] sm:$0xff]
    %v314 = vld [vmem:[#allocation6 + $0x5f0] sm:$0xff]
    %v315 = vld [vmem:[#allocation6 + $0x5f8] sm:$0xff]
    %v316 = vld [vmem:[#allocation6 + $0x600] sm:$0xff]
    %v317 = vld [vmem:[#allocation6 + $0x608] sm:$0xff]
    %v318 = vld [vmem:[#allocation6 + $0x610] sm:$0xff]
    %v319 = vld [vmem:[#allocation6 + $0x618] sm:$0xff]
    %v320 = vld [vmem:[#allocation6 + $0x620] sm:$0xff]
    %v321 = vld [vmem:[#allocation6 + $0x628] sm:$0xff]
    %v322 = vld [vmem:[#allocation6 + $0x630] sm:$0xff]
    %v323 = vld [vmem:[#allocation6 + $0x638] sm:$0xff]
    %v324 = vld [vmem:[#allocation6 + $0x640] sm:$0xff]
    %v325 = vld [vmem:[#allocation6 + $0x648] sm:$0xff]
    %v326 = vld [vmem:[#allocation6 + $0x650] sm:$0xff]
    %v327 = vld [vmem:[#allocation6 + $0x658] sm:$0xff]
    %v328 = vld [vmem:[#allocation6 + $0x660] sm:$0xff]
    %v329 = vld [vmem:[#allocation6 + $0x668] sm:$0xff]
    %v330 = vld [vmem:[#allocation6 + $0x670] sm:$0xff]
    %v331 = vld [vmem:[#allocation6 + $0x678] sm:$0xff]
    %v332 = vld [vmem:[#allocation6 + $0x680] sm:$0xff]
    %v333 = vld [vmem:[#allocation6 + $0x688] sm:$0xff]
    %v334 = vld [vmem:[#allocation6 + $0x690] sm:$0xff]
    %v335 = vld [vmem:[#allocation6 + $0x698] sm:$0xff]
    %v336 = vld [vmem:[#allocation6 + $0x6a0] sm:$0xff]
    %v337 = vld [vmem:[#allocation6 + $0x6a8] sm:$0xff]
    %v338 = vld [vmem:[#allocation6 + $0x6b0] sm:$0xff]
    %v339 = vld [vmem:[#allocation6 + $0x6b8] sm:$0xff]
    %v340 = vld [vmem:[#allocation6 + $0x6c0] sm:$0xff]
    %v341 = vld [vmem:[#allocation6 + $0x6c8] sm:$0xff]
    %v342 = vld [vmem:[#allocation6 + $0x6d0] sm:$0xff]
    %v343 = vld [vmem:[#allocation6 + $0x6d8] sm:$0xff]
    %v344 = vld [vmem:[#allocation6 + $0x6e0] sm:$0xff]
    %v345 = vld [vmem:[#allocation6 + $0x6e8] sm:$0xff]
    %v346 = vld [vmem:[#allocation6 + $0x6f0] sm:$0xff]
    %v347 = vld [vmem:[#allocation6 + $0x6f8] sm:$0xff]
    %v348 = vld [vmem:[#allocation6 + $0x700] sm:$0xff]
    %v349 = vld [vmem:[#allocation6 + $0x708] sm:$0xff]
    %v350 = vld [vmem:[#allocation6 + $0x710] sm:$0xff]
    %v351 = vld [vmem:[#allocation6 + $0x718] sm:$0xff]
    %v352 = vld [vmem:[#allocation6 + $0x720] sm:$0xff]
    %v353 = vld [vmem:[#allocation6 + $0x728] sm:$0xff]
    %v354 = vld [vmem:[#allocation6 + $0x730] sm:$0xff]
    %v355 = vld [vmem:[#allocation6 + $0x738] sm:$0xff]
    %v356 = vld [vmem:[#allocation6 + $0x740] sm:$0xff]
    %v357 = vld [vmem:[#allocation6 + $0x748] sm:$0xff]
    %v358 = vld [vmem:[#allocation6 + $0x750] sm:$0xff]
    %v359 = vld [vmem:[#allocation6 + $0x758] sm:$0xff]
    %v360 = vld [vmem:[#allocation6 + $0x760] sm:$0xff]
    %v361 = vld [vmem:[#allocation6 + $0x768] sm:$0xff]
    %v362 = vld [vmem:[#allocation6 + $0x770] sm:$0xff]
    %v363 = vld [vmem:[#allocation6 + $0x778] sm:$0xff]
    %v364 = vld [vmem:[#allocation6 + $0x780] sm:$0xff]
    %v365 = vld [vmem:[#allocation6 + $0x788] sm:$0xff]
    %v366 = vld [vmem:[#allocation6 + $0x790] sm:$0xff]
    %v367 = vld [vmem:[#allocation6 + $0x798] sm:$0xff]
    %v368 = vld [vmem:[#allocation6 + $0x7a0] sm:$0xff]
    %v369 = vld [vmem:[#allocation6 + $0x7a8] sm:$0xff]
    %v370 = vld [vmem:[#allocation6 + $0x7b0] sm:$0xff]
    %v371 = vld [vmem:[#allocation6 + $0x7b8] sm:$0xff]
    %v372 = vld [vmem:[#allocation6 + $0x7c0] sm:$0xff]
    %v373 = vld [vmem:[#allocation6 + $0x7c8] sm:$0xff]
    %v374 = vld [vmem:[#allocation6 + $0x7d0] sm:$0xff]
    %v375 = vld [vmem:[#allocation6 + $0x7d8] sm:$0xff]
    %v376 = vld [vmem:[#allocation6 + $0x7e0] sm:$0xff]
    %v377 = vld [vmem:[#allocation6 + $0x7e8] sm:$0xff]
    %v378 = vld [vmem:[#allocation6 + $0x7f0] sm:$0xff]
    %v379 = vld [vmem:[#allocation6 + $0x7f8] sm:$0xff]
    %v380 = vld [vmem:[#allocation6 + $0x800] sm:$0xff]
    %v381 = vld [vmem:[#allocation6 + $0x808] sm:$0xff]
    %v382 = vld [vmem:[#allocation6 + $0x810] sm:$0xff]
    %v383 = vld [vmem:[#allocation6 + $0x818] sm:$0xff]
    %v384 = vld [vmem:[#allocation6 + $0x820] sm:$0xff]
    %v385 = vld [vmem:[#allocation6 + $0x828] sm:$0xff]
    %v386 = vld [vmem:[#allocation6 + $0x830] sm:$0xff]
    %v387 = vld [vmem:[#allocation6 + $0x838] sm:$0xff]
    %v388 = vld [vmem:[#allocation6 + $0x840] sm:$0xff]
    %v389 = vld [vmem:[#allocation6 + $0x848] sm:$0xff]
    %v390 = vld [vmem:[#allocation6 + $0x850] sm:$0xff]
    %v391 = vld [vmem:[#allocation6 + $0x858] sm:$0xff]
    %v392 = vld [vmem:[#allocation6 + $0x860] sm:$0xff]
    %v393 = vld [vmem:[#allocation6 + $0x868] sm:$0xff]
    %v394 = vld [vmem:[#allocation6 + $0x870] sm:$0xff]
    %v395 = vld [vmem:[#allocation6 + $0x878] sm:$0xff]
    %v396 = vld [vmem:[#allocation6 + $0x880] sm:$0xff]
    %v397 = vld [vmem:[#allocation6 + $0x888] sm:$0xff]
    %v398 = vld [vmem:[#allocation6 + $0x890] sm:$0xff]
    %v399 = vld [vmem:[#allocation6 + $0x898] sm:$0xff]
    %v400 = vld [vmem:[#allocation6 + $0x8a0] sm:$0xff]
    %v401 = vld [vmem:[#allocation6 + $0x8a8] sm:$0xff]
    %v402 = vld [vmem:[#allocation6 + $0x8b0] sm:$0xff]
    %v403 = vld [vmem:[#allocation6 + $0x8b8] sm:$0xff]
    %v404 = vld [vmem:[#allocation6 + $0x8c0] sm:$0xff]
    %v405 = vld [vmem:[#allocation6 + $0x8c8] sm:$0xff]
    %v406 = vld [vmem:[#allocation6 + $0x8d0] sm:$0xff]
    %v407 = vld [vmem:[#allocation6 + $0x8d8] sm:$0xff]
    %v408 = vld [vmem:[#allocation6 + $0x8e0] sm:$0xff]
    %v409 = vld [vmem:[#allocation6 + $0x8e8] sm:$0xff]
    %v410 = vld [vmem:[#allocation6 + $0x8f0] sm:$0xff]
    %v411 = vld [vmem:[#allocation6 + $0x8f8] sm:$0xff]
    %v412 = vld [vmem:[#allocation6 + $0x900] sm:$0xff]
    %v413 = vld [vmem:[#allocation6 + $0x908] sm:$0xff]
    %v414 = vld [vmem:[#allocation6 + $0x910] sm:$0xff]
    %v415 = vld [vmem:[#allocation6 + $0x918] sm:$0xff]
    %v416 = vld [vmem:[#allocation6 + $0x920] sm:$0xff]
    %v417 = vld [vmem:[#allocation6 + $0x928] sm:$0xff]
    %v418 = vld [vmem:[#allocation6 + $0x930] sm:$0xff]
    %v419 = vld [vmem:[#allocation6 + $0x938] sm:$0xff]
    %v420 = vld [vmem:[#allocation6 + $0x940] sm:$0xff]
    %v421 = vld [vmem:[#allocation6 + $0x948] sm:$0xff]
    %v422 = vld [vmem:[#allocation6 + $0x950] sm:$0xff]
    %v423 = vld [vmem:[#allocation6 + $0x958] sm:$0xff]
    %v424 = vld [vmem:[#allocation6 + $0x960] sm:$0xff]
    %v425 = vld [vmem:[#allocation6 + $0x968] sm:$0xff]
    %v426 = vld [vmem:[#allocation6 + $0x970] sm:$0xff]
    %v427 = vld [vmem:[#allocation6 + $0x978] sm:$0xff]
    %v428 = vld [vmem:[#allocation6 + $0x980] sm:$0xff]
    %v429 = vld [vmem:[#allocation6 + $0x988] sm:$0xff]
    %v430 = vld [vmem:[#allocation6 + $0x990] sm:$0xff]
    %v431 = vld [vmem:[#allocation6 + $0x998] sm:$0xff]
    %v432 = vld [vmem:[#allocation6 + $0x9a0] sm:$0xff]
    %v433 = vld [vmem:[#allocation6 + $0x9a8] sm:$0xff]
    %v434 = vld [vmem:[#allocation6 + $0x9b0] sm:$0xff]
    %v435 = vld [vmem:[#allocation6 + $0x9b8] sm:$0xff]
    %v436 = vld [vmem:[#allocation6 + $0x9c0] sm:$0xff]
    %v437 = vld [vmem:[#allocation6 + $0x9c8] sm:$0xff]
    %v438 = vld [vmem:[#allocation6 + $0x9d0] sm:$0xff]
    %v439 = vld [vmem:[#allocation6 + $0x9d8] sm:$0xff]
    %v440 = vld [vmem:[#allocation6 + $0x9e0] sm:$0xff]
    %v441 = vld [vmem:[#allocation6 + $0x9e8] sm:$0xff]
    %v442 = vld [vmem:[#allocation6 + $0x9f0] sm:$0xff]
    %v443 = vld [vmem:[#allocation6 + $0x9f8] sm:$0xff]
    %v444 = vld [vmem:[#allocation6 + $0xa00] sm:$0xff]
    %v445 = vld [vmem:[#allocation6 + $0xa08] sm:$0xff]
    %v446 = vld [vmem:[#allocation6 + $0xa10] sm:$0xff]
    %v447 = vld [vmem:[#allocation6 + $0xa18] sm:$0xff]
    %v448 = vld [vmem:[#allocation6 + $0xa20] sm:$0xff]
    %v449 = vld [vmem:[#allocation6 + $0xa28] sm:$0xff]
    %v450 = vld [vmem:[#allocation6 + $0xa30] sm:$0xff]
    %v451 = vld [vmem:[#allocation6 + $0xa38] sm:$0xff]
    %v452 = vld [vmem:[#allocation6 + $0xa40] sm:$0xff]
    %v453 = vld [vmem:[#allocation6 + $0xa48] sm:$0xff]
    %v454 = vld [vmem:[#allocation6 + $0xa50] sm:$0xff]
    %v455 = vld [vmem:[#allocation6 + $0xa58] sm:$0xff]
    %v456 = vld [vmem:[#allocation6 + $0xa60] sm:$0xff]
    %v457 = vld [vmem:[#allocation6 + $0xa68] sm:$0xff]
    %v458 = vld [vmem:[#allocation6 + $0xa70] sm:$0xff]
    %v459 = vld [vmem:[#allocation6 + $0xa78] sm:$0xff]
    %v460 = vld [vmem:[#allocation6 + $0xa80] sm:$0xff]
    %v461 = vld [vmem:[#allocation6 + $0xa88] sm:$0xff]
    %v462 = vld [vmem:[#allocation6 + $0xa90] sm:$0xff]
    %v463 = vld [vmem:[#allocation6 + $0xa98] sm:$0xff]
    %v464 = vld [vmem:[#allocation6 + $0xaa0] sm:$0xff]
    %v465 = vld [vmem:[#allocation6 + $0xaa8] sm:$0xff]
    %v466 = vld [vmem:[#allocation6 + $0xab0] sm:$0xff]
    %v467 = vld [vmem:[#allocation6 + $0xab8] sm:$0xff]
    %v468 = vld [vmem:[#allocation6 + $0xac0] sm:$0xff]
    %v469 = vld [vmem:[#allocation6 + $0xac8] sm:$0xff]
    %v470 = vld [vmem:[#allocation6 + $0xad0] sm:$0xff]
    %v471 = vld [vmem:[#allocation6 + $0xad8] sm:$0xff]
    %v472 = vld [vmem:[#allocation6 + $0xae0] sm:$0xff]
    %v473 = vld [vmem:[#allocation6 + $0xae8] sm:$0xff]
    %v474 = vld [vmem:[#allocation6 + $0xaf0] sm:$0xff]
    %v475 = vld [vmem:[#allocation6 + $0xaf8] sm:$0xff]
    %v476 = vld [vmem:[#allocation6 + $0xb00] sm:$0xff]
    %v477 = vld [vmem:[#allocation6 + $0xb08] sm:$0xff]
    %v478 = vld [vmem:[#allocation6 + $0xb10] sm:$0xff]
    %v479 = vld [vmem:[#allocation6 + $0xb18] sm:$0xff]
    %v480 = vld [vmem:[#allocation6 + $0xb20] sm:$0xff]
    %v481 = vld [vmem:[#allocation6 + $0xb28] sm:$0xff]
    %v482 = vld [vmem:[#allocation6 + $0xb30] sm:$0xff]
    %v483 = vld [vmem:[#allocation6 + $0xb38] sm:$0xff]
    %v484 = vld [vmem:[#allocation6 + $0xb40] sm:$0xff]
    %v485 = vld [vmem:[#allocation6 + $0xb48] sm:$0xff]
    %v486 = vld [vmem:[#allocation6 + $0xb50] sm:$0xff]
    %v487 = vld [vmem:[#allocation6 + $0xb58] sm:$0xff]
    %v488 = vld [vmem:[#allocation6 + $0xb60] sm:$0xff]
    %v489 = vld [vmem:[#allocation6 + $0xb68] sm:$0xff]
    %v490 = vld [vmem:[#allocation6 + $0xb70] sm:$0xff]
    %v491 = vld [vmem:[#allocation6 + $0xb78] sm:$0xff]
    %v492 = vld [vmem:[#allocation6 + $0xb80] sm:$0xff]
    %v493 = vld [vmem:[#allocation6 + $0xb88] sm:$0xff]
    %v494 = vld [vmem:[#allocation6 + $0xb90] sm:$0xff]
    %v495 = vld [vmem:[#allocation6 + $0xb98] sm:$0xff]
    %v496 = vld [vmem:[#allocation6 + $0xba0] sm:$0xff]
    %v497 = vld [vmem:[#allocation6 + $0xba8] sm:$0xff]
    %v498 = vld [vmem:[#allocation6 + $0xbb0] sm:$0xff]
    %v499 = vld [vmem:[#allocation6 + $0xbb8] sm:$0xff]
    %v500 = vld [vmem:[#allocation6 + $0xbc0] sm:$0xff]
    %v501 = vld [vmem:[#allocation6 + $0xbc8] sm:$0xff]
    %v502 = vld [vmem:[#allocation6 + $0xbd0] sm:$0xff]
    %v503 = vld [vmem:[#allocation6 + $0xbd8] sm:$0xff]
    %v504 = vld [vmem:[#allocation6 + $0xbe0] sm:$0xff]
    %v505 = vld [vmem:[#allocation6 + $0xbe8] sm:$0xff]
    %v506 = vld [vmem:[#allocation6 + $0xbf0] sm:$0xff]
    %v507 = vld [vmem:[#allocation6 + $0xbf8] sm:$0xff]
    %v508 = vld [vmem:[#allocation8] sm:$0xff]
    %v509 = vld [vmem:[#allocation8 + $0x8] sm:$0xf]
    %v510 = vld [vmem:[#allocation8 + $0xc] sm:$0xff]
    %v511 = vld [vmem:[#allocation8 + $0x14] sm:$0xf]
    %v512 = vld [vmem:[#allocation8 + $0x18] sm:$0xff]
    %v513 = vld [vmem:[#allocation8 + $0x20] sm:$0xf]
    %v514 = vld [vmem:[#allocation8 + $0x24] sm:$0xff]
    %v515 = vld [vmem:[#allocation8 + $0x2c] sm:$0xf]
    %v516 = vld [vmem:[#allocation8 + $0x30] sm:$0xff]
    %v517 = vld [vmem:[#allocation8 + $0x38] sm:$0xf]
    %v518 = vld [vmem:[#allocation8 + $0x3c] sm:$0xff]
    %v519 = vld [vmem:[#allocation8 + $0x44] sm:$0xf]
    %v520 = vld [vmem:[#allocation8 + $0x48] sm:$0xff]
    %v521 = vld [vmem:[#allocation8 + $0x50] sm:$0xf]
    %v522 = vld [vmem:[#allocation8 + $0x54] sm:$0xff]
    %v523 = vld [vmem:[#allocation8 + $0x5c] sm:$0xf]
    %v524 = vld [vmem:[#allocation9] sm:$0xff]
    %v525 = vld [vmem:[#allocation9 + $0x8] sm:$0xff]
    %v526 = vld [vmem:[#allocation9 + $0x10] sm:$0xff]
    %v530 = vcombine.low %v524, %v525
    %v531 = vcombine.high %v524, %v525
    %v532 = vcombine.high %v526, %v526
    %v534 = vunpack.c.l.s4 1966171168
    %v535 = vunpack.c.0.s8 %v534
    %v536 = vlaneseq
    %v537 = vshrl.u32 %v536, 7
    %v538 = vsub.s32 %v535, %v537
    %v539 = vrot.slane %v530, %v538
    %v541 = vunpack.c.l.s4 1966171168
    %v542 = vunpack.c.0.s8 %v541
    %v543 = vlaneseq
    %v544 = vshrl.u32 %v543, 7
    %v545 = vsub.s32 %v542, %v544
    %v546 = vrot.slane %v531, %v545
    %v548 = vunpack.c.l.s4 1966171168
    %v549 = vunpack.c.0.s8 %v548
    %v550 = vlaneseq
    %v551 = vshrl.u32 %v550, 7
    %v552 = vsub.s32 %v549, %v551
    %v553 = vrot.slane %v526, %v552
    %v555 = vunpack.c.l.s4 1966171168
    %v556 = vunpack.c.0.s8 %v555
    %v557 = vlaneseq
    %v558 = vshrl.u32 %v557, 7
    %v559 = vsub.s32 %v556, %v558
    %v560 = vrot.slane %v532, %v559
    %v561 = vcombine.low %v539, %v553
    %v562 = vcombine.high %v539, %v553
    %v563 = vcombine.low %v546, %v560
    %v564 = vcombine.high %v546, %v560
    %v566 = vunpack.c.l.s4 1966171168
    %v567 = vunpack.c.0.s8 %v566
    %v568 = vlaneseq
    %v569 = vshrl.u32 %v568, 7
    %v570 = vsub.s32 %v567, %v569
    %v571 = vrot.slane %v561, %v570
    %v573 = vunpack.c.l.s4 1966171168
    %v574 = vunpack.c.0.s8 %v573
    %v575 = vlaneseq
    %v576 = vshrl.u32 %v575, 7
    %v577 = vsub.s32 %v574, %v576
    %v578 = vrot.slane %v563, %v577
    %v580 = vunpack.c.l.s4 1966171168
    %v581 = vunpack.c.0.s8 %v580
    %v582 = vlaneseq
    %v583 = vshrl.u32 %v582, 7
    %v584 = vsub.s32 %v581, %v583
    %v585 = vrot.slane %v562, %v584
    %v587 = vunpack.c.l.s4 1966171168
    %v588 = vunpack.c.0.s8 %v587
    %v589 = vlaneseq
    %v590 = vshrl.u32 %v589, 7
    %v591 = vsub.s32 %v588, %v590
    %v592 = vrot.slane %v564, %v591
    %v593 = vcombine.high %v571, %v571
    %v594 = vcombine.high %v578, %v578
    %v595 = vcombine.high %v585, %v585
    %v596 = vcombine.high %v592, %v592
    %v597 = vld [vmem:[#allocation11] sm:$0xff]
    %v598 = vld [vmem:[#allocation11 + $0x8] sm:$0xff]
    %v599 = vld [vmem:[#allocation11 + $0x10] sm:$0xff]
    %v603 = vcombine.low %v597, %v598
    %v604 = vcombine.high %v597, %v598
    %v605 = vcombine.high %v599, %v599
    %v607 = vunpack.c.l.s4 1966171168
    %v608 = vunpack.c.0.s8 %v607
    %v609 = vlaneseq
    %v610 = vshrl.u32 %v609, 7
    %v611 = vsub.s32 %v608, %v610
    %v612 = vrot.slane %v603, %v611
    %v614 = vunpack.c.l.s4 1966171168
    %v615 = vunpack.c.0.s8 %v614
    %v616 = vlaneseq
    %v617 = vshrl.u32 %v616, 7
    %v618 = vsub.s32 %v615, %v617
    %v619 = vrot.slane %v604, %v618
    %v621 = vunpack.c.l.s4 1966171168
    %v622 = vunpack.c.0.s8 %v621
    %v623 = vlaneseq
    %v624 = vshrl.u32 %v623, 7
    %v625 = vsub.s32 %v622, %v624
    %v626 = vrot.slane %v599, %v625
    %v628 = vunpack.c.l.s4 1966171168
    %v629 = vunpack.c.0.s8 %v628
    %v630 = vlaneseq
    %v631 = vshrl.u32 %v630, 7
    %v632 = vsub.s32 %v629, %v631
    %v633 = vrot.slane %v605, %v632
    %v634 = vcombine.low %v612, %v626
    %v635 = vcombine.high %v612, %v626
    %v636 = vcombine.low %v619, %v633
    %v637 = vcombine.high %v619, %v633
    %v639 = vunpack.c.l.s4 1966171168
    %v640 = vunpack.c.0.s8 %v639
    %v641 = vlaneseq
    %v642 = vshrl.u32 %v641, 7
    %v643 = vsub.s32 %v640, %v642
    %v644 = vrot.slane %v634, %v643
    %v646 = vunpack.c.l.s4 1966171168
    %v647 = vunpack.c.0.s8 %v646
    %v648 = vlaneseq
    %v649 = vshrl.u32 %v648, 7
    %v650 = vsub.s32 %v647, %v649
    %v651 = vrot.slane %v636, %v650
    %v653 = vunpack.c.l.s4 1966171168
    %v654 = vunpack.c.0.s8 %v653
    %v655 = vlaneseq
    %v656 = vshrl.u32 %v655, 7
    %v657 = vsub.s32 %v654, %v656
    %v658 = vrot.slane %v635, %v657
    %v660 = vunpack.c.l.s4 1966171168
    %v661 = vunpack.c.0.s8 %v660
    %v662 = vlaneseq
    %v663 = vshrl.u32 %v662, 7
    %v664 = vsub.s32 %v661, %v663
    %v665 = vrot.slane %v637, %v664
    %v666 = vcombine.high %v644, %v644
    %v667 = vcombine.high %v651, %v651
    %v668 = vcombine.high %v658, %v658
    %v669 = vcombine.high %v665, %v665
    %v670 = vlaneseq
    %v671 = vshrl.u32 %v670, 7
    %v672 = vsub.s32 0, %v671
    %v673 = vrot.slane %v571, %v672
    %v674 = vlaneseq
    %v675 = vshrl.u32 %v674, 7
    %v676 = vsub.s32 1, %v675
    %v677 = vrot.slane %v571, %v676
    %v678 = vlaneseq
    %v679 = vshrl.u32 %v678, 7
    %v680 = vsub.s32 2, %v679
    %v681 = vrot.slane %v571, %v680
    %v682 = vlaneseq
    %v683 = vshrl.u32 %v682, 7
    %v684 = vsub.s32 0, %v683
    %v685 = vrot.slane %v585, %v684
    %v686 = vlaneseq
    %v687 = vshrl.u32 %v686, 7
    %v688 = vsub.s32 1, %v687
    %v689 = vrot.slane %v585, %v688
    %v690 = vlaneseq
    %v691 = vshrl.u32 %v690, 7
    %v692 = vsub.s32 2, %v691
    %v693 = vrot.slane %v585, %v692
    %v694 = vlaneseq
    %v695 = vshrl.u32 %v694, 7
    %v696 = vsub.s32 0, %v695
    %v697 = vrot.slane %v593, %v696
    %v698 = vlaneseq
    %v699 = vshrl.u32 %v698, 7
    %v700 = vsub.s32 1, %v699
    %v701 = vrot.slane %v593, %v700
    %v702 = vlaneseq
    %v703 = vshrl.u32 %v702, 7
    %v704 = vsub.s32 2, %v703
    %v705 = vrot.slane %v593, %v704
    %v706 = vlaneseq
    %v707 = vshrl.u32 %v706, 7
    %v708 = vsub.s32 0, %v707
    %v709 = vrot.slane %v595, %v708
    %v710 = vlaneseq
    %v711 = vshrl.u32 %v710, 7
    %v712 = vsub.s32 1, %v711
    %v713 = vrot.slane %v595, %v712
    %v714 = vlaneseq
    %v715 = vshrl.u32 %v714, 7
    %v716 = vsub.s32 2, %v715
    %v717 = vrot.slane %v595, %v716
    %v718 = vlaneseq
    %v719 = vshrl.u32 %v718, 7
    %v720 = vsub.s32 0, %v719
    %v721 = vrot.slane %v578, %v720
    %v722 = vlaneseq
    %v723 = vshrl.u32 %v722, 7
    %v724 = vsub.s32 1, %v723
    %v725 = vrot.slane %v578, %v724
    %v726 = vlaneseq
    %v727 = vshrl.u32 %v726, 7
    %v728 = vsub.s32 2, %v727
    %v729 = vrot.slane %v578, %v728
    %v730 = vlaneseq
    %v731 = vshrl.u32 %v730, 7
    %v732 = vsub.s32 0, %v731
    %v733 = vrot.slane %v592, %v732
    %v734 = vlaneseq
    %v735 = vshrl.u32 %v734, 7
    %v736 = vsub.s32 1, %v735
    %v737 = vrot.slane %v592, %v736
    %v738 = vlaneseq
    %v739 = vshrl.u32 %v738, 7
    %v740 = vsub.s32 2, %v739
    %v741 = vrot.slane %v592, %v740
    %v742 = vlaneseq
    %v743 = vshrl.u32 %v742, 7
    %v744 = vsub.s32 0, %v743
    %v745 = vrot.slane %v594, %v744
    %v746 = vlaneseq
    %v747 = vshrl.u32 %v746, 7
    %v748 = vsub.s32 1, %v747
    %v749 = vrot.slane %v594, %v748
    %v750 = vlaneseq
    %v751 = vshrl.u32 %v750, 7
    %v752 = vsub.s32 2, %v751
    %v753 = vrot.slane %v594, %v752
    %v754 = vlaneseq
    %v755 = vshrl.u32 %v754, 7
    %v756 = vsub.s32 0, %v755
    %v757 = vrot.slane %v596, %v756
    %v758 = vlaneseq
    %v759 = vshrl.u32 %v758, 7
    %v760 = vsub.s32 1, %v759
    %v761 = vrot.slane %v596, %v760
    %v762 = vlaneseq
    %v763 = vshrl.u32 %v762, 7
    %v764 = vsub.s32 2, %v763
    %v765 = vrot.slane %v596, %v764
    %790 = vmatprep.subr.mxu0 %v125
    %791 = vmatpush1.msra.mxu0 %v124
    %792 = vmatprep.subr.mxu0 %v128
    %793 = vmatpush1.msra.mxu0 %v127
    %794 = vmatprep.subr.mxu0 %v131
    %795 = vmatpush1.msra.mxu0 %v130
    %796 = vmatprep.subr.mxu0 %v134
    %797 = vmatpush1.msra.mxu0 %v133
    %798 = vmatprep.subr.mxu0 %v137
    %799 = vmatpush1.msra.mxu0 %v136
    %800 = vmatprep.subr.mxu0 %v140
    %801 = vmatpush1.msra.mxu0 %v139
    %802 = vmatprep.subr.mxu0 %v143
    %803 = vmatpush1.msra.mxu0 %v142
    %804 = vmatprep.subr.mxu0 %v146
    %805 = vmatpush1.msra.mxu0 %v145
    %806 = vmatprep.subr.mxu0 %v149
    %807 = vmatpush1.msra.mxu0 %v148
    %808 = vmatprep.subr.mxu0 %v152
    %809 = vmatpush1.msra.mxu0 %v151
    %810 = vmatprep.subr.mxu0 %v155
    %811 = vmatpush1.msra.mxu0 %v154
    %812 = vmatprep.subr.mxu0 %v158
    %813 = vmatpush1.msra.mxu0 %v157
    %814 = vmatprep.subr.mxu0 %v161
    %815 = vmatpush1.msra.mxu0 %v160
    %816 = vmatprep.subr.mxu0 %v164
    %817 = vmatpush1.msra.mxu0 %v163
    %818 = vmatprep.subr.mxu0 %v167
    %819 = vmatpush1.msra.mxu0 %v166
    %820 = vmatprep.subr.mxu0 %v170
    %821 = vmatpush1.msra.mxu0 %v169
    %822 = vmatprep.subr.mxu0 0.0
    %823 = vmatpush1.msra.mxu0 0.0
    %824 = vmatprep.subr.mxu0 0.0
    %825 = vmatpush1.msra.mxu0 0.0
    %826 = vmatprep.subr.mxu0 0.0
    %827 = vmatpush1.msra.mxu0 0.0
    %828 = vmatprep.subr.mxu0 0.0
    %829 = vmatpush1.msra.mxu0 0.0
    %830 = vmatprep.subr.mxu0 0.0
    %831 = vmatpush1.msra.mxu0 0.0
    %832 = vmatprep.subr.mxu0 0.0
    %833 = vmatpush1.msra.mxu0 0.0
    %834 = vmatprep.subr.mxu0 0.0
    %835 = vmatpush1.msra.mxu0 0.0
    %836 = vmatprep.subr.mxu0 0.0
    %837 = vmatpush1.msra.mxu0 0.0
    %838 = vmatprep.subr.mxu0 0.0
    %839 = vmatpush1.msra.mxu0 0.0
    %840 = vmatprep.subr.mxu0 0.0
    %841 = vmatpush1.msra.mxu0 0.0
    %842 = vmatprep.subr.mxu0 0.0
    %843 = vmatpush1.msra.mxu0 0.0
    %844 = vmatprep.subr.mxu0 0.0
    %845 = vmatpush1.msra.mxu0 0.0
    %846 = vmatprep.subr.mxu0 0.0
    %847 = vmatpush1.msra.mxu0 0.0
    %848 = vmatprep.subr.mxu0 0.0
    %849 = vmatpush1.msra.mxu0 0.0
    %850 = vmatprep.subr.mxu0 0.0
    %851 = vmatpush1.msra.mxu0 0.0
    %852 = vmatprep.subr.mxu0 0.0
    %853 = vmatpush1.msra.mxu0 0.0
    %854 = vmatprep.mubr.f32.mxu0 0.0
    %855 = vmatmul.mubr.f32.gmra.mrb[0].mxu0 %v108
    %v856 = vpop.f32.mrb[0].mxu0
    %v857 = vadd.f32 %v673, %v856
    %v858 = vpop.f32.mrb[0].mxu0
    %v859 = vadd.f32 %v677, %v858
    %860 = vdwg.mxu0
    %861 = vmatprep.subr.mxu0 0.0
    %862 = vmatpush1.msra.mxu0 %v126
    %863 = vmatprep.subr.mxu0 0.0
    %864 = vmatpush1.msra.mxu0 %v129
    %865 = vmatprep.subr.mxu0 0.0
    %866 = vmatpush1.msra.mxu0 %v132
    %867 = vmatprep.subr.mxu0 0.0
    %868 = vmatpush1.msra.mxu0 %v135
    %869 = vmatprep.subr.mxu0 0.0
    %870 = vmatpush1.msra.mxu0 %v138
    %871 = vmatprep.subr.mxu0 0.0
    %872 = vmatpush1.msra.mxu0 %v141
    %873 = vmatprep.subr.mxu0 0.0
    %874 = vmatpush1.msra.mxu0 %v144
    %875 = vmatprep.subr.mxu0 0.0
    %876 = vmatpush1.msra.mxu0 %v147
    %877 = vmatprep.subr.mxu0 0.0
    %878 = vmatpush1.msra.mxu0 %v150
    %879 = vmatprep.subr.mxu0 0.0
    %880 = vmatpush1.msra.mxu0 %v153
    %881 = vmatprep.subr.mxu0 0.0
    %882 = vmatpush1.msra.mxu0 %v156
    %883 = vmatprep.subr.mxu0 0.0
    %884 = vmatpush1.msra.mxu0 %v159
    %885 = vmatprep.subr.mxu0 0.0
    %886 = vmatpush1.msra.mxu0 %v162
    %887 = vmatprep.subr.mxu0 0.0
    %888 = vmatpush1.msra.mxu0 %v165
    %889 = vmatprep.subr.mxu0 0.0
    %890 = vmatpush1.msra.mxu0 %v168
    %891 = vmatprep.subr.mxu0 0.0
    %892 = vmatpush1.msra.mxu0 %v171
    %893 = vmatprep.subr.mxu0 0.0
    %894 = vmatpush1.msra.mxu0 0.0
    %895 = vmatprep.subr.mxu0 0.0
    %896 = vmatpush1.msra.mxu0 0.0
    %897 = vmatprep.subr.mxu0 0.0
    %898 = vmatpush1.msra.mxu0 0.0
    %899 = vmatprep.subr.mxu0 0.0
    %900 = vmatpush1.msra.mxu0 0.0
    %901 = vmatprep.subr.mxu0 0.0
    %902 = vmatpush1.msra.mxu0 0.0
    %903 = vmatprep.subr.mxu0 0.0
    %904 = vmatpush1.msra.mxu0 0.0
    %905 = vmatprep.subr.mxu0 0.0
    %906 = vmatpush1.msra.mxu0 0.0
    %907 = vmatprep.subr.mxu0 0.0
    %908 = vmatpush1.msra.mxu0 0.0
    %909 = vmatprep.subr.mxu0 0.0
    %910 = vmatpush1.msra.mxu0 0.0
    %911 = vmatprep.subr.mxu0 0.0
    %912 = vmatpush1.msra.mxu0 0.0
    %913 = vmatprep.subr.mxu0 0.0
    %914 = vmatpush1.msra.mxu0 0.0
    %915 = vmatprep.subr.mxu0 0.0
    %916 = vmatpush1.msra.mxu0 0.0
    %917 = vmatprep.subr.mxu0 0.0
    %918 = vmatpush1.msra.mxu0 0.0
    %919 = vmatprep.subr.mxu0 0.0
    %920 = vmatpush1.msra.mxu0 0.0
    %921 = vmatprep.subr.mxu0 0.0
    %922 = vmatpush1.msra.mxu0 0.0
    %923 = vmatprep.subr.mxu0 0.0
    %924 = vmatpush1.msra.mxu0 0.0
    %925 = vmatprep.mubr.f32.mxu0 0.0
    %926 = vmatmul.mubr.f32.gmra.mrb[0].mxu0 %v108
    %v927 = vpop.f32.mrb[0].mxu0
    %v928 = vadd.f32 %v681, %v927
    %v929 = vpop.f32.mrb[0].mxu0
    %930 = vdwg.mxu0
    %931 = vmatprep.subr.mxu0 %v173
    %932 = vmatpush1.msra.mxu0 %v172
    %933 = vmatprep.subr.mxu0 %v176
    %934 = vmatpush1.msra.mxu0 %v175
    %935 = vmatprep.subr.mxu0 %v179
    %936 = vmatpush1.msra.mxu0 %v178
    %937 = vmatprep.subr.mxu0 %v182
    %938 = vmatpush1.msra.mxu0 %v181
    %939 = vmatprep.subr.mxu0 %v185
    %940 = vmatpush1.msra.mxu0 %v184
    %941 = vmatprep.subr.mxu0 %v188
    %942 = vmatpush1.msra.mxu0 %v187
    %943 = vmatprep.subr.mxu0 %v191
    %944 = vmatpush1.msra.mxu0 %v190
    %945 = vmatprep.subr.mxu0 %v194
    %946 = vmatpush1.msra.mxu0 %v193
    %947 = vmatprep.subr.mxu0 %v197
    %948 = vmatpush1.msra.mxu0 %v196
    %949 = vmatprep.subr.mxu0 %v200
    %950 = vmatpush1.msra.mxu0 %v199
    %951 = vmatprep.subr.mxu0 %v203
    %952 = vmatpush1.msra.mxu0 %v202
    %953 = vmatprep.subr.mxu0 %v206
    %954 = vmatpush1.msra.mxu0 %v205
    %955 = vmatprep.subr.mxu0 %v209
    %956 = vmatpush1.msra.mxu0 %v208
    %957 = vmatprep.subr.mxu0 %v212
    %958 = vmatpush1.msra.mxu0 %v211
    %959 = vmatprep.subr.mxu0 %v215
    %960 = vmatpush1.msra.mxu0 %v214
    %961 = vmatprep.subr.mxu0 %v218
    %962 = vmatpush1.msra.mxu0 %v217
    %963 = vmatprep.subr.mxu0 0.0
    %964 = vmatpush1.msra.mxu0 0.0
    %965 = vmatprep.subr.mxu0 0.0
    %966 = vmatpush1.msra.mxu0 0.0
    %967 = vmatprep.subr.mxu0 0.0
    %968 = vmatpush1.msra.mxu0 0.0
    %969 = vmatprep.subr.mxu0 0.0
    %970 = vmatpush1.msra.mxu0 0.0
    %971 = vmatprep.subr.mxu0 0.0
    %972 = vmatpush1.msra.mxu0 0.0
    %973 = vmatprep.subr.mxu0 0.0
    %974 = vmatpush1.msra.mxu0 0.0
    %975 = vmatprep.subr.mxu0 0.0
    %976 = vmatpush1.msra.mxu0 0.0
    %977 = vmatprep.subr.mxu0 0.0
    %978 = vmatpush1.msra.mxu0 0.0
    %979 = vmatprep.subr.mxu0 0.0
    %980 = vmatpush1.msra.mxu0 0.0
    %981 = vmatprep.subr.mxu0 0.0
    %982 = vmatpush1.msra.mxu0 0.0
    %983 = vmatprep.subr.mxu0 0.0
    %984 = vmatpush1.msra.mxu0 0.0
    %985 = vmatprep.subr.mxu0 0.0
    %986 = vmatpush1.msra.mxu0 0.0
    %987 = vmatprep.subr.mxu0 0.0
    %988 = vmatpush1.msra.mxu0 0.0
    %989 = vmatprep.subr.mxu0 0.0
    %990 = vmatpush1.msra.mxu0 0.0
    %991 = vmatprep.subr.mxu0 0.0
    %992 = vmatpush1.msra.mxu0 0.0
    %993 = vmatprep.subr.mxu0 0.0
    %994 = vmatpush1.msra.mxu0 0.0
    %995 = vmatprep.mubr.f32.mxu0 0.0
    %996 = vmatmul.mubr.f32.gmra.mrb[0].mxu0 %v109
    %v997 = vpop.f32.mrb[0].mxu0
    %v998 = vadd.f32 %v685, %v997
    %v999 = vpop.f32.mrb[0].mxu0
    %v1000 = vadd.f32 %v689, %v999
    %1001 = vdwg.mxu0
    %1002 = vmatprep.subr.mxu0 0.0
    %1003 = vmatpush1.msra.mxu0 %v174
    %1004 = vmatprep.subr.mxu0 0.0
    %1005 = vmatpush1.msra.mxu0 %v177
    %1006 = vmatprep.subr.mxu0 0.0
    %1007 = vmatpush1.msra.mxu0 %v180
    %1008 = vmatprep.subr.mxu0 0.0
    %1009 = vmatpush1.msra.mxu0 %v183
    %1010 = vmatprep.subr.mxu0 0.0
    %1011 = vmatpush1.msra.mxu0 %v186
    %1012 = vmatprep.subr.mxu0 0.0
    %1013 = vmatpush1.msra.mxu0 %v189
    %1014 = vmatprep.subr.mxu0 0.0
    %1015 = vmatpush1.msra.mxu0 %v192
    %1016 = vmatprep.subr.mxu0 0.0
    %1017 = vmatpush1.msra.mxu0 %v195
    %1018 = vmatprep.subr.mxu0 0.0
    %1019 = vmatpush1.msra.mxu0 %v198
    %1020 = vmatprep.subr.mxu0 0.0
    %1021 = vmatpush1.msra.mxu0 %v201
    %1022 = vmatprep.subr.mxu0 0.0
    %1023 = vmatpush1.msra.mxu0 %v204
    %1024 = vmatprep.subr.mxu0 0.0
    %1025 = vmatpush1.msra.mxu0 %v207
    %1026 = vmatprep.subr.mxu0 0.0
    %1027 = vmatpush1.msra.mxu0 %v210
    %1028 = vmatprep.subr.mxu0 0.0
    %1029 = vmatpush1.msra.mxu0 %v213
    %1030 = vmatprep.subr.mxu0 0.0
    %1031 = vmatpush1.msra.mxu0 %v216
    %1032 = vmatprep.subr.mxu0 0.0
    %1033 = vmatpush1.msra.mxu0 %v219
    %1034 = vmatprep.subr.mxu0 0.0
    %1035 = vmatpush1.msra.mxu0 0.0
    %1036 = vmatprep.subr.mxu0 0.0
    %1037 = vmatpush1.msra.mxu0 0.0
    %1038 = vmatprep.subr.mxu0 0.0
    %1039 = vmatpush1.msra.mxu0 0.0
    %1040 = vmatprep.subr.mxu0 0.0
    %1041 = vmatpush1.msra.mxu0 0.0
    %1042 = vmatprep.subr.mxu0 0.0
    %1043 = vmatpush1.msra.mxu0 0.0
    %1044 = vmatprep.subr.mxu0 0.0
    %1045 = vmatpush1.msra.mxu0 0.0
    %1046 = vmatprep.subr.mxu0 0.0
    %1047 = vmatpush1.msra.mxu0 0.0
    %1048 = vmatprep.subr.mxu0 0.0
    %1049 = vmatpush1.msra.mxu0 0.0
    %1050 = vmatprep.subr.mxu0 0.0
    %1051 = vmatpush1.msra.mxu0 0.0
    %1052 = vmatprep.subr.mxu0 0.0
    %1053 = vmatpush1.msra.mxu0 0.0
    %1054 = vmatprep.subr.mxu0 0.0
    %1055 = vmatpush1.msra.mxu0 0.0
    %1056 = vmatprep.subr.mxu0 0.0
    %1057 = vmatpush1.msra.mxu0 0.0
    %1058 = vmatprep.subr.mxu0 0.0
    %1059 = vmatpush1.msra.mxu0 0.0
    %1060 = vmatprep.subr.mxu0 0.0
    %1061 = vmatpush1.msra.mxu0 0.0
    %1062 = vmatprep.subr.mxu0 0.0
    %1063 = vmatpush1.msra.mxu0 0.0
    %1064 = vmatprep.subr.mxu0 0.0
    %1065 = vmatpush1.msra.mxu0 0.0
    %1066 = vmatprep.mubr.f32.mxu0 0.0
    %1067 = vmatmul.mubr.f32.gmra.mrb[0].mxu0 %v109
    %v1068 = vpop.f32.mrb[0].mxu0
    %v1069 = vadd.f32 %v693, %v1068
    %v1070 = vpop.f32.mrb[0].mxu0
    %1071 = vdwg.mxu0
    %1072 = vmatprep.subr.mxu0 %v221
    %1073 = vmatpush1.msra.mxu0 %v220
    %1074 = vmatprep.subr.mxu0 %v224
    %1075 = vmatpush1.msra.mxu0 %v223
    %1076 = vmatprep.subr.mxu0 %v227
    %1077 = vmatpush1.msra.mxu0 %v226
    %1078 = vmatprep.subr.mxu0 %v230
    %1079 = vmatpush1.msra.mxu0 %v229
    %1080 = vmatprep.subr.mxu0 %v233
    %1081 = vmatpush1.msra.mxu0 %v232
    %1082 = vmatprep.subr.mxu0 %v236
    %1083 = vmatpush1.msra.mxu0 %v235
    %1084 = vmatprep.subr.mxu0 %v239
    %1085 = vmatpush1.msra.mxu0 %v238
    %1086 = vmatprep.subr.mxu0 %v242
    %1087 = vmatpush1.msra.mxu0 %v241
    %1088 = vmatprep.subr.mxu0 %v245
    %1089 = vmatpush1.msra.mxu0 %v244
    %1090 = vmatprep.subr.mxu0 %v248
    %1091 = vmatpush1.msra.mxu0 %v247
    %1092 = vmatprep.subr.mxu0 %v251
    %1093 = vmatpush1.msra.mxu0 %v250
    %1094 = vmatprep.subr.mxu0 %v254
    %1095 = vmatpush1.msra.mxu0 %v253
    %1096 = vmatprep.subr.mxu0 %v257
    %1097 = vmatpush1.msra.mxu0 %v256
    %1098 = vmatprep.subr.mxu0 %v260
    %1099 = vmatpush1.msra.mxu0 %v259
    %1100 = vmatprep.subr.mxu0 %v263
    %1101 = vmatpush1.msra.mxu0 %v262
    %1102 = vmatprep.subr.mxu0 %v266
    %1103 = vmatpush1.msra.mxu0 %v265
    %1104 = vmatprep.subr.mxu0 0.0
    %1105 = vmatpush1.msra.mxu0 0.0
    %1106 = vmatprep.subr.mxu0 0.0
    %1107 = vmatpush1.msra.mxu0 0.0
    %1108 = vmatprep.subr.mxu0 0.0
    %1109 = vmatpush1.msra.mxu0 0.0
    %1110 = vmatprep.subr.mxu0 0.0
    %1111 = vmatpush1.msra.mxu0 0.0
    %1112 = vmatprep.subr.mxu0 0.0
    %1113 = vmatpush1.msra.mxu0 0.0
    %1114 = vmatprep.subr.mxu0 0.0
    %1115 = vmatpush1.msra.mxu0 0.0
    %1116 = vmatprep.subr.mxu0 0.0
    %1117 = vmatpush1.msra.mxu0 0.0
    %1118 = vmatprep.subr.mxu0 0.0
    %1119 = vmatpush1.msra.mxu0 0.0
    %1120 = vmatprep.subr.mxu0 0.0
    %1121 = vmatpush1.msra.mxu0 0.0
    %1122 = vmatprep.subr.mxu0 0.0
    %1123 = vmatpush1.msra.mxu0 0.0
    %1124 = vmatprep.subr.mxu0 0.0
    %1125 = vmatpush1.msra.mxu0 0.0
    %1126 = vmatprep.subr.mxu0 0.0
    %1127 = vmatpush1.msra.mxu0 0.0
    %1128 = vmatprep.subr.mxu0 0.0
    %1129 = vmatpush1.msra.mxu0 0.0
    %1130 = vmatprep.subr.mxu0 0.0
    %1131 = vmatpush1.msra.mxu0 0.0
    %1132 = vmatprep.subr.mxu0 0.0
    %1133 = vmatpush1.msra.mxu0 0.0
    %1134 = vmatprep.subr.mxu0 0.0
    %1135 = vmatpush1.msra.mxu0 0.0
    %1136 = vmatprep.mubr.f32.mxu0 0.0
    %1137 = vmatmul.mubr.f32.gmra.mrb[0].mxu0 %v110
    %v1138 = vpop.f32.mrb[0].mxu0
    %v1139 = vadd.f32 %v697, %v1138
    %v1140 = vpop.f32.mrb[0].mxu0
    %v1141 = vadd.f32 %v701, %v1140
    %1142 = vdwg.mxu0
    %1143 = vmatprep.subr.mxu0 0.0
    %1144 = vmatpush1.msra.mxu0 %v222
    %1145 = vmatprep.subr.mxu0 0.0
    %1146 = vmatpush1.msra.mxu0 %v225
    %1147 = vmatprep.subr.mxu0 0.0
    %1148 = vmatpush1.msra.mxu0 %v228
    %1149 = vmatprep.subr.mxu0 0.0
    %1150 = vmatpush1.msra.mxu0 %v231
    %1151 = vmatprep.subr.mxu0 0.0
    %1152 = vmatpush1.msra.mxu0 %v234
    %1153 = vmatprep.subr.mxu0 0.0
    %1154 = vmatpush1.msra.mxu0 %v237
    %1155 = vmatprep.subr.mxu0 0.0
    %1156 = vmatpush1.msra.mxu0 %v240
    %1157 = vmatprep.subr.mxu0 0.0
    %1158 = vmatpush1.msra.mxu0 %v243
    %1159 = vmatprep.subr.mxu0 0.0
    %1160 = vmatpush1.msra.mxu0 %v246
    %1161 = vmatprep.subr.mxu0 0.0
    %1162 = vmatpush1.msra.mxu0 %v249
    %1163 = vmatprep.subr.mxu0 0.0
    %1164 = vmatpush1.msra.mxu0 %v252
    %1165 = vmatprep.subr.mxu0 0.0
    %1166 = vmatpush1.msra.mxu0 %v255
    %1167 = vmatprep.subr.mxu0 0.0
    %1168 = vmatpush1.msra.mxu0 %v258
    %1169 = vmatprep.subr.mxu0 0.0
    %1170 = vmatpush1.msra.mxu0 %v261
    %1171 = vmatprep.subr.mxu0 0.0
    %1172 = vmatpush1.msra.mxu0 %v264
    %1173 = vmatprep.subr.mxu0 0.0
    %1174 = vmatpush1.msra.mxu0 %v267
    %1175 = vmatprep.subr.mxu0 0.0
    %1176 = vmatpush1.msra.mxu0 0.0
    %1177 = vmatprep.subr.mxu0 0.0
    %1178 = vmatpush1.msra.mxu0 0.0
    %1179 = vmatprep.subr.mxu0 0.0
    %1180 = vmatpush1.msra.mxu0 0.0
    %1181 = vmatprep.subr.mxu0 0.0
    %1182 = vmatpush1.msra.mxu0 0.0
    %1183 = vmatprep.subr.mxu0 0.0
    %1184 = vmatpush1.msra.mxu0 0.0
    %1185 = vmatprep.subr.mxu0 0.0
    %1186 = vmatpush1.msra.mxu0 0.0
    %1187 = vmatprep.subr.mxu0 0.0
    %1188 = vmatpush1.msra.mxu0 0.0
    %1189 = vmatprep.subr.mxu0 0.0
    %1190 = vmatpush1.msra.mxu0 0.0
    %1191 = vmatprep.subr.mxu0 0.0
    %1192 = vmatpush1.msra.mxu0 0.0
    %1193 = vmatprep.subr.mxu0 0.0
    %1194 = vmatpush1.msra.mxu0 0.0
    %1195 = vmatprep.subr.mxu0 0.0
    %1196 = vmatpush1.msra.mxu0 0.0
    %1197 = vmatprep.subr.mxu0 0.0
    %1198 = vmatpush1.msra.mxu0 0.0
    %1199 = vmatprep.subr.mxu0 0.0
    %1200 = vmatpush1.msra.mxu0 0.0
    %1201 = vmatprep.subr.mxu0 0.0
    %1202 = vmatpush1.msra.mxu0 0.0
    %1203 = vmatprep.subr.mxu0 0.0
    %1204 = vmatpush1.msra.mxu0 0.0
    %1205 = vmatprep.subr.mxu0 0.0
    %1206 = vmatpush1.msra.mxu0 0.0
    %1207 = vmatprep.mubr.f32.mxu0 0.0
    %1208 = vmatmul.mubr.f32.gmra.mrb[0].mxu0 %v110
    %v1209 = vpop.f32.mrb[0].mxu0
    %v1210 = vadd.f32 %v705, %v1209
    %v1211 = vpop.f32.mrb[0].mxu0
    %1212 = vdwg.mxu0
    %1213 = vmatprep.subr.mxu0 %v269
    %1214 = vmatpush1.msra.mxu0 %v268
    %1215 = vmatprep.subr.mxu0 %v272
    %1216 = vmatpush1.msra.mxu0 %v271
    %1217 = vmatprep.subr.mxu0 %v275
    %1218 = vmatpush1.msra.mxu0 %v274
    %1219 = vmatprep.subr.mxu0 %v278
    %1220 = vmatpush1.msra.mxu0 %v277
    %1221 = vmatprep.subr.mxu0 %v281
    %1222 = vmatpush1.msra.mxu0 %v280
    %1223 = vmatprep.subr.mxu0 %v284
    %1224 = vmatpush1.msra.mxu0 %v283
    %1225 = vmatprep.subr.mxu0 %v287
    %1226 = vmatpush1.msra.mxu0 %v286
    %1227 = vmatprep.subr.mxu0 %v290
    %1228 = vmatpush1.msra.mxu0 %v289
    %1229 = vmatprep.subr.mxu0 %v293
    %1230 = vmatpush1.msra.mxu0 %v292
    %1231 = vmatprep.subr.mxu0 %v296
    %1232 = vmatpush1.msra.mxu0 %v295
    %1233 = vmatprep.subr.mxu0 %v299
    %1234 = vmatpush1.msra.mxu0 %v298
    %1235 = vmatprep.subr.mxu0 %v302
    %1236 = vmatpush1.msra.mxu0 %v301
    %1237 = vmatprep.subr.mxu0 %v305
    %1238 = vmatpush1.msra.mxu0 %v304
    %1239 = vmatprep.subr.mxu0 %v308
    %1240 = vmatpush1.msra.mxu0 %v307
    %1241 = vmatprep.subr.mxu0 %v311
    %1242 = vmatpush1.msra.mxu0 %v310
    %1243 = vmatprep.subr.mxu0 %v314
    %1244 = vmatpush1.msra.mxu0 %v313
    %1245 = vmatprep.subr.mxu0 0.0
    %1246 = vmatpush1.msra.mxu0 0.0
    %1247 = vmatprep.subr.mxu0 0.0
    %1248 = vmatpush1.msra.mxu0 0.0
    %1249 = vmatprep.subr.mxu0 0.0
    %1250 = vmatpush1.msra.mxu0 0.0
    %1251 = vmatprep.subr.mxu0 0.0
    %1252 = vmatpush1.msra.mxu0 0.0
    %1253 = vmatprep.subr.mxu0 0.0
    %1254 = vmatpush1.msra.mxu0 0.0
    %1255 = vmatprep.subr.mxu0 0.0
    %1256 = vmatpush1.msra.mxu0 0.0
    %1257 = vmatprep.subr.mxu0 0.0
    %1258 = vmatpush1.msra.mxu0 0.0
    %1259 = vmatprep.subr.mxu0 0.0
    %1260 = vmatpush1.msra.mxu0 0.0
    %1261 = vmatprep.subr.mxu0 0.0
    %1262 = vmatpush1.msra.mxu0 0.0
    %1263 = vmatprep.subr.mxu0 0.0
    %1264 = vmatpush1.msra.mxu0 0.0
    %1265 = vmatprep.subr.mxu0 0.0
    %1266 = vmatpush1.msra.mxu0 0.0
    %1267 = vmatprep.subr.mxu0 0.0
    %1268 = vmatpush1.msra.mxu0 0.0
    %1269 = vmatprep.subr.mxu0 0.0
    %1270 = vmatpush1.msra.mxu0 0.0
    %1271 = vmatprep.subr.mxu0 0.0
    %1272 = vmatpush1.msra.mxu0 0.0
    %1273 = vmatprep.subr.mxu0 0.0
    %1274 = vmatpush1.msra.mxu0 0.0
    %1275 = vmatprep.subr.mxu0 0.0
    %1276 = vmatpush1.msra.mxu0 0.0
    %1277 = vmatprep.mubr.f32.mxu0 0.0
    %1278 = vmatmul.mubr.f32.gmra.mrb[0].mxu0 %v111
    %v1279 = vpop.f32.mrb[0].mxu0
    %v1280 = vadd.f32 %v709, %v1279
    %v1281 = vpop.f32.mrb[0].mxu0
    %v1282 = vadd.f32 %v713, %v1281
    %1283 = vdwg.mxu0
    %1284 = vmatprep.subr.mxu0 0.0
    %1285 = vmatpush1.msra.mxu0 %v270
    %1286 = vmatprep.subr.mxu0 0.0
    %1287 = vmatpush1.msra.mxu0 %v273
    %1288 = vmatprep.subr.mxu0 0.0
    %1289 = vmatpush1.msra.mxu0 %v276
    %1290 = vmatprep.subr.mxu0 0.0
    %1291 = vmatpush1.msra.mxu0 %v279
    %1292 = vmatprep.subr.mxu0 0.0
    %1293 = vmatpush1.msra.mxu0 %v282
    %1294 = vmatprep.subr.mxu0 0.0
    %1295 = vmatpush1.msra.mxu0 %v285
    %1296 = vmatprep.subr.mxu0 0.0
    %1297 = vmatpush1.msra.mxu0 %v288
    %1298 = vmatprep.subr.mxu0 0.0
    %1299 = vmatpush1.msra.mxu0 %v291
    %1300 = vmatprep.subr.mxu0 0.0
    %1301 = vmatpush1.msra.mxu0 %v294
    %1302 = vmatprep.subr.mxu0 0.0
    %1303 = vmatpush1.msra.mxu0 %v297
    %1304 = vmatprep.subr.mxu0 0.0
    %1305 = vmatpush1.msra.mxu0 %v300
    %1306 = vmatprep.subr.mxu0 0.0
    %1307 = vmatpush1.msra.mxu0 %v303
    %1308 = vmatprep.subr.mxu0 0.0
    %1309 = vmatpush1.msra.mxu0 %v306
    %1310 = vmatprep.subr.mxu0 0.0
    %1311 = vmatpush1.msra.mxu0 %v309
    %1312 = vmatprep.subr.mxu0 0.0
    %1313 = vmatpush1.msra.mxu0 %v312
    %1314 = vmatprep.subr.mxu0 0.0
    %1315 = vmatpush1.msra.mxu0 %v315
    %1316 = vmatprep.subr.mxu0 0.0
    %1317 = vmatpush1.msra.mxu0 0.0
    %1318 = vmatprep.subr.mxu0 0.0
    %1319 = vmatpush1.msra.mxu0 0.0
    %1320 = vmatprep.subr.mxu0 0.0
    %1321 = vmatpush1.msra.mxu0 0.0
    %1322 = vmatprep.subr.mxu0 0.0
    %1323 = vmatpush1.msra.mxu0 0.0
    %1324 = vmatprep.subr.mxu0 0.0
    %1325 = vmatpush1.msra.mxu0 0.0
    %1326 = vmatprep.subr.mxu0 0.0
    %1327 = vmatpush1.msra.mxu0 0.0
    %1328 = vmatprep.subr.mxu0 0.0
    %1329 = vmatpush1.msra.mxu0 0.0
    %1330 = vmatprep.subr.mxu0 0.0
    %1331 = vmatpush1.msra.mxu0 0.0
    %1332 = vmatprep.subr.mxu0 0.0
    %1333 = vmatpush1.msra.mxu0 0.0
    %1334 = vmatprep.subr.mxu0 0.0
    %1335 = vmatpush1.msra.mxu0 0.0
    %1336 = vmatprep.subr.mxu0 0.0
    %1337 = vmatpush1.msra.mxu0 0.0
    %1338 = vmatprep.subr.mxu0 0.0
    %1339 = vmatpush1.msra.mxu0 0.0
    %1340 = vmatprep.subr.mxu0 0.0
    %1341 = vmatpush1.msra.mxu0 0.0
    %1342 = vmatprep.subr.mxu0 0.0
    %1343 = vmatpush1.msra.mxu0 0.0
    %1344 = vmatprep.subr.mxu0 0.0
    %1345 = vmatpush1.msra.mxu0 0.0
    %1346 = vmatprep.subr.mxu0 0.0
    %1347 = vmatpush1.msra.mxu0 0.0
    %1348 = vmatprep.mubr.f32.mxu0 0.0
    %1349 = vmatmul.mubr.f32.gmra.mrb[0].mxu0 %v111
    %v1350 = vpop.f32.mrb[0].mxu0
    %v1351 = vadd.f32 %v717, %v1350
    %v1352 = vpop.f32.mrb[0].mxu0
    %1353 = vdwg.mxu0
    %1354 = vmatprep.subr.mxu0 %v317
    %1355 = vmatpush1.msra.mxu0 %v316
    %1356 = vmatprep.subr.mxu0 %v320
    %1357 = vmatpush1.msra.mxu0 %v319
    %1358 = vmatprep.subr.mxu0 %v323
    %1359 = vmatpush1.msra.mxu0 %v322
    %1360 = vmatprep.subr.mxu0 %v326
    %1361 = vmatpush1.msra.mxu0 %v325
    %1362 = vmatprep.subr.mxu0 %v329
    %1363 = vmatpush1.msra.mxu0 %v328
    %1364 = vmatprep.subr.mxu0 %v332
    %1365 = vmatpush1.msra.mxu0 %v331
    %1366 = vmatprep.subr.mxu0 %v335
    %1367 = vmatpush1.msra.mxu0 %v334
    %1368 = vmatprep.subr.mxu0 %v338
    %1369 = vmatpush1.msra.mxu0 %v337
    %1370 = vmatprep.subr.mxu0 %v341
    %1371 = vmatpush1.msra.mxu0 %v340
    %1372 = vmatprep.subr.mxu0 %v344
    %1373 = vmatpush1.msra.mxu0 %v343
    %1374 = vmatprep.subr.mxu0 %v347
    %1375 = vmatpush1.msra.mxu0 %v346
    %1376 = vmatprep.subr.mxu0 %v350
    %1377 = vmatpush1.msra.mxu0 %v349
    %1378 = vmatprep.subr.mxu0 %v353
    %1379 = vmatpush1.msra.mxu0 %v352
    %1380 = vmatprep.subr.mxu0 %v356
    %1381 = vmatpush1.msra.mxu0 %v355
    %1382 = vmatprep.subr.mxu0 %v359
    %1383 = vmatpush1.msra.mxu0 %v358
    %1384 = vmatprep.subr.mxu0 %v362
    %1385 = vmatpush1.msra.mxu0 %v361
    %1386 = vmatprep.subr.mxu0 0.0
    %1387 = vmatpush1.msra.mxu0 0.0
    %1388 = vmatprep.subr.mxu0 0.0
    %1389 = vmatpush1.msra.mxu0 0.0
    %1390 = vmatprep.subr.mxu0 0.0
    %1391 = vmatpush1.msra.mxu0 0.0
    %1392 = vmatprep.subr.mxu0 0.0
    %1393 = vmatpush1.msra.mxu0 0.0
    %1394 = vmatprep.subr.mxu0 0.0
    %1395 = vmatpush1.msra.mxu0 0.0
    %1396 = vmatprep.subr.mxu0 0.0
    %1397 = vmatpush1.msra.mxu0 0.0
    %1398 = vmatprep.subr.mxu0 0.0
    %1399 = vmatpush1.msra.mxu0 0.0
    %1400 = vmatprep.subr.mxu0 0.0
    %1401 = vmatpush1.msra.mxu0 0.0
    %1402 = vmatprep.subr.mxu0 0.0
    %1403 = vmatpush1.msra.mxu0 0.0
    %1404 = vmatprep.subr.mxu0 0.0
    %1405 = vmatpush1.msra.mxu0 0.0
    %1406 = vmatprep.subr.mxu0 0.0
    %1407 = vmatpush1.msra.mxu0 0.0
    %1408 = vmatprep.subr.mxu0 0.0
    %1409 = vmatpush1.msra.mxu0 0.0
    %1410 = vmatprep.subr.mxu0 0.0
    %1411 = vmatpush1.msra.mxu0 0.0
    %1412 = vmatprep.subr.mxu0 0.0
    %1413 = vmatpush1.msra.mxu0 0.0
    %1414 = vmatprep.subr.mxu0 0.0
    %1415 = vmatpush1.msra.mxu0 0.0
    %1416 = vmatprep.subr.mxu0 0.0
    %1417 = vmatpush1.msra.mxu0 0.0
    %1418 = vmatprep.mubr.f32.mxu0 0.0
    %1419 = vmatmul.mubr.f32.gmra.mrb[0].mxu0 %v112
    %v1420 = vpop.f32.mrb[0].mxu0
    %v1421 = vadd.f32 %v721, %v1420
    %v1422 = vpop.f32.mrb[0].mxu0
    %v1423 = vadd.f32 %v725, %v1422
    %1424 = vdwg.mxu0
    %1425 = vmatprep.subr.mxu0 0.0
    %1426 = vmatpush1.msra.mxu0 %v318
    %1427 = vmatprep.subr.mxu0 0.0
    %1428 = vmatpush1.msra.mxu0 %v321
    %1429 = vmatprep.subr.mxu0 0.0
    %1430 = vmatpush1.msra.mxu0 %v324
    %1431 = vmatprep.subr.mxu0 0.0
    %1432 = vmatpush1.msra.mxu0 %v327
    %1433 = vmatprep.subr.mxu0 0.0
    %1434 = vmatpush1.msra.mxu0 %v330
    %1435 = vmatprep.subr.mxu0 0.0
    %1436 = vmatpush1.msra.mxu0 %v333
    %1437 = vmatprep.subr.mxu0 0.0
    %1438 = vmatpush1.msra.mxu0 %v336
    %1439 = vmatprep.subr.mxu0 0.0
    %1440 = vmatpush1.msra.mxu0 %v339
    %1441 = vmatprep.subr.mxu0 0.0
    %1442 = vmatpush1.msra.mxu0 %v342
    %1443 = vmatprep.subr.mxu0 0.0
    %1444 = vmatpush1.msra.mxu0 %v345
    %1445 = vmatprep.subr.mxu0 0.0
    %1446 = vmatpush1.msra.mxu0 %v348
    %1447 = vmatprep.subr.mxu0 0.0
    %1448 = vmatpush1.msra.mxu0 %v351
    %1449 = vmatprep.subr.mxu0 0.0
    %1450 = vmatpush1.msra.mxu0 %v354
    %1451 = vmatprep.subr.mxu0 0.0
    %1452 = vmatpush1.msra.mxu0 %v357
    %1453 = vmatprep.subr.mxu0 0.0
    %1454 = vmatpush1.msra.mxu0 %v360
    %1455 = vmatprep.subr.mxu0 0.0
    %1456 = vmatpush1.msra.mxu0 %v363
    %1457 = vmatprep.subr.mxu0 0.0
    %1458 = vmatpush1.msra.mxu0 0.0
    %1459 = vmatprep.subr.mxu0 0.0
    %1460 = vmatpush1.msra.mxu0 0.0
    %1461 = vmatprep.subr.mxu0 0.0
    %1462 = vmatpush1.msra.mxu0 0.0
    %1463 = vmatprep.subr.mxu0 0.0
    %1464 = vmatpush1.msra.mxu0 0.0
    %1465 = vmatprep.subr.mxu0 0.0
    %1466 = vmatpush1.msra.mxu0 0.0
    %1467 = vmatprep.subr.mxu0 0.0
    %1468 = vmatpush1.msra.mxu0 0.0
    %1469 = vmatprep.subr.mxu0 0.0
    %1470 = vmatpush1.msra.mxu0 0.0
    %1471 = vmatprep.subr.mxu0 0.0
    %1472 = vmatpush1.msra.mxu0 0.0
    %1473 = vmatprep.subr.mxu0 0.0
    %1474 = vmatpush1.msra.mxu0 0.0
    %1475 = vmatprep.subr.mxu0 0.0
    %1476 = vmatpush1.msra.mxu0 0.0
    %1477 = vmatprep.subr.mxu0 0.0
    %1478 = vmatpush1.msra.mxu0 0.0
    %1479 = vmatprep.subr.mxu0 0.0
    %1480 = vmatpush1.msra.mxu0 0.0
    %1481 = vmatprep.subr.mxu0 0.0
    %1482 = vmatpush1.msra.mxu0 0.0
    %1483 = vmatprep.subr.mxu0 0.0
    %1484 = vmatpush1.msra.mxu0 0.0
    %1485 = vmatprep.subr.mxu0 0.0
    %1486 = vmatpush1.msra.mxu0 0.0
    %1487 = vmatprep.subr.mxu0 0.0
    %1488 = vmatpush1.msra.mxu0 0.0
    %1489 = vmatprep.mubr.f32.mxu0 0.0
    %1490 = vmatmul.mubr.f32.gmra.mrb[0].mxu0 %v112
    %v1491 = vpop.f32.mrb[0].mxu0
    %v1492 = vadd.f32 %v729, %v1491
    %v1493 = vpop.f32.mrb[0].mxu0
    %1494 = vdwg.mxu0
    %1495 = vmatprep.subr.mxu0 %v365
    %1496 = vmatpush1.msra.mxu0 %v364
    %1497 = vmatprep.subr.mxu0 %v368
    %1498 = vmatpush1.msra.mxu0 %v367
    %1499 = vmatprep.subr.mxu0 %v371
    %1500 = vmatpush1.msra.mxu0 %v370
    %1501 = vmatprep.subr.mxu0 %v374
    %1502 = vmatpush1.msra.mxu0 %v373
    %1503 = vmatprep.subr.mxu0 %v377
    %1504 = vmatpush1.msra.mxu0 %v376
    %1505 = vmatprep.subr.mxu0 %v380
    %1506 = vmatpush1.msra.mxu0 %v379
    %1507 = vmatprep.subr.mxu0 %v383
    %1508 = vmatpush1.msra.mxu0 %v382
    %1509 = vmatprep.subr.mxu0 %v386
    %1510 = vmatpush1.msra.mxu0 %v385
    %1511 = vmatprep.subr.mxu0 %v389
    %1512 = vmatpush1.msra.mxu0 %v388
    %1513 = vmatprep.subr.mxu0 %v392
    %1514 = vmatpush1.msra.mxu0 %v391
    %1515 = vmatprep.subr.mxu0 %v395
    %1516 = vmatpush1.msra.mxu0 %v394
    %1517 = vmatprep.subr.mxu0 %v398
    %1518 = vmatpush1.msra.mxu0 %v397
    %1519 = vmatprep.subr.mxu0 %v401
    %1520 = vmatpush1.msra.mxu0 %v400
    %1521 = vmatprep.subr.mxu0 %v404
    %1522 = vmatpush1.msra.mxu0 %v403
    %1523 = vmatprep.subr.mxu0 %v407
    %1524 = vmatpush1.msra.mxu0 %v406
    %1525 = vmatprep.subr.mxu0 %v410
    %1526 = vmatpush1.msra.mxu0 %v409
    %1527 = vmatprep.subr.mxu0 0.0
    %1528 = vmatpush1.msra.mxu0 0.0
    %1529 = vmatprep.subr.mxu0 0.0
    %1530 = vmatpush1.msra.mxu0 0.0
    %1531 = vmatprep.subr.mxu0 0.0
    %1532 = vmatpush1.msra.mxu0 0.0
    %1533 = vmatprep.subr.mxu0 0.0
    %1534 = vmatpush1.msra.mxu0 0.0
    %1535 = vmatprep.subr.mxu0 0.0
    %1536 = vmatpush1.msra.mxu0 0.0
    %1537 = vmatprep.subr.mxu0 0.0
    %1538 = vmatpush1.msra.mxu0 0.0
    %1539 = vmatprep.subr.mxu0 0.0
    %1540 = vmatpush1.msra.mxu0 0.0
    %1541 = vmatprep.subr.mxu0 0.0
    %1542 = vmatpush1.msra.mxu0 0.0
    %1543 = vmatprep.subr.mxu0 0.0
    %1544 = vmatpush1.msra.mxu0 0.0
    %1545 = vmatprep.subr.mxu0 0.0
    %1546 = vmatpush1.msra.mxu0 0.0
    %1547 = vmatprep.subr.mxu0 0.0
    %1548 = vmatpush1.msra.mxu0 0.0
    %1549 = vmatprep.subr.mxu0 0.0
    %1550 = vmatpush1.msra.mxu0 0.0
    %1551 = vmatprep.subr.mxu0 0.0
    %1552 = vmatpush1.msra.mxu0 0.0
    %1553 = vmatprep.subr.mxu0 0.0
    %1554 = vmatpush1.msra.mxu0 0.0
    %1555 = vmatprep.subr.mxu0 0.0
    %1556 = vmatpush1.msra.mxu0 0.0
    %1557 = vmatprep.subr.mxu0 0.0
    %1558 = vmatpush1.msra.mxu0 0.0
    %1559 = vmatprep.mubr.f32.mxu0 0.0
    %1560 = vmatmul.mubr.f32.gmra.mrb[0].mxu0 %v113
    %v1561 = vpop.f32.mrb[0].mxu0
    %v1562 = vadd.f32 %v733, %v1561
    %v1563 = vpop.f32.mrb[0].mxu0
    %v1564 = vadd.f32 %v737, %v1563
    %1565 = vdwg.mxu0
    %1566 = vmatprep.subr.mxu0 0.0
    %1567 = vmatpush1.msra.mxu0 %v366
    %1568 = vmatprep.subr.mxu0 0.0
    %1569 = vmatpush1.msra.mxu0 %v369
    %1570 = vmatprep.subr.mxu0 0.0
    %1571 = vmatpush1.msra.mxu0 %v372
    %1572 = vmatprep.subr.mxu0 0.0
    %1573 = vmatpush1.msra.mxu0 %v375
    %1574 = vmatprep.subr.mxu0 0.0
    %1575 = vmatpush1.msra.mxu0 %v378
    %1576 = vmatprep.subr.mxu0 0.0
    %1577 = vmatpush1.msra.mxu0 %v381
    %1578 = vmatprep.subr.mxu0 0.0
    %1579 = vmatpush1.msra.mxu0 %v384
    %1580 = vmatprep.subr.mxu0 0.0
    %1581 = vmatpush1.msra.mxu0 %v387
    %1582 = vmatprep.subr.mxu0 0.0
    %1583 = vmatpush1.msra.mxu0 %v390
    %1584 = vmatprep.subr.mxu0 0.0
    %1585 = vmatpush1.msra.mxu0 %v393
    %1586 = vmatprep.subr.mxu0 0.0
    %1587 = vmatpush1.msra.mxu0 %v396
    %1588 = vmatprep.subr.mxu0 0.0
    %1589 = vmatpush1.msra.mxu0 %v399
    %1590 = vmatprep.subr.mxu0 0.0
    %1591 = vmatpush1.msra.mxu0 %v402
    %1592 = vmatprep.subr.mxu0 0.0
    %1593 = vmatpush1.msra.mxu0 %v405
    %1594 = vmatprep.subr.mxu0 0.0
    %1595 = vmatpush1.msra.mxu0 %v408
    %1596 = vmatprep.subr.mxu0 0.0
    %1597 = vmatpush1.msra.mxu0 %v411
    %1598 = vmatprep.subr.mxu0 0.0
    %1599 = vmatpush1.msra.mxu0 0.0
    %1600 = vmatprep.subr.mxu0 0.0
    %1601 = vmatpush1.msra.mxu0 0.0
    %1602 = vmatprep.subr.mxu0 0.0
    %1603 = vmatpush1.msra.mxu0 0.0
    %1604 = vmatprep.subr.mxu0 0.0
    %1605 = vmatpush1.msra.mxu0 0.0
    %1606 = vmatprep.subr.mxu0 0.0
    %1607 = vmatpush1.msra.mxu0 0.0
    %1608 = vmatprep.subr.mxu0 0.0
    %1609 = vmatpush1.msra.mxu0 0.0
    %1610 = vmatprep.subr.mxu0 0.0
    %1611 = vmatpush1.msra.mxu0 0.0
    %1612 = vmatprep.subr.mxu0 0.0
    %1613 = vmatpush1.msra.mxu0 0.0
    %1614 = vmatprep.subr.mxu0 0.0
    %1615 = vmatpush1.msra.mxu0 0.0
    %1616 = vmatprep.subr.mxu0 0.0
    %1617 = vmatpush1.msra.mxu0 0.0
    %1618 = vmatprep.subr.mxu0 0.0
    %1619 = vmatpush1.msra.mxu0 0.0
    %1620 = vmatprep.subr.mxu0 0.0
    %1621 = vmatpush1.msra.mxu0 0.0
    %1622 = vmatprep.subr.mxu0 0.0
    %1623 = vmatpush1.msra.mxu0 0.0
    %1624 = vmatprep.subr.mxu0 0.0
    %1625 = vmatpush1.msra.mxu0 0.0
    %1626 = vmatprep.subr.mxu0 0.0
    %1627 = vmatpush1.msra.mxu0 0.0
    %1628 = vmatprep.subr.mxu0 0.0
    %1629 = vmatpush1.msra.mxu0 0.0
    %1630 = vmatprep.mubr.f32.mxu0 0.0
    %1631 = vmatmul.mubr.f32.gmra.mrb[0].mxu0 %v113
    %v1632 = vpop.f32.mrb[0].mxu0
    %v1633 = vadd.f32 %v741, %v1632
    %v1634 = vpop.f32.mrb[0].mxu0
    %1635 = vdwg.mxu0
    %1636 = vmatprep.subr.mxu0 %v413
    %1637 = vmatpush1.msra.mxu0 %v412
    %1638 = vmatprep.subr.mxu0 %v416
    %1639 = vmatpush1.msra.mxu0 %v415
    %1640 = vmatprep.subr.mxu0 %v419
    %1641 = vmatpush1.msra.mxu0 %v418
    %1642 = vmatprep.subr.mxu0 %v422
    %1643 = vmatpush1.msra.mxu0 %v421
    %1644 = vmatprep.subr.mxu0 %v425
    %1645 = vmatpush1.msra.mxu0 %v424
    %1646 = vmatprep.subr.mxu0 %v428
    %1647 = vmatpush1.msra.mxu0 %v427
    %1648 = vmatprep.subr.mxu0 %v431
    %1649 = vmatpush1.msra.mxu0 %v430
    %1650 = vmatprep.subr.mxu0 %v434
    %1651 = vmatpush1.msra.mxu0 %v433
    %1652 = vmatprep.subr.mxu0 %v437
    %1653 = vmatpush1.msra.mxu0 %v436
    %1654 = vmatprep.subr.mxu0 %v440
    %1655 = vmatpush1.msra.mxu0 %v439
    %1656 = vmatprep.subr.mxu0 %v443
    %1657 = vmatpush1.msra.mxu0 %v442
    %1658 = vmatprep.subr.mxu0 %v446
    %1659 = vmatpush1.msra.mxu0 %v445
    %1660 = vmatprep.subr.mxu0 %v449
    %1661 = vmatpush1.msra.mxu0 %v448
    %1662 = vmatprep.subr.mxu0 %v452
    %1663 = vmatpush1.msra.mxu0 %v451
    %1664 = vmatprep.subr.mxu0 %v455
    %1665 = vmatpush1.msra.mxu0 %v454
    %1666 = vmatprep.subr.mxu0 %v458
    %1667 = vmatpush1.msra.mxu0 %v457
    %1668 = vmatprep.subr.mxu0 0.0
    %1669 = vmatpush1.msra.mxu0 0.0
    %1670 = vmatprep.subr.mxu0 0.0
    %1671 = vmatpush1.msra.mxu0 0.0
    %1672 = vmatprep.subr.mxu0 0.0
    %1673 = vmatpush1.msra.mxu0 0.0
    %1674 = vmatprep.subr.mxu0 0.0
    %1675 = vmatpush1.msra.mxu0 0.0
    %1676 = vmatprep.subr.mxu0 0.0
    %1677 = vmatpush1.msra.mxu0 0.0
    %1678 = vmatprep.subr.mxu0 0.0
    %1679 = vmatpush1.msra.mxu0 0.0
    %1680 = vmatprep.subr.mxu0 0.0
    %1681 = vmatpush1.msra.mxu0 0.0
    %1682 = vmatprep.subr.mxu0 0.0
    %1683 = vmatpush1.msra.mxu0 0.0
    %1684 = vmatprep.subr.mxu0 0.0
    %1685 = vmatpush1.msra.mxu0 0.0
    %1686 = vmatprep.subr.mxu0 0.0
    %1687 = vmatpush1.msra.mxu0 0.0
    %1688 = vmatprep.subr.mxu0 0.0
    %1689 = vmatpush1.msra.mxu0 0.0
    %1690 = vmatprep.subr.mxu0 0.0
    %1691 = vmatpush1.msra.mxu0 0.0
    %1692 = vmatprep.subr.mxu0 0.0
    %1693 = vmatpush1.msra.mxu0 0.0
    %1694 = vmatprep.subr.mxu0 0.0
    %1695 = vmatpush1.msra.mxu0 0.0
    %1696 = vmatprep.subr.mxu0 0.0
    %1697 = vmatpush1.msra.mxu0 0.0
    %1698 = vmatprep.subr.mxu0 0.0
    %1699 = vmatpush1.msra.mxu0 0.0
    %1700 = vmatprep.mubr.f32.mxu0 0.0
    %1701 = vmatmul.mubr.f32.gmra.mrb[0].mxu0 %v114
    %v1702 = vpop.f32.mrb[0].mxu0
    %v1703 = vadd.f32 %v745, %v1702
    %v1704 = vpop.f32.mrb[0].mxu0
    %v1705 = vadd.f32 %v749, %v1704
    %1706 = vdwg.mxu0
    %1707 = vmatprep.subr.mxu0 0.0
    %1708 = vmatpush1.msra.mxu0 %v414
    %1709 = vmatprep.subr.mxu0 0.0
    %1710 = vmatpush1.msra.mxu0 %v417
    %1711 = vmatprep.subr.mxu0 0.0
    %1712 = vmatpush1.msra.mxu0 %v420
    %1713 = vmatprep.subr.mxu0 0.0
    %1714 = vmatpush1.msra.mxu0 %v423
    %1715 = vmatprep.subr.mxu0 0.0
    %1716 = vmatpush1.msra.mxu0 %v426
    %1717 = vmatprep.subr.mxu0 0.0
    %1718 = vmatpush1.msra.mxu0 %v429
    %1719 = vmatprep.subr.mxu0 0.0
    %1720 = vmatpush1.msra.mxu0 %v432
    %1721 = vmatprep.subr.mxu0 0.0
    %1722 = vmatpush1.msra.mxu0 %v435
    %1723 = vmatprep.subr.mxu0 0.0
    %1724 = vmatpush1.msra.mxu0 %v438
    %1725 = vmatprep.subr.mxu0 0.0
    %1726 = vmatpush1.msra.mxu0 %v441
    %1727 = vmatprep.subr.mxu0 0.0
    %1728 = vmatpush1.msra.mxu0 %v444
    %1729 = vmatprep.subr.mxu0 0.0
    %1730 = vmatpush1.msra.mxu0 %v447
    %1731 = vmatprep.subr.mxu0 0.0
    %1732 = vmatpush1.msra.mxu0 %v450
    %1733 = vmatprep.subr.mxu0 0.0
    %1734 = vmatpush1.msra.mxu0 %v453
    %1735 = vmatprep.subr.mxu0 0.0
    %1736 = vmatpush1.msra.mxu0 %v456
    %1737 = vmatprep.subr.mxu0 0.0
    %1738 = vmatpush1.msra.mxu0 %v459
    %1739 = vmatprep.subr.mxu0 0.0
    %1740 = vmatpush1.msra.mxu0 0.0
    %1741 = vmatprep.subr.mxu0 0.0
    %1742 = vmatpush1.msra.mxu0 0.0
    %1743 = vmatprep.subr.mxu0 0.0
    %1744 = vmatpush1.msra.mxu0 0.0
    %1745 = vmatprep.subr.mxu0 0.0
    %1746 = vmatpush1.msra.mxu0 0.0
    %1747 = vmatprep.subr.mxu0 0.0
    %1748 = vmatpush1.msra.mxu0 0.0
    %1749 = vmatprep.subr.mxu0 0.0
    %1750 = vmatpush1.msra.mxu0 0.0
    %1751 = vmatprep.subr.mxu0 0.0
    %1752 = vmatpush1.msra.mxu0 0.0
    %1753 = vmatprep.subr.mxu0 0.0
    %1754 = vmatpush1.msra.mxu0 0.0
    %1755 = vmatprep.subr.mxu0 0.0
    %1756 = vmatpush1.msra.mxu0 0.0
    %1757 = vmatprep.subr.mxu0 0.0
    %1758 = vmatpush1.msra.mxu0 0.0
    %1759 = vmatprep.subr.mxu0 0.0
    %1760 = vmatpush1.msra.mxu0 0.0
    %1761 = vmatprep.subr.mxu0 0.0
    %1762 = vmatpush1.msra.mxu0 0.0
    %1763 = vmatprep.subr.mxu0 0.0
    %1764 = vmatpush1.msra.mxu0 0.0
    %1765 = vmatprep.subr.mxu0 0.0
    %1766 = vmatpush1.msra.mxu0 0.0
    %1767 = vmatprep.subr.mxu0 0.0
    %1768 = vmatpush1.msra.mxu0 0.0
    %1769 = vmatprep.subr.mxu0 0.0
    %1770 = vmatpush1.msra.mxu0 0.0
    %1771 = vmatprep.mubr.f32.mxu0 0.0
    %1772 = vmatmul.mubr.f32.gmra.mrb[0].mxu0 %v114
    %v1773 = vpop.f32.mrb[0].mxu0
    %v1774 = vadd.f32 %v753, %v1773
    %v1775 = vpop.f32.mrb[0].mxu0
    %1776 = vdwg.mxu0
    %1777 = vmatprep.subr.mxu0 %v461
    %1778 = vmatpush1.msra.mxu0 %v460
    %1779 = vmatprep.subr.mxu0 %v464
    %1780 = vmatpush1.msra.mxu0 %v463
    %1781 = vmatprep.subr.mxu0 %v467
    %1782 = vmatpush1.msra.mxu0 %v466
    %1783 = vmatprep.subr.mxu0 %v470
    %1784 = vmatpush1.msra.mxu0 %v469
    %1785 = vmatprep.subr.mxu0 %v473
    %1786 = vmatpush1.msra.mxu0 %v472
    %1787 = vmatprep.subr.mxu0 %v476
    %1788 = vmatpush1.msra.mxu0 %v475
    %1789 = vmatprep.subr.mxu0 %v479
    %1790 = vmatpush1.msra.mxu0 %v478
    %1791 = vmatprep.subr.mxu0 %v482
    %1792 = vmatpush1.msra.mxu0 %v481
    %1793 = vmatprep.subr.mxu0 %v485
    %1794 = vmatpush1.msra.mxu0 %v484
    %1795 = vmatprep.subr.mxu0 %v488
    %1796 = vmatpush1.msra.mxu0 %v487
    %1797 = vmatprep.subr.mxu0 %v491
    %1798 = vmatpush1.msra.mxu0 %v490
    %1799 = vmatprep.subr.mxu0 %v494
    %1800 = vmatpush1.msra.mxu0 %v493
    %1801 = vmatprep.subr.mxu0 %v497
    %1802 = vmatpush1.msra.mxu0 %v496
    %1803 = vmatprep.subr.mxu0 %v500
    %1804 = vmatpush1.msra.mxu0 %v499
    %1805 = vmatprep.subr.mxu0 %v503
    %1806 = vmatpush1.msra.mxu0 %v502
    %1807 = vmatprep.subr.mxu0 %v506
    %1808 = vmatpush1.msra.mxu0 %v505
    %1809 = vmatprep.subr.mxu0 0.0
    %1810 = vmatpush1.msra.mxu0 0.0
    %1811 = vmatprep.subr.mxu0 0.0
    %1812 = vmatpush1.msra.mxu0 0.0
    %1813 = vmatprep.subr.mxu0 0.0
    %1814 = vmatpush1.msra.mxu0 0.0
    %1815 = vmatprep.subr.mxu0 0.0
    %1816 = vmatpush1.msra.mxu0 0.0
    %1817 = vmatprep.subr.mxu0 0.0
    %1818 = vmatpush1.msra.mxu0 0.0
    %1819 = vmatprep.subr.mxu0 0.0
    %1820 = vmatpush1.msra.mxu0 0.0
    %1821 = vmatprep.subr.mxu0 0.0
    %1822 = vmatpush1.msra.mxu0 0.0
    %1823 = vmatprep.subr.mxu0 0.0
    %1824 = vmatpush1.msra.mxu0 0.0
    %1825 = vmatprep.subr.mxu0 0.0
    %1826 = vmatpush1.msra.mxu0 0.0
    %1827 = vmatprep.subr.mxu0 0.0
    %1828 = vmatpush1.msra.mxu0 0.0
    %1829 = vmatprep.subr.mxu0 0.0
    %1830 = vmatpush1.msra.mxu0 0.0
    %1831 = vmatprep.subr.mxu0 0.0
    %1832 = vmatpush1.msra.mxu0 0.0
    %1833 = vmatprep.subr.mxu0 0.0
    %1834 = vmatpush1.msra.mxu0 0.0
    %1835 = vmatprep.subr.mxu0 0.0
    %1836 = vmatpush1.msra.mxu0 0.0
    %1837 = vmatprep.subr.mxu0 0.0
    %1838 = vmatpush1.msra.mxu0 0.0
    %1839 = vmatprep.subr.mxu0 0.0
    %1840 = vmatpush1.msra.mxu0 0.0
    %1841 = vmatprep.mubr.f32.mxu0 0.0
    %1842 = vmatmul.mubr.f32.gmra.mrb[0].mxu0 %v115
    %v1843 = vpop.f32.mrb[0].mxu0
    %v1844 = vadd.f32 %v757, %v1843
    %v1845 = vpop.f32.mrb[0].mxu0
    %v1846 = vadd.f32 %v761, %v1845
    %1847 = vdwg.mxu0
    %1848 = vmatprep.subr.mxu0 0.0
    %1849 = vmatpush1.msra.mxu0 %v462
    %1850 = vmatprep.subr.mxu0 0.0
    %1851 = vmatpush1.msra.mxu0 %v465
    %1852 = vmatprep.subr.mxu0 0.0
    %1853 = vmatpush1.msra.mxu0 %v468
    %1854 = vmatprep.subr.mxu0 0.0
    %1855 = vmatpush1.msra.mxu0 %v471
    %1856 = vmatprep.subr.mxu0 0.0
    %1857 = vmatpush1.msra.mxu0 %v474
    %1858 = vmatprep.subr.mxu0 0.0
    %1859 = vmatpush1.msra.mxu0 %v477
    %1860 = vmatprep.subr.mxu0 0.0
    %1861 = vmatpush1.msra.mxu0 %v480
    %1862 = vmatprep.subr.mxu0 0.0
    %1863 = vmatpush1.msra.mxu0 %v483
    %1864 = vmatprep.subr.mxu0 0.0
    %1865 = vmatpush1.msra.mxu0 %v486
    %1866 = vmatprep.subr.mxu0 0.0
    %1867 = vmatpush1.msra.mxu0 %v489
    %1868 = vmatprep.subr.mxu0 0.0
    %1869 = vmatpush1.msra.mxu0 %v492
    %1870 = vmatprep.subr.mxu0 0.0
    %1871 = vmatpush1.msra.mxu0 %v495
    %1872 = vmatprep.subr.mxu0 0.0
    %1873 = vmatpush1.msra.mxu0 %v498
    %1874 = vmatprep.subr.mxu0 0.0
    %1875 = vmatpush1.msra.mxu0 %v501
    %1876 = vmatprep.subr.mxu0 0.0
    %1877 = vmatpush1.msra.mxu0 %v504
    %1878 = vmatprep.subr.mxu0 0.0
    %1879 = vmatpush1.msra.mxu0 %v507
    %1880 = vmatprep.subr.mxu0 0.0
    %1881 = vmatpush1.msra.mxu0 0.0
    %1882 = vmatprep.subr.mxu0 0.0
    %1883 = vmatpush1.msra.mxu0 0.0
    %1884 = vmatprep.subr.mxu0 0.0
    %1885 = vmatpush1.msra.mxu0 0.0
    %1886 = vmatprep.subr.mxu0 0.0
    %1887 = vmatpush1.msra.mxu0 0.0
    %1888 = vmatprep.subr.mxu0 0.0
    %1889 = vmatpush1.msra.mxu0 0.0
    %1890 = vmatprep.subr.mxu0 0.0
    %1891 = vmatpush1.msra.mxu0 0.0
    %1892 = vmatprep.subr.mxu0 0.0
    %1893 = vmatpush1.msra.mxu0 0.0
    %1894 = vmatprep.subr.mxu0 0.0
    %1895 = vmatpush1.msra.mxu0 0.0
    %1896 = vmatprep.subr.mxu0 0.0
    %1897 = vmatpush1.msra.mxu0 0.0
    %1898 = vmatprep.subr.mxu0 0.0
    %1899 = vmatpush1.msra.mxu0 0.0
    %1900 = vmatprep.subr.mxu0 0.0
    %1901 = vmatpush1.msra.mxu0 0.0
    %1902 = vmatprep.subr.mxu0 0.0
    %1903 = vmatpush1.msra.mxu0 0.0
    %1904 = vmatprep.subr.mxu0 0.0
    %1905 = vmatpush1.msra.mxu0 0.0
    %1906 = vmatprep.subr.mxu0 0.0
    %1907 = vmatpush1.msra.mxu0 0.0
    %1908 = vmatprep.subr.mxu0 0.0
    %1909 = vmatpush1.msra.mxu0 0.0
    %1910 = vmatprep.subr.mxu0 0.0
    %1911 = vmatpush1.msra.mxu0 0.0
    %1912 = vmatprep.mubr.f32.mxu0 0.0
    %1913 = vmatmul.mubr.f32.gmra.mrb[0].mxu0 %v115
    %v1914 = vpop.f32.mrb[0].mxu0
    %v1915 = vadd.f32 %v765, %v1914
    %v1916 = vpop.f32.mrb[0].mxu0
    %1917 = vdwg.mxu0
    %v1918 = vlaneseq
    %v1919 = vshrl.u32 %v1918, 7
    %v1920 = vsub.s32 0, %v1919
    %v1921 = vrot.slane %v644, %v1920
    %v1922 = vlaneseq
    %v1923 = vshrl.u32 %v1922, 7
    %v1924 = vsub.s32 1, %v1923
    %v1925 = vrot.slane %v644, %v1924
    %v1926 = vlaneseq
    %v1927 = vshrl.u32 %v1926, 7
    %v1928 = vsub.s32 2, %v1927
    %v1929 = vrot.slane %v644, %v1928
    %v1930 = vlaneseq
    %v1931 = vshrl.u32 %v1930, 7
    %v1932 = vsub.s32 0, %v1931
    %v1933 = vrot.slane %v658, %v1932
    %v1934 = vlaneseq
    %v1935 = vshrl.u32 %v1934, 7
    %v1936 = vsub.s32 1, %v1935
    %v1937 = vrot.slane %v658, %v1936
    %v1938 = vlaneseq
    %v1939 = vshrl.u32 %v1938, 7
    %v1940 = vsub.s32 2, %v1939
    %v1941 = vrot.slane %v658, %v1940
    %v1942 = vlaneseq
    %v1943 = vshrl.u32 %v1942, 7
    %v1944 = vsub.s32 0, %v1943
    %v1945 = vrot.slane %v666, %v1944
    %v1946 = vlaneseq
    %v1947 = vshrl.u32 %v1946, 7
    %v1948 = vsub.s32 1, %v1947
    %v1949 = vrot.slane %v666, %v1948
    %v1950 = vlaneseq
    %v1951 = vshrl.u32 %v1950, 7
    %v1952 = vsub.s32 2, %v1951
    %v1953 = vrot.slane %v666, %v1952
    %v1954 = vlaneseq
    %v1955 = vshrl.u32 %v1954, 7
    %v1956 = vsub.s32 0, %v1955
    %v1957 = vrot.slane %v668, %v1956
    %v1958 = vlaneseq
    %v1959 = vshrl.u32 %v1958, 7
    %v1960 = vsub.s32 1, %v1959
    %v1961 = vrot.slane %v668, %v1960
    %v1962 = vlaneseq
    %v1963 = vshrl.u32 %v1962, 7
    %v1964 = vsub.s32 2, %v1963
    %v1965 = vrot.slane %v668, %v1964
    %v1966 = vlaneseq
    %v1967 = vshrl.u32 %v1966, 7
    %v1968 = vsub.s32 0, %v1967
    %v1969 = vrot.slane %v651, %v1968
    %v1970 = vlaneseq
    %v1971 = vshrl.u32 %v1970, 7
    %v1972 = vsub.s32 1, %v1971
    %v1973 = vrot.slane %v651, %v1972
    %v1974 = vlaneseq
    %v1975 = vshrl.u32 %v1974, 7
    %v1976 = vsub.s32 2, %v1975
    %v1977 = vrot.slane %v651, %v1976
    %v1978 = vlaneseq
    %v1979 = vshrl.u32 %v1978, 7
    %v1980 = vsub.s32 0, %v1979
    %v1981 = vrot.slane %v665, %v1980
    %v1982 = vlaneseq
    %v1983 = vshrl.u32 %v1982, 7
    %v1984 = vsub.s32 1, %v1983
    %v1985 = vrot.slane %v665, %v1984
    %v1986 = vlaneseq
    %v1987 = vshrl.u32 %v1986, 7
    %v1988 = vsub.s32 2, %v1987
    %v1989 = vrot.slane %v665, %v1988
    %v1990 = vlaneseq
    %v1991 = vshrl.u32 %v1990, 7
    %v1992 = vsub.s32 0, %v1991
    %v1993 = vrot.slane %v667, %v1992
    %v1994 = vlaneseq
    %v1995 = vshrl.u32 %v1994, 7
    %v1996 = vsub.s32 1, %v1995
    %v1997 = vrot.slane %v667, %v1996
    %v1998 = vlaneseq
    %v1999 = vshrl.u32 %v1998, 7
    %v2000 = vsub.s32 2, %v1999
    %v2001 = vrot.slane %v667, %v2000
    %v2002 = vlaneseq
    %v2003 = vshrl.u32 %v2002, 7
    %v2004 = vsub.s32 0, %v2003
    %v2005 = vrot.slane %v669, %v2004
    %v2006 = vlaneseq
    %v2007 = vshrl.u32 %v2006, 7
    %v2008 = vsub.s32 1, %v2007
    %v2009 = vrot.slane %v669, %v2008
    %v2010 = vlaneseq
    %v2011 = vshrl.u32 %v2010, 7
    %v2012 = vsub.s32 2, %v2011
    %v2013 = vrot.slane %v669, %v2012
    %v2040 = vcombine.high %v508, %v508
    %vm2041 = vcmask 31744
    %v2043 = vsel %vm2041, %v116, 0
    %vm2045 = vcmask 1043456
    %v2046 = vsel %vm2045, %v508, 0
    %v2048 = vsel %vm2045, %v2040, 0
    %v2050 = vsel %vm2045, %v509, 0
    %2052 = vmatprep.subr.mxu0 %v2048
    %2053 = vmatpush1.msra.mxu0 %v2046
    %2054 = vmatprep.subr.mxu0 0.0
    %2055 = vmatpush1.msra.mxu0 0.0
    %2056 = vmatprep.subr.mxu0 0.0
    %2057 = vmatpush1.msra.mxu0 0.0
    %2058 = vmatprep.subr.mxu0 0.0
    %2059 = vmatpush1.msra.mxu0 0.0
    %2060 = vmatprep.subr.mxu0 0.0
    %2061 = vmatpush1.msra.mxu0 0.0
    %2062 = vmatprep.subr.mxu0 0.0
    %2063 = vmatpush1.msra.mxu0 0.0
    %2064 = vmatprep.subr.mxu0 0.0
    %2065 = vmatpush1.msra.mxu0 0.0
    %2066 = vmatprep.subr.mxu0 0.0
    %2067 = vmatpush1.msra.mxu0 0.0
    %2068 = vmatprep.subr.mxu0 0.0
    %2069 = vmatpush1.msra.mxu0 0.0
    %2070 = vmatprep.subr.mxu0 0.0
    %2071 = vmatpush1.msra.mxu0 0.0
    %2072 = vmatprep.subr.mxu0 0.0
    %2073 = vmatpush1.msra.mxu0 0.0
    %2074 = vmatprep.subr.mxu0 0.0
    %2075 = vmatpush1.msra.mxu0 0.0
    %2076 = vmatprep.subr.mxu0 0.0
    %2077 = vmatpush1.msra.mxu0 0.0
    %2078 = vmatprep.subr.mxu0 0.0
    %2079 = vmatpush1.msra.mxu0 0.0
    %2080 = vmatprep.subr.mxu0 0.0
    %2081 = vmatpush1.msra.mxu0 0.0
    %2082 = vmatprep.subr.mxu0 0.0
    %2083 = vmatpush1.msra.mxu0 0.0
    %2084 = vmatprep.subr.mxu0 0.0
    %2085 = vmatpush1.msra.mxu0 0.0
    %2086 = vmatprep.subr.mxu0 0.0
    %2087 = vmatpush1.msra.mxu0 0.0
    %2088 = vmatprep.subr.mxu0 0.0
    %2089 = vmatpush1.msra.mxu0 0.0
    %2090 = vmatprep.subr.mxu0 0.0
    %2091 = vmatpush1.msra.mxu0 0.0
    %2092 = vmatprep.subr.mxu0 0.0
    %2093 = vmatpush1.msra.mxu0 0.0
    %2094 = vmatprep.subr.mxu0 0.0
    %2095 = vmatpush1.msra.mxu0 0.0
    %2096 = vmatprep.subr.mxu0 0.0
    %2097 = vmatpush1.msra.mxu0 0.0
    %2098 = vmatprep.subr.mxu0 0.0
    %2099 = vmatpush1.msra.mxu0 0.0
    %2100 = vmatprep.subr.mxu0 0.0
    %2101 = vmatpush1.msra.mxu0 0.0
    %2102 = vmatprep.subr.mxu0 0.0
    %2103 = vmatpush1.msra.mxu0 0.0
    %2104 = vmatprep.subr.mxu0 0.0
    %2105 = vmatpush1.msra.mxu0 0.0
    %2106 = vmatprep.subr.mxu0 0.0
    %2107 = vmatpush1.msra.mxu0 0.0
    %2108 = vmatprep.subr.mxu0 0.0
    %2109 = vmatpush1.msra.mxu0 0.0
    %2110 = vmatprep.subr.mxu0 0.0
    %2111 = vmatpush1.msra.mxu0 0.0
    %2112 = vmatprep.subr.mxu0 0.0
    %2113 = vmatpush1.msra.mxu0 0.0
    %2114 = vmatprep.subr.mxu0 0.0
    %2115 = vmatpush1.msra.mxu0 0.0
    %2116 = vmatprep.mubr.f32.mxu0 0.0
    %2117 = vmatmul.mubr.f32.gmra.mrb[0].mxu0 %v2043
    %v2118 = vpop.f32.mrb[0].mxu0
    %v2119 = vadd.f32 %v1921, %v2118
    %v2120 = vpop.f32.mrb[0].mxu0
    %v2121 = vadd.f32 %v1925, %v2120
    %2122 = vdwg.mxu0
    %2123 = vmatprep.subr.mxu0 0.0
    %2124 = vmatpush1.msra.mxu0 %v2050
    %2125 = vmatprep.subr.mxu0 0.0
    %2126 = vmatpush1.msra.mxu0 0.0
    %2127 = vmatprep.subr.mxu0 0.0
    %2128 = vmatpush1.msra.mxu0 0.0
    %2129 = vmatprep.subr.mxu0 0.0
    %2130 = vmatpush1.msra.mxu0 0.0
    %2131 = vmatprep.subr.mxu0 0.0
    %2132 = vmatpush1.msra.mxu0 0.0
    %2133 = vmatprep.subr.mxu0 0.0
    %2134 = vmatpush1.msra.mxu0 0.0
    %2135 = vmatprep.subr.mxu0 0.0
    %2136 = vmatpush1.msra.mxu0 0.0
    %2137 = vmatprep.subr.mxu0 0.0
    %2138 = vmatpush1.msra.mxu0 0.0
    %2139 = vmatprep.subr.mxu0 0.0
    %2140 = vmatpush1.msra.mxu0 0.0
    %2141 = vmatprep.subr.mxu0 0.0
    %2142 = vmatpush1.msra.mxu0 0.0
    %2143 = vmatprep.subr.mxu0 0.0
    %2144 = vmatpush1.msra.mxu0 0.0
    %2145 = vmatprep.subr.mxu0 0.0
    %2146 = vmatpush1.msra.mxu0 0.0
    %2147 = vmatprep.subr.mxu0 0.0
    %2148 = vmatpush1.msra.mxu0 0.0
    %2149 = vmatprep.subr.mxu0 0.0
    %2150 = vmatpush1.msra.mxu0 0.0
    %2151 = vmatprep.subr.mxu0 0.0
    %2152 = vmatpush1.msra.mxu0 0.0
    %2153 = vmatprep.subr.mxu0 0.0
    %2154 = vmatpush1.msra.mxu0 0.0
    %2155 = vmatprep.subr.mxu0 0.0
    %2156 = vmatpush1.msra.mxu0 0.0
    %2157 = vmatprep.subr.mxu0 0.0
    %2158 = vmatpush1.msra.mxu0 0.0
    %2159 = vmatprep.subr.mxu0 0.0
    %2160 = vmatpush1.msra.mxu0 0.0
    %2161 = vmatprep.subr.mxu0 0.0
    %2162 = vmatpush1.msra.mxu0 0.0
    %2163 = vmatprep.subr.mxu0 0.0
    %2164 = vmatpush1.msra.mxu0 0.0
    %2165 = vmatprep.subr.mxu0 0.0
    %2166 = vmatpush1.msra.mxu0 0.0
    %2167 = vmatprep.subr.mxu0 0.0
    %2168 = vmatpush1.msra.mxu0 0.0
    %2169 = vmatprep.subr.mxu0 0.0
    %2170 = vmatpush1.msra.mxu0 0.0
    %2171 = vmatprep.subr.mxu0 0.0
    %2172 = vmatpush1.msra.mxu0 0.0
    %2173 = vmatprep.subr.mxu0 0.0
    %2174 = vmatpush1.msra.mxu0 0.0
    %2175 = vmatprep.subr.mxu0 0.0
    %2176 = vmatpush1.msra.mxu0 0.0
    %2177 = vmatprep.subr.mxu0 0.0
    %2178 = vmatpush1.msra.mxu0 0.0
    %2179 = vmatprep.subr.mxu0 0.0
    %2180 = vmatpush1.msra.mxu0 0.0
    %2181 = vmatprep.subr.mxu0 0.0
    %2182 = vmatpush1.msra.mxu0 0.0
    %2183 = vmatprep.subr.mxu0 0.0
    %2184 = vmatpush1.msra.mxu0 0.0
    %2185 = vmatprep.subr.mxu0 0.0
    %2186 = vmatpush1.msra.mxu0 0.0
    %2187 = vmatprep.mubr.f32.mxu0 0.0
    %2188 = vmatmul.mubr.f32.gmra.mrb[0].mxu0 %v2043
    %v2189 = vpop.f32.mrb[0].mxu0
    %v2190 = vadd.f32 %v1929, %v2189
    %v2191 = vpop.f32.mrb[0].mxu0
    %2192 = vdwg.mxu0
    %v2195 = vcombine.high %v510, %v510
    %v2197 = vsel %vm2041, %v117, 0
    %v2199 = vsel %vm2045, %v510, 0
    %v2201 = vsel %vm2045, %v2195, 0
    %v2203 = vsel %vm2045, %v511, 0
    %2205 = vmatprep.subr.mxu0 %v2201
    %2206 = vmatpush1.msra.mxu0 %v2199
    %2207 = vmatprep.subr.mxu0 0.0
    %2208 = vmatpush1.msra.mxu0 0.0
    %2209 = vmatprep.subr.mxu0 0.0
    %2210 = vmatpush1.msra.mxu0 0.0
    %2211 = vmatprep.subr.mxu0 0.0
    %2212 = vmatpush1.msra.mxu0 0.0
    %2213 = vmatprep.subr.mxu0 0.0
    %2214 = vmatpush1.msra.mxu0 0.0
    %2215 = vmatprep.subr.mxu0 0.0
    %2216 = vmatpush1.msra.mxu0 0.0
    %2217 = vmatprep.subr.mxu0 0.0
    %2218 = vmatpush1.msra.mxu0 0.0
    %2219 = vmatprep.subr.mxu0 0.0
    %2220 = vmatpush1.msra.mxu0 0.0
    %2221 = vmatprep.subr.mxu0 0.0
    %2222 = vmatpush1.msra.mxu0 0.0
    %2223 = vmatprep.subr.mxu0 0.0
    %2224 = vmatpush1.msra.mxu0 0.0
    %2225 = vmatprep.subr.mxu0 0.0
    %2226 = vmatpush1.msra.mxu0 0.0
    %2227 = vmatprep.subr.mxu0 0.0
    %2228 = vmatpush1.msra.mxu0 0.0
    %2229 = vmatprep.subr.mxu0 0.0
    %2230 = vmatpush1.msra.mxu0 0.0
    %2231 = vmatprep.subr.mxu0 0.0
    %2232 = vmatpush1.msra.mxu0 0.0
    %2233 = vmatprep.subr.mxu0 0.0
    %2234 = vmatpush1.msra.mxu0 0.0
    %2235 = vmatprep.subr.mxu0 0.0
    %2236 = vmatpush1.msra.mxu0 0.0
    %2237 = vmatprep.subr.mxu0 0.0
    %2238 = vmatpush1.msra.mxu0 0.0
    %2239 = vmatprep.subr.mxu0 0.0
    %2240 = vmatpush1.msra.mxu0 0.0
    %2241 = vmatprep.subr.mxu0 0.0
    %2242 = vmatpush1.msra.mxu0 0.0
    %2243 = vmatprep.subr.mxu0 0.0
    %2244 = vmatpush1.msra.mxu0 0.0
    %2245 = vmatprep.subr.mxu0 0.0
    %2246 = vmatpush1.msra.mxu0 0.0
    %2247 = vmatprep.subr.mxu0 0.0
    %2248 = vmatpush1.msra.mxu0 0.0
    %2249 = vmatprep.subr.mxu0 0.0
    %2250 = vmatpush1.msra.mxu0 0.0
    %2251 = vmatprep.subr.mxu0 0.0
    %2252 = vmatpush1.msra.mxu0 0.0
    %2253 = vmatprep.subr.mxu0 0.0
    %2254 = vmatpush1.msra.mxu0 0.0
    %2255 = vmatprep.subr.mxu0 0.0
    %2256 = vmatpush1.msra.mxu0 0.0
    %2257 = vmatprep.subr.mxu0 0.0
    %2258 = vmatpush1.msra.mxu0 0.0
    %2259 = vmatprep.subr.mxu0 0.0
    %2260 = vmatpush1.msra.mxu0 0.0
    %2261 = vmatprep.subr.mxu0 0.0
    %2262 = vmatpush1.msra.mxu0 0.0
    %2263 = vmatprep.subr.mxu0 0.0
    %2264 = vmatpush1.msra.mxu0 0.0
    %2265 = vmatprep.subr.mxu0 0.0
    %2266 = vmatpush1.msra.mxu0 0.0
    %2267 = vmatprep.subr.mxu0 0.0
    %2268 = vmatpush1.msra.mxu0 0.0
    %2269 = vmatprep.mubr.f32.mxu0 0.0
    %2270 = vmatmul.mubr.f32.gmra.mrb[0].mxu0 %v2197
    %v2271 = vpop.f32.mrb[0].mxu0
    %v2272 = vadd.f32 %v1933, %v2271
    %v2273 = vpop.f32.mrb[0].mxu0
    %v2274 = vadd.f32 %v1937, %v2273
    %2275 = vdwg.mxu0
    %2276 = vmatprep.subr.mxu0 0.0
    %2277 = vmatpush1.msra.mxu0 %v2203
    %2278 = vmatprep.subr.mxu0 0.0
    %2279 = vmatpush1.msra.mxu0 0.0
    %2280 = vmatprep.subr.mxu0 0.0
    %2281 = vmatpush1.msra.mxu0 0.0
    %2282 = vmatprep.subr.mxu0 0.0
    %2283 = vmatpush1.msra.mxu0 0.0
    %2284 = vmatprep.subr.mxu0 0.0
    %2285 = vmatpush1.msra.mxu0 0.0
    %2286 = vmatprep.subr.mxu0 0.0
    %2287 = vmatpush1.msra.mxu0 0.0
    %2288 = vmatprep.subr.mxu0 0.0
    %2289 = vmatpush1.msra.mxu0 0.0
    %2290 = vmatprep.subr.mxu0 0.0
    %2291 = vmatpush1.msra.mxu0 0.0
    %2292 = vmatprep.subr.mxu0 0.0
    %2293 = vmatpush1.msra.mxu0 0.0
    %2294 = vmatprep.subr.mxu0 0.0
    %2295 = vmatpush1.msra.mxu0 0.0
    %2296 = vmatprep.subr.mxu0 0.0
    %2297 = vmatpush1.msra.mxu0 0.0
    %2298 = vmatprep.subr.mxu0 0.0
    %2299 = vmatpush1.msra.mxu0 0.0
    %2300 = vmatprep.subr.mxu0 0.0
    %2301 = vmatpush1.msra.mxu0 0.0
    %2302 = vmatprep.subr.mxu0 0.0
    %2303 = vmatpush1.msra.mxu0 0.0
    %2304 = vmatprep.subr.mxu0 0.0
    %2305 = vmatpush1.msra.mxu0 0.0
    %2306 = vmatprep.subr.mxu0 0.0
    %2307 = vmatpush1.msra.mxu0 0.0
    %2308 = vmatprep.subr.mxu0 0.0
    %2309 = vmatpush1.msra.mxu0 0.0
    %2310 = vmatprep.subr.mxu0 0.0
    %2311 = vmatpush1.msra.mxu0 0.0
    %2312 = vmatprep.subr.mxu0 0.0
    %2313 = vmatpush1.msra.mxu0 0.0
    %2314 = vmatprep.subr.mxu0 0.0
    %2315 = vmatpush1.msra.mxu0 0.0
    %2316 = vmatprep.subr.mxu0 0.0
    %2317 = vmatpush1.msra.mxu0 0.0
    %2318 = vmatprep.subr.mxu0 0.0
    %2319 = vmatpush1.msra.mxu0 0.0
    %2320 = vmatprep.subr.mxu0 0.0
    %2321 = vmatpush1.msra.mxu0 0.0
    %2322 = vmatprep.subr.mxu0 0.0
    %2323 = vmatpush1.msra.mxu0 0.0
    %2324 = vmatprep.subr.mxu0 0.0
    %2325 = vmatpush1.msra.mxu0 0.0
    %2326 = vmatprep.subr.mxu0 0.0
    %2327 = vmatpush1.msra.mxu0 0.0
    %2328 = vmatprep.subr.mxu0 0.0
    %2329 = vmatpush1.msra.mxu0 0.0
    %2330 = vmatprep.subr.mxu0 0.0
    %2331 = vmatpush1.msra.mxu0 0.0
    %2332 = vmatprep.subr.mxu0 0.0
    %2333 = vmatpush1.msra.mxu0 0.0
    %2334 = vmatprep.subr.mxu0 0.0
    %2335 = vmatpush1.msra.mxu0 0.0
    %2336 = vmatprep.subr.mxu0 0.0
    %2337 = vmatpush1.msra.mxu0 0.0
    %2338 = vmatprep.subr.mxu0 0.0
    %2339 = vmatpush1.msra.mxu0 0.0
    %2340 = vmatprep.mubr.f32.mxu0 0.0
    %2341 = vmatmul.mubr.f32.gmra.mrb[0].mxu0 %v2197
    %v2342 = vpop.f32.mrb[0].mxu0
    %v2343 = vadd.f32 %v1941, %v2342
    %v2344 = vpop.f32.mrb[0].mxu0
    %2345 = vdwg.mxu0
    %v2348 = vcombine.high %v512, %v512
    %v2350 = vsel %vm2041, %v118, 0
    %v2352 = vsel %vm2045, %v512, 0
    %v2354 = vsel %vm2045, %v2348, 0
    %v2356 = vsel %vm2045, %v513, 0
    %2358 = vmatprep.subr.mxu0 %v2354
    %2359 = vmatpush1.msra.mxu0 %v2352
    %2360 = vmatprep.subr.mxu0 0.0
    %2361 = vmatpush1.msra.mxu0 0.0
    %2362 = vmatprep.subr.mxu0 0.0
    %2363 = vmatpush1.msra.mxu0 0.0
    %2364 = vmatprep.subr.mxu0 0.0
    %2365 = vmatpush1.msra.mxu0 0.0
    %2366 = vmatprep.subr.mxu0 0.0
    %2367 = vmatpush1.msra.mxu0 0.0
    %2368 = vmatprep.subr.mxu0 0.0
    %2369 = vmatpush1.msra.mxu0 0.0
    %2370 = vmatprep.subr.mxu0 0.0
    %2371 = vmatpush1.msra.mxu0 0.0
    %2372 = vmatprep.subr.mxu0 0.0
    %2373 = vmatpush1.msra.mxu0 0.0
    %2374 = vmatprep.subr.mxu0 0.0
    %2375 = vmatpush1.msra.mxu0 0.0
    %2376 = vmatprep.subr.mxu0 0.0
    %2377 = vmatpush1.msra.mxu0 0.0
    %2378 = vmatprep.subr.mxu0 0.0
    %2379 = vmatpush1.msra.mxu0 0.0
    %2380 = vmatprep.subr.mxu0 0.0
    %2381 = vmatpush1.msra.mxu0 0.0
    %2382 = vmatprep.subr.mxu0 0.0
    %2383 = vmatpush1.msra.mxu0 0.0
    %2384 = vmatprep.subr.mxu0 0.0
    %2385 = vmatpush1.msra.mxu0 0.0
    %2386 = vmatprep.subr.mxu0 0.0
    %2387 = vmatpush1.msra.mxu0 0.0
    %2388 = vmatprep.subr.mxu0 0.0
    %2389 = vmatpush1.msra.mxu0 0.0
    %2390 = vmatprep.subr.mxu0 0.0
    %2391 = vmatpush1.msra.mxu0 0.0
    %2392 = vmatprep.subr.mxu0 0.0
    %2393 = vmatpush1.msra.mxu0 0.0
    %2394 = vmatprep.subr.mxu0 0.0
    %2395 = vmatpush1.msra.mxu0 0.0
    %2396 = vmatprep.subr.mxu0 0.0
    %2397 = vmatpush1.msra.mxu0 0.0
    %2398 = vmatprep.subr.mxu0 0.0
    %2399 = vmatpush1.msra.mxu0 0.0
    %2400 = vmatprep.subr.mxu0 0.0
    %2401 = vmatpush1.msra.mxu0 0.0
    %2402 = vmatprep.subr.mxu0 0.0
    %2403 = vmatpush1.msra.mxu0 0.0
    %2404 = vmatprep.subr.mxu0 0.0
    %2405 = vmatpush1.msra.mxu0 0.0
    %2406 = vmatprep.subr.mxu0 0.0
    %2407 = vmatpush1.msra.mxu0 0.0
    %2408 = vmatprep.subr.mxu0 0.0
    %2409 = vmatpush1.msra.mxu0 0.0
    %2410 = vmatprep.subr.mxu0 0.0
    %2411 = vmatpush1.msra.mxu0 0.0
    %2412 = vmatprep.subr.mxu0 0.0
    %2413 = vmatpush1.msra.mxu0 0.0
    %2414 = vmatprep.subr.mxu0 0.0
    %2415 = vmatpush1.msra.mxu0 0.0
    %2416 = vmatprep.subr.mxu0 0.0
    %2417 = vmatpush1.msra.mxu0 0.0
    %2418 = vmatprep.subr.mxu0 0.0
    %2419 = vmatpush1.msra.mxu0 0.0
    %2420 = vmatprep.subr.mxu0 0.0
    %2421 = vmatpush1.msra.mxu0 0.0
    %2422 = vmatprep.mubr.f32.mxu0 0.0
    %2423 = vmatmul.mubr.f32.gmra.mrb[0].mxu0 %v2350
    %v2424 = vpop.f32.mrb[0].mxu0
    %v2425 = vadd.f32 %v1945, %v2424
    %v2426 = vpop.f32.mrb[0].mxu0
    %v2427 = vadd.f32 %v1949, %v2426
    %2428 = vdwg.mxu0
    %2429 = vmatprep.subr.mxu0 0.0
    %2430 = vmatpush1.msra.mxu0 %v2356
    %2431 = vmatprep.subr.mxu0 0.0
    %2432 = vmatpush1.msra.mxu0 0.0
    %2433 = vmatprep.subr.mxu0 0.0
    %2434 = vmatpush1.msra.mxu0 0.0
    %2435 = vmatprep.subr.mxu0 0.0
    %2436 = vmatpush1.msra.mxu0 0.0
    %2437 = vmatprep.subr.mxu0 0.0
    %2438 = vmatpush1.msra.mxu0 0.0
    %2439 = vmatprep.subr.mxu0 0.0
    %2440 = vmatpush1.msra.mxu0 0.0
    %2441 = vmatprep.subr.mxu0 0.0
    %2442 = vmatpush1.msra.mxu0 0.0
    %2443 = vmatprep.subr.mxu0 0.0
    %2444 = vmatpush1.msra.mxu0 0.0
    %2445 = vmatprep.subr.mxu0 0.0
    %2446 = vmatpush1.msra.mxu0 0.0
    %2447 = vmatprep.subr.mxu0 0.0
    %2448 = vmatpush1.msra.mxu0 0.0
    %2449 = vmatprep.subr.mxu0 0.0
    %2450 = vmatpush1.msra.mxu0 0.0
    %2451 = vmatprep.subr.mxu0 0.0
    %2452 = vmatpush1.msra.mxu0 0.0
    %2453 = vmatprep.subr.mxu0 0.0
    %2454 = vmatpush1.msra.mxu0 0.0
    %2455 = vmatprep.subr.mxu0 0.0
    %2456 = vmatpush1.msra.mxu0 0.0
    %2457 = vmatprep.subr.mxu0 0.0
    %2458 = vmatpush1.msra.mxu0 0.0
    %2459 = vmatprep.subr.mxu0 0.0
    %2460 = vmatpush1.msra.mxu0 0.0
    %2461 = vmatprep.subr.mxu0 0.0
    %2462 = vmatpush1.msra.mxu0 0.0
    %2463 = vmatprep.subr.mxu0 0.0
    %2464 = vmatpush1.msra.mxu0 0.0
    %2465 = vmatprep.subr.mxu0 0.0
    %2466 = vmatpush1.msra.mxu0 0.0
    %2467 = vmatprep.subr.mxu0 0.0
    %2468 = vmatpush1.msra.mxu0 0.0
    %2469 = vmatprep.subr.mxu0 0.0
    %2470 = vmatpush1.msra.mxu0 0.0
    %2471 = vmatprep.subr.mxu0 0.0
    %2472 = vmatpush1.msra.mxu0 0.0
    %2473 = vmatprep.subr.mxu0 0.0
    %2474 = vmatpush1.msra.mxu0 0.0
    %2475 = vmatprep.subr.mxu0 0.0
    %2476 = vmatpush1.msra.mxu0 0.0
    %2477 = vmatprep.subr.mxu0 0.0
    %2478 = vmatpush1.msra.mxu0 0.0
    %2479 = vmatprep.subr.mxu0 0.0
    %2480 = vmatpush1.msra.mxu0 0.0
    %2481 = vmatprep.subr.mxu0 0.0
    %2482 = vmatpush1.msra.mxu0 0.0
    %2483 = vmatprep.subr.mxu0 0.0
    %2484 = vmatpush1.msra.mxu0 0.0
    %2485 = vmatprep.subr.mxu0 0.0
    %2486 = vmatpush1.msra.mxu0 0.0
    %2487 = vmatprep.subr.mxu0 0.0
    %2488 = vmatpush1.msra.mxu0 0.0
    %2489 = vmatprep.subr.mxu0 0.0
    %2490 = vmatpush1.msra.mxu0 0.0
    %2491 = vmatprep.subr.mxu0 0.0
    %2492 = vmatpush1.msra.mxu0 0.0
    %2493 = vmatprep.mubr.f32.mxu0 0.0
    %2494 = vmatmul.mubr.f32.gmra.mrb[0].mxu0 %v2350
    %v2495 = vpop.f32.mrb[0].mxu0
    %v2496 = vadd.f32 %v1953, %v2495
    %v2497 = vpop.f32.mrb[0].mxu0
    %2498 = vdwg.mxu0
    %v2501 = vcombine.high %v514, %v514
    %v2503 = vsel %vm2041, %v119, 0
    %v2505 = vsel %vm2045, %v514, 0
    %v2507 = vsel %vm2045, %v2501, 0
    %v2509 = vsel %vm2045, %v515, 0
    %2511 = vmatprep.subr.mxu0 %v2507
    %2512 = vmatpush1.msra.mxu0 %v2505
    %2513 = vmatprep.subr.mxu0 0.0
    %2514 = vmatpush1.msra.mxu0 0.0
    %2515 = vmatprep.subr.mxu0 0.0
    %2516 = vmatpush1.msra.mxu0 0.0
    %2517 = vmatprep.subr.mxu0 0.0
    %2518 = vmatpush1.msra.mxu0 0.0
    %2519 = vmatprep.subr.mxu0 0.0
    %2520 = vmatpush1.msra.mxu0 0.0
    %2521 = vmatprep.subr.mxu0 0.0
    %2522 = vmatpush1.msra.mxu0 0.0
    %2523 = vmatprep.subr.mxu0 0.0
    %2524 = vmatpush1.msra.mxu0 0.0
    %2525 = vmatprep.subr.mxu0 0.0
    %2526 = vmatpush1.msra.mxu0 0.0
    %2527 = vmatprep.subr.mxu0 0.0
    %2528 = vmatpush1.msra.mxu0 0.0
    %2529 = vmatprep.subr.mxu0 0.0
    %2530 = vmatpush1.msra.mxu0 0.0
    %2531 = vmatprep.subr.mxu0 0.0
    %2532 = vmatpush1.msra.mxu0 0.0
    %2533 = vmatprep.subr.mxu0 0.0
    %2534 = vmatpush1.msra.mxu0 0.0
    %2535 = vmatprep.subr.mxu0 0.0
    %2536 = vmatpush1.msra.mxu0 0.0
    %2537 = vmatprep.subr.mxu0 0.0
    %2538 = vmatpush1.msra.mxu0 0.0
    %2539 = vmatprep.subr.mxu0 0.0
    %2540 = vmatpush1.msra.mxu0 0.0
    %2541 = vmatprep.subr.mxu0 0.0
    %2542 = vmatpush1.msra.mxu0 0.0
    %2543 = vmatprep.subr.mxu0 0.0
    %2544 = vmatpush1.msra.mxu0 0.0
    %2545 = vmatprep.subr.mxu0 0.0
    %2546 = vmatpush1.msra.mxu0 0.0
    %2547 = vmatprep.subr.mxu0 0.0
    %2548 = vmatpush1.msra.mxu0 0.0
    %2549 = vmatprep.subr.mxu0 0.0
    %2550 = vmatpush1.msra.mxu0 0.0
    %2551 = vmatprep.subr.mxu0 0.0
    %2552 = vmatpush1.msra.mxu0 0.0
    %2553 = vmatprep.subr.mxu0 0.0
    %2554 = vmatpush1.msra.mxu0 0.0
    %2555 = vmatprep.subr.mxu0 0.0
    %2556 = vmatpush1.msra.mxu0 0.0
    %2557 = vmatprep.subr.mxu0 0.0
    %2558 = vmatpush1.msra.mxu0 0.0
    %2559 = vmatprep.subr.mxu0 0.0
    %2560 = vmatpush1.msra.mxu0 0.0
    %2561 = vmatprep.subr.mxu0 0.0
    %2562 = vmatpush1.msra.mxu0 0.0
    %2563 = vmatprep.subr.mxu0 0.0
    %2564 = vmatpush1.msra.mxu0 0.0
    %2565 = vmatprep.subr.mxu0 0.0
    %2566 = vmatpush1.msra.mxu0 0.0
    %2567 = vmatprep.subr.mxu0 0.0
    %2568 = vmatpush1.msra.mxu0 0.0
    %2569 = vmatprep.subr.mxu0 0.0
    %2570 = vmatpush1.msra.mxu0 0.0
    %2571 = vmatprep.subr.mxu0 0.0
    %2572 = vmatpush1.msra.mxu0 0.0
    %2573 = vmatprep.subr.mxu0 0.0
    %2574 = vmatpush1.msra.mxu0 0.0
    %2575 = vmatprep.mubr.f32.mxu0 0.0
    %2576 = vmatmul.mubr.f32.gmra.mrb[0].mxu0 %v2503
    %v2577 = vpop.f32.mrb[0].mxu0
    %v2578 = vadd.f32 %v1957, %v2577
    %v2579 = vpop.f32.mrb[0].mxu0
    %v2580 = vadd.f32 %v1961, %v2579
    %2581 = vdwg.mxu0
    %2582 = vmatprep.subr.mxu0 0.0
    %2583 = vmatpush1.msra.mxu0 %v2509
    %2584 = vmatprep.subr.mxu0 0.0
    %2585 = vmatpush1.msra.mxu0 0.0
    %2586 = vmatprep.subr.mxu0 0.0
    %2587 = vmatpush1.msra.mxu0 0.0
    %2588 = vmatprep.subr.mxu0 0.0
    %2589 = vmatpush1.msra.mxu0 0.0
    %2590 = vmatprep.subr.mxu0 0.0
    %2591 = vmatpush1.msra.mxu0 0.0
    %2592 = vmatprep.subr.mxu0 0.0
    %2593 = vmatpush1.msra.mxu0 0.0
    %2594 = vmatprep.subr.mxu0 0.0
    %2595 = vmatpush1.msra.mxu0 0.0
    %2596 = vmatprep.subr.mxu0 0.0
    %2597 = vmatpush1.msra.mxu0 0.0
    %2598 = vmatprep.subr.mxu0 0.0
    %2599 = vmatpush1.msra.mxu0 0.0
    %2600 = vmatprep.subr.mxu0 0.0
    %2601 = vmatpush1.msra.mxu0 0.0
    %2602 = vmatprep.subr.mxu0 0.0
    %2603 = vmatpush1.msra.mxu0 0.0
    %2604 = vmatprep.subr.mxu0 0.0
    %2605 = vmatpush1.msra.mxu0 0.0
    %2606 = vmatprep.subr.mxu0 0.0
    %2607 = vmatpush1.msra.mxu0 0.0
    %2608 = vmatprep.subr.mxu0 0.0
    %2609 = vmatpush1.msra.mxu0 0.0
    %2610 = vmatprep.subr.mxu0 0.0
    %2611 = vmatpush1.msra.mxu0 0.0
    %2612 = vmatprep.subr.mxu0 0.0
    %2613 = vmatpush1.msra.mxu0 0.0
    %2614 = vmatprep.subr.mxu0 0.0
    %2615 = vmatpush1.msra.mxu0 0.0
    %2616 = vmatprep.subr.mxu0 0.0
    %2617 = vmatpush1.msra.mxu0 0.0
    %2618 = vmatprep.subr.mxu0 0.0
    %2619 = vmatpush1.msra.mxu0 0.0
    %2620 = vmatprep.subr.mxu0 0.0
    %2621 = vmatpush1.msra.mxu0 0.0
    %2622 = vmatprep.subr.mxu0 0.0
    %2623 = vmatpush1.msra.mxu0 0.0
    %2624 = vmatprep.subr.mxu0 0.0
    %2625 = vmatpush1.msra.mxu0 0.0
    %2626 = vmatprep.subr.mxu0 0.0
    %2627 = vmatpush1.msra.mxu0 0.0
    %2628 = vmatprep.subr.mxu0 0.0
    %2629 = vmatpush1.msra.mxu0 0.0
    %2630 = vmatprep.subr.mxu0 0.0
    %2631 = vmatpush1.msra.mxu0 0.0
    %2632 = vmatprep.subr.mxu0 0.0
    %2633 = vmatpush1.msra.mxu0 0.0
    %2634 = vmatprep.subr.mxu0 0.0
    %2635 = vmatpush1.msra.mxu0 0.0
    %2636 = vmatprep.subr.mxu0 0.0
    %2637 = vmatpush1.msra.mxu0 0.0
    %2638 = vmatprep.subr.mxu0 0.0
    %2639 = vmatpush1.msra.mxu0 0.0
    %2640 = vmatprep.subr.mxu0 0.0
    %2641 = vmatpush1.msra.mxu0 0.0
    %2642 = vmatprep.subr.mxu0 0.0
    %2643 = vmatpush1.msra.mxu0 0.0
    %2644 = vmatprep.subr.mxu0 0.0
    %2645 = vmatpush1.msra.mxu0 0.0
    %2646 = vmatprep.mubr.f32.mxu0 0.0
    %2647 = vmatmul.mubr.f32.gmra.mrb[0].mxu0 %v2503
    %v2648 = vpop.f32.mrb[0].mxu0
    %v2649 = vadd.f32 %v1965, %v2648
    %v2650 = vpop.f32.mrb[0].mxu0
    %2651 = vdwg.mxu0
    %v2654 = vcombine.high %v516, %v516
    %v2656 = vsel %vm2041, %v120, 0
    %v2658 = vsel %vm2045, %v516, 0
    %v2660 = vsel %vm2045, %v2654, 0
    %v2662 = vsel %vm2045, %v517, 0
    %2664 = vmatprep.subr.mxu0 %v2660
    %2665 = vmatpush1.msra.mxu0 %v2658
    %2666 = vmatprep.subr.mxu0 0.0
    %2667 = vmatpush1.msra.mxu0 0.0
    %2668 = vmatprep.subr.mxu0 0.0
    %2669 = vmatpush1.msra.mxu0 0.0
    %2670 = vmatprep.subr.mxu0 0.0
    %2671 = vmatpush1.msra.mxu0 0.0
    %2672 = vmatprep.subr.mxu0 0.0
    %2673 = vmatpush1.msra.mxu0 0.0
    %2674 = vmatprep.subr.mxu0 0.0
    %2675 = vmatpush1.msra.mxu0 0.0
    %2676 = vmatprep.subr.mxu0 0.0
    %2677 = vmatpush1.msra.mxu0 0.0
    %2678 = vmatprep.subr.mxu0 0.0
    %2679 = vmatpush1.msra.mxu0 0.0
    %2680 = vmatprep.subr.mxu0 0.0
    %2681 = vmatpush1.msra.mxu0 0.0
    %2682 = vmatprep.subr.mxu0 0.0
    %2683 = vmatpush1.msra.mxu0 0.0
    %2684 = vmatprep.subr.mxu0 0.0
    %2685 = vmatpush1.msra.mxu0 0.0
    %2686 = vmatprep.subr.mxu0 0.0
    %2687 = vmatpush1.msra.mxu0 0.0
    %2688 = vmatprep.subr.mxu0 0.0
    %2689 = vmatpush1.msra.mxu0 0.0
    %2690 = vmatprep.subr.mxu0 0.0
    %2691 = vmatpush1.msra.mxu0 0.0
    %2692 = vmatprep.subr.mxu0 0.0
    %2693 = vmatpush1.msra.mxu0 0.0
    %2694 = vmatprep.subr.mxu0 0.0
    %2695 = vmatpush1.msra.mxu0 0.0
    %2696 = vmatprep.subr.mxu0 0.0
    %2697 = vmatpush1.msra.mxu0 0.0
    %2698 = vmatprep.subr.mxu0 0.0
    %2699 = vmatpush1.msra.mxu0 0.0
    %2700 = vmatprep.subr.mxu0 0.0
    %2701 = vmatpush1.msra.mxu0 0.0
    %2702 = vmatprep.subr.mxu0 0.0
    %2703 = vmatpush1.msra.mxu0 0.0
    %2704 = vmatprep.subr.mxu0 0.0
    %2705 = vmatpush1.msra.mxu0 0.0
    %2706 = vmatprep.subr.mxu0 0.0
    %2707 = vmatpush1.msra.mxu0 0.0
    %2708 = vmatprep.subr.mxu0 0.0
    %2709 = vmatpush1.msra.mxu0 0.0
    %2710 = vmatprep.subr.mxu0 0.0
    %2711 = vmatpush1.msra.mxu0 0.0
    %2712 = vmatprep.subr.mxu0 0.0
    %2713 = vmatpush1.msra.mxu0 0.0
    %2714 = vmatprep.subr.mxu0 0.0
    %2715 = vmatpush1.msra.mxu0 0.0
    %2716 = vmatprep.subr.mxu0 0.0
    %2717 = vmatpush1.msra.mxu0 0.0
    %2718 = vmatprep.subr.mxu0 0.0
    %2719 = vmatpush1.msra.mxu0 0.0
    %2720 = vmatprep.subr.mxu0 0.0
    %2721 = vmatpush1.msra.mxu0 0.0
    %2722 = vmatprep.subr.mxu0 0.0
    %2723 = vmatpush1.msra.mxu0 0.0
    %2724 = vmatprep.subr.mxu0 0.0
    %2725 = vmatpush1.msra.mxu0 0.0
    %2726 = vmatprep.subr.mxu0 0.0
    %2727 = vmatpush1.msra.mxu0 0.0
    %2728 = vmatprep.mubr.f32.mxu0 0.0
    %2729 = vmatmul.mubr.f32.gmra.mrb[0].mxu0 %v2656
    %v2730 = vpop.f32.mrb[0].mxu0
    %v2731 = vadd.f32 %v1969, %v2730
    %v2732 = vpop.f32.mrb[0].mxu0
    %v2733 = vadd.f32 %v1973, %v2732
    %2734 = vdwg.mxu0
    %2735 = vmatprep.subr.mxu0 0.0
    %2736 = vmatpush1.msra.mxu0 %v2662
    %2737 = vmatprep.subr.mxu0 0.0
    %2738 = vmatpush1.msra.mxu0 0.0
    %2739 = vmatprep.subr.mxu0 0.0
    %2740 = vmatpush1.msra.mxu0 0.0
    %2741 = vmatprep.subr.mxu0 0.0
    %2742 = vmatpush1.msra.mxu0 0.0
    %2743 = vmatprep.subr.mxu0 0.0
    %2744 = vmatpush1.msra.mxu0 0.0
    %2745 = vmatprep.subr.mxu0 0.0
    %2746 = vmatpush1.msra.mxu0 0.0
    %2747 = vmatprep.subr.mxu0 0.0
    %2748 = vmatpush1.msra.mxu0 0.0
    %2749 = vmatprep.subr.mxu0 0.0
    %2750 = vmatpush1.msra.mxu0 0.0
    %2751 = vmatprep.subr.mxu0 0.0
    %2752 = vmatpush1.msra.mxu0 0.0
    %2753 = vmatprep.subr.mxu0 0.0
    %2754 = vmatpush1.msra.mxu0 0.0
    %2755 = vmatprep.subr.mxu0 0.0
    %2756 = vmatpush1.msra.mxu0 0.0
    %2757 = vmatprep.subr.mxu0 0.0
    %2758 = vmatpush1.msra.mxu0 0.0
    %2759 = vmatprep.subr.mxu0 0.0
    %2760 = vmatpush1.msra.mxu0 0.0
    %2761 = vmatprep.subr.mxu0 0.0
    %2762 = vmatpush1.msra.mxu0 0.0
    %2763 = vmatprep.subr.mxu0 0.0
    %2764 = vmatpush1.msra.mxu0 0.0
    %2765 = vmatprep.subr.mxu0 0.0
    %2766 = vmatpush1.msra.mxu0 0.0
    %2767 = vmatprep.subr.mxu0 0.0
    %2768 = vmatpush1.msra.mxu0 0.0
    %2769 = vmatprep.subr.mxu0 0.0
    %2770 = vmatpush1.msra.mxu0 0.0
    %2771 = vmatprep.subr.mxu0 0.0
    %2772 = vmatpush1.msra.mxu0 0.0
    %2773 = vmatprep.subr.mxu0 0.0
    %2774 = vmatpush1.msra.mxu0 0.0
    %2775 = vmatprep.subr.mxu0 0.0
    %2776 = vmatpush1.msra.mxu0 0.0
    %2777 = vmatprep.subr.mxu0 0.0
    %2778 = vmatpush1.msra.mxu0 0.0
    %2779 = vmatprep.subr.mxu0 0.0
    %2780 = vmatpush1.msra.mxu0 0.0
    %2781 = vmatprep.subr.mxu0 0.0
    %2782 = vmatpush1.msra.mxu0 0.0
    %2783 = vmatprep.subr.mxu0 0.0
    %2784 = vmatpush1.msra.mxu0 0.0
    %2785 = vmatprep.subr.mxu0 0.0
    %2786 = vmatpush1.msra.mxu0 0.0
    %2787 = vmatprep.subr.mxu0 0.0
    %2788 = vmatpush1.msra.mxu0 0.0
    %2789 = vmatprep.subr.mxu0 0.0
    %2790 = vmatpush1.msra.mxu0 0.0
    %2791 = vmatprep.subr.mxu0 0.0
    %2792 = vmatpush1.msra.mxu0 0.0
    %2793 = vmatprep.subr.mxu0 0.0
    %2794 = vmatpush1.msra.mxu0 0.0
    %2795 = vmatprep.subr.mxu0 0.0
    %2796 = vmatpush1.msra.mxu0 0.0
    %2797 = vmatprep.subr.mxu0 0.0
    %2798 = vmatpush1.msra.mxu0 0.0
    %2799 = vmatprep.mubr.f32.mxu0 0.0
    %2800 = vmatmul.mubr.f32.gmra.mrb[0].mxu0 %v2656
    %v2801 = vpop.f32.mrb[0].mxu0
    %v2802 = vadd.f32 %v1977, %v2801
    %v2803 = vpop.f32.mrb[0].mxu0
    %2804 = vdwg.mxu0
    %v2807 = vcombine.high %v518, %v518
    %v2809 = vsel %vm2041, %v121, 0
    %v2811 = vsel %vm2045, %v518, 0
    %v2813 = vsel %vm2045, %v2807, 0
    %v2815 = vsel %vm2045, %v519, 0
    %2817 = vmatprep.subr.mxu0 %v2813
    %2818 = vmatpush1.msra.mxu0 %v2811
    %2819 = vmatprep.subr.mxu0 0.0
    %2820 = vmatpush1.msra.mxu0 0.0
    %2821 = vmatprep.subr.mxu0 0.0
    %2822 = vmatpush1.msra.mxu0 0.0
    %2823 = vmatprep.subr.mxu0 0.0
    %2824 = vmatpush1.msra.mxu0 0.0
    %2825 = vmatprep.subr.mxu0 0.0
    %2826 = vmatpush1.msra.mxu0 0.0
    %2827 = vmatprep.subr.mxu0 0.0
    %2828 = vmatpush1.msra.mxu0 0.0
    %2829 = vmatprep.subr.mxu0 0.0
    %2830 = vmatpush1.msra.mxu0 0.0
    %2831 = vmatprep.subr.mxu0 0.0
    %2832 = vmatpush1.msra.mxu0 0.0
    %2833 = vmatprep.subr.mxu0 0.0
    %2834 = vmatpush1.msra.mxu0 0.0
    %2835 = vmatprep.subr.mxu0 0.0
    %2836 = vmatpush1.msra.mxu0 0.0
    %2837 = vmatprep.subr.mxu0 0.0
    %2838 = vmatpush1.msra.mxu0 0.0
    %2839 = vmatprep.subr.mxu0 0.0
    %2840 = vmatpush1.msra.mxu0 0.0
    %2841 = vmatprep.subr.mxu0 0.0
    %2842 = vmatpush1.msra.mxu0 0.0
    %2843 = vmatprep.subr.mxu0 0.0
    %2844 = vmatpush1.msra.mxu0 0.0
    %2845 = vmatprep.subr.mxu0 0.0
    %2846 = vmatpush1.msra.mxu0 0.0
    %2847 = vmatprep.subr.mxu0 0.0
    %2848 = vmatpush1.msra.mxu0 0.0
    %2849 = vmatprep.subr.mxu0 0.0
    %2850 = vmatpush1.msra.mxu0 0.0
    %2851 = vmatprep.subr.mxu0 0.0
    %2852 = vmatpush1.msra.mxu0 0.0
    %2853 = vmatprep.subr.mxu0 0.0
    %2854 = vmatpush1.msra.mxu0 0.0
    %2855 = vmatprep.subr.mxu0 0.0
    %2856 = vmatpush1.msra.mxu0 0.0
    %2857 = vmatprep.subr.mxu0 0.0
    %2858 = vmatpush1.msra.mxu0 0.0
    %2859 = vmatprep.subr.mxu0 0.0
    %2860 = vmatpush1.msra.mxu0 0.0
    %2861 = vmatprep.subr.mxu0 0.0
    %2862 = vmatpush1.msra.mxu0 0.0
    %2863 = vmatprep.subr.mxu0 0.0
    %2864 = vmatpush1.msra.mxu0 0.0
    %2865 = vmatprep.subr.mxu0 0.0
    %2866 = vmatpush1.msra.mxu0 0.0
    %2867 = vmatprep.subr.mxu0 0.0
    %2868 = vmatpush1.msra.mxu0 0.0
    %2869 = vmatprep.subr.mxu0 0.0
    %2870 = vmatpush1.msra.mxu0 0.0
    %2871 = vmatprep.subr.mxu0 0.0
    %2872 = vmatpush1.msra.mxu0 0.0
    %2873 = vmatprep.subr.mxu0 0.0
    %2874 = vmatpush1.msra.mxu0 0.0
    %2875 = vmatprep.subr.mxu0 0.0
    %2876 = vmatpush1.msra.mxu0 0.0
    %2877 = vmatprep.subr.mxu0 0.0
    %2878 = vmatpush1.msra.mxu0 0.0
    %2879 = vmatprep.subr.mxu0 0.0
    %2880 = vmatpush1.msra.mxu0 0.0
    %2881 = vmatprep.mubr.f32.mxu0 0.0
    %2882 = vmatmul.mubr.f32.gmra.mrb[0].mxu0 %v2809
    %v2883 = vpop.f32.mrb[0].mxu0
    %v2884 = vadd.f32 %v1981, %v2883
    %v2885 = vpop.f32.mrb[0].mxu0
    %v2886 = vadd.f32 %v1985, %v2885
    %2887 = vdwg.mxu0
    %2888 = vmatprep.subr.mxu0 0.0
    %2889 = vmatpush1.msra.mxu0 %v2815
    %2890 = vmatprep.subr.mxu0 0.0
    %2891 = vmatpush1.msra.mxu0 0.0
    %2892 = vmatprep.subr.mxu0 0.0
    %2893 = vmatpush1.msra.mxu0 0.0
    %2894 = vmatprep.subr.mxu0 0.0
    %2895 = vmatpush1.msra.mxu0 0.0
    %2896 = vmatprep.subr.mxu0 0.0
    %2897 = vmatpush1.msra.mxu0 0.0
    %2898 = vmatprep.subr.mxu0 0.0
    %2899 = vmatpush1.msra.mxu0 0.0
    %2900 = vmatprep.subr.mxu0 0.0
    %2901 = vmatpush1.msra.mxu0 0.0
    %2902 = vmatprep.subr.mxu0 0.0
    %2903 = vmatpush1.msra.mxu0 0.0
    %2904 = vmatprep.subr.mxu0 0.0
    %2905 = vmatpush1.msra.mxu0 0.0
    %2906 = vmatprep.subr.mxu0 0.0
    %2907 = vmatpush1.msra.mxu0 0.0
    %2908 = vmatprep.subr.mxu0 0.0
    %2909 = vmatpush1.msra.mxu0 0.0
    %2910 = vmatprep.subr.mxu0 0.0
    %2911 = vmatpush1.msra.mxu0 0.0
    %2912 = vmatprep.subr.mxu0 0.0
    %2913 = vmatpush1.msra.mxu0 0.0
    %2914 = vmatprep.subr.mxu0 0.0
    %2915 = vmatpush1.msra.mxu0 0.0
    %2916 = vmatprep.subr.mxu0 0.0
    %2917 = vmatpush1.msra.mxu0 0.0
    %2918 = vmatprep.subr.mxu0 0.0
    %2919 = vmatpush1.msra.mxu0 0.0
    %2920 = vmatprep.subr.mxu0 0.0
    %2921 = vmatpush1.msra.mxu0 0.0
    %2922 = vmatprep.subr.mxu0 0.0
    %2923 = vmatpush1.msra.mxu0 0.0
    %2924 = vmatprep.subr.mxu0 0.0
    %2925 = vmatpush1.msra.mxu0 0.0
    %2926 = vmatprep.subr.mxu0 0.0
    %2927 = vmatpush1.msra.mxu0 0.0
    %2928 = vmatprep.subr.mxu0 0.0
    %2929 = vmatpush1.msra.mxu0 0.0
    %2930 = vmatprep.subr.mxu0 0.0
    %2931 = vmatpush1.msra.mxu0 0.0
    %2932 = vmatprep.subr.mxu0 0.0
    %2933 = vmatpush1.msra.mxu0 0.0
    %2934 = vmatprep.subr.mxu0 0.0
    %2935 = vmatpush1.msra.mxu0 0.0
    %2936 = vmatprep.subr.mxu0 0.0
    %2937 = vmatpush1.msra.mxu0 0.0
    %2938 = vmatprep.subr.mxu0 0.0
    %2939 = vmatpush1.msra.mxu0 0.0
    %2940 = vmatprep.subr.mxu0 0.0
    %2941 = vmatpush1.msra.mxu0 0.0
    %2942 = vmatprep.subr.mxu0 0.0
    %2943 = vmatpush1.msra.mxu0 0.0
    %2944 = vmatprep.subr.mxu0 0.0
    %2945 = vmatpush1.msra.mxu0 0.0
    %2946 = vmatprep.subr.mxu0 0.0
    %2947 = vmatpush1.msra.mxu0 0.0
    %2948 = vmatprep.subr.mxu0 0.0
    %2949 = vmatpush1.msra.mxu0 0.0
    %2950 = vmatprep.subr.mxu0 0.0
    %2951 = vmatpush1.msra.mxu0 0.0
    %2952 = vmatprep.mubr.f32.mxu0 0.0
    %2953 = vmatmul.mubr.f32.gmra.mrb[0].mxu0 %v2809
    %v2954 = vpop.f32.mrb[0].mxu0
    %v2955 = vadd.f32 %v1989, %v2954
    %v2956 = vpop.f32.mrb[0].mxu0
    %2957 = vdwg.mxu0
    %v2960 = vcombine.high %v520, %v520
    %v2962 = vsel %vm2041, %v122, 0
    %v2964 = vsel %vm2045, %v520, 0
    %v2966 = vsel %vm2045, %v2960, 0
    %v2968 = vsel %vm2045, %v521, 0
    %2970 = vmatprep.subr.mxu0 %v2966
    %2971 = vmatpush1.msra.mxu0 %v2964
    %2972 = vmatprep.subr.mxu0 0.0
    %2973 = vmatpush1.msra.mxu0 0.0
    %2974 = vmatprep.subr.mxu0 0.0
    %2975 = vmatpush1.msra.mxu0 0.0
    %2976 = vmatprep.subr.mxu0 0.0
    %2977 = vmatpush1.msra.mxu0 0.0
    %2978 = vmatprep.subr.mxu0 0.0
    %2979 = vmatpush1.msra.mxu0 0.0
    %2980 = vmatprep.subr.mxu0 0.0
    %2981 = vmatpush1.msra.mxu0 0.0
    %2982 = vmatprep.subr.mxu0 0.0
    %2983 = vmatpush1.msra.mxu0 0.0
    %2984 = vmatprep.subr.mxu0 0.0
    %2985 = vmatpush1.msra.mxu0 0.0
    %2986 = vmatprep.subr.mxu0 0.0
    %2987 = vmatpush1.msra.mxu0 0.0
    %2988 = vmatprep.subr.mxu0 0.0
    %2989 = vmatpush1.msra.mxu0 0.0
    %2990 = vmatprep.subr.mxu0 0.0
    %2991 = vmatpush1.msra.mxu0 0.0
    %2992 = vmatprep.subr.mxu0 0.0
    %2993 = vmatpush1.msra.mxu0 0.0
    %2994 = vmatprep.subr.mxu0 0.0
    %2995 = vmatpush1.msra.mxu0 0.0
    %2996 = vmatprep.subr.mxu0 0.0
    %2997 = vmatpush1.msra.mxu0 0.0
    %2998 = vmatprep.subr.mxu0 0.0
    %2999 = vmatpush1.msra.mxu0 0.0
    %3000 = vmatprep.subr.mxu0 0.0
    %3001 = vmatpush1.msra.mxu0 0.0
    %3002 = vmatprep.subr.mxu0 0.0
    %3003 = vmatpush1.msra.mxu0 0.0
    %3004 = vmatprep.subr.mxu0 0.0
    %3005 = vmatpush1.msra.mxu0 0.0
    %3006 = vmatprep.subr.mxu0 0.0
    %3007 = vmatpush1.msra.mxu0 0.0
    %3008 = vmatprep.subr.mxu0 0.0
    %3009 = vmatpush1.msra.mxu0 0.0
    %3010 = vmatprep.subr.mxu0 0.0
    %3011 = vmatpush1.msra.mxu0 0.0
    %3012 = vmatprep.subr.mxu0 0.0
    %3013 = vmatpush1.msra.mxu0 0.0
    %3014 = vmatprep.subr.mxu0 0.0
    %3015 = vmatpush1.msra.mxu0 0.0
    %3016 = vmatprep.subr.mxu0 0.0
    %3017 = vmatpush1.msra.mxu0 0.0
    %3018 = vmatprep.subr.mxu0 0.0
    %3019 = vmatpush1.msra.mxu0 0.0
    %3020 = vmatprep.subr.mxu0 0.0
    %3021 = vmatpush1.msra.mxu0 0.0
    %3022 = vmatprep.subr.mxu0 0.0
    %3023 = vmatpush1.msra.mxu0 0.0
    %3024 = vmatprep.subr.mxu0 0.0
    %3025 = vmatpush1.msra.mxu0 0.0
    %3026 = vmatprep.subr.mxu0 0.0
    %3027 = vmatpush1.msra.mxu0 0.0
    %3028 = vmatprep.subr.mxu0 0.0
    %3029 = vmatpush1.msra.mxu0 0.0
    %3030 = vmatprep.subr.mxu0 0.0
    %3031 = vmatpush1.msra.mxu0 0.0
    %3032 = vmatprep.subr.mxu0 0.0
    %3033 = vmatpush1.msra.mxu0 0.0
    %3034 = vmatprep.mubr.f32.mxu0 0.0
    %3035 = vmatmul.mubr.f32.gmra.mrb[0].mxu0 %v2962
    %v3036 = vpop.f32.mrb[0].mxu0
    %v3037 = vadd.f32 %v1993, %v3036
    %v3038 = vpop.f32.mrb[0].mxu0
    %v3039 = vadd.f32 %v1997, %v3038
    %3040 = vdwg.mxu0
    %3041 = vmatprep.subr.mxu0 0.0
    %3042 = vmatpush1.msra.mxu0 %v2968
    %3043 = vmatprep.subr.mxu0 0.0
    %3044 = vmatpush1.msra.mxu0 0.0
    %3045 = vmatprep.subr.mxu0 0.0
    %3046 = vmatpush1.msra.mxu0 0.0
    %3047 = vmatprep.subr.mxu0 0.0
    %3048 = vmatpush1.msra.mxu0 0.0
    %3049 = vmatprep.subr.mxu0 0.0
    %3050 = vmatpush1.msra.mxu0 0.0
    %3051 = vmatprep.subr.mxu0 0.0
    %3052 = vmatpush1.msra.mxu0 0.0
    %3053 = vmatprep.subr.mxu0 0.0
    %3054 = vmatpush1.msra.mxu0 0.0
    %3055 = vmatprep.subr.mxu0 0.0
    %3056 = vmatpush1.msra.mxu0 0.0
    %3057 = vmatprep.subr.mxu0 0.0
    %3058 = vmatpush1.msra.mxu0 0.0
    %3059 = vmatprep.subr.mxu0 0.0
    %3060 = vmatpush1.msra.mxu0 0.0
    %3061 = vmatprep.subr.mxu0 0.0
    %3062 = vmatpush1.msra.mxu0 0.0
    %3063 = vmatprep.subr.mxu0 0.0
    %3064 = vmatpush1.msra.mxu0 0.0
    %3065 = vmatprep.subr.mxu0 0.0
    %3066 = vmatpush1.msra.mxu0 0.0
    %3067 = vmatprep.subr.mxu0 0.0
    %3068 = vmatpush1.msra.mxu0 0.0
    %3069 = vmatprep.subr.mxu0 0.0
    %3070 = vmatpush1.msra.mxu0 0.0
    %3071 = vmatprep.subr.mxu0 0.0
    %3072 = vmatpush1.msra.mxu0 0.0
    %3073 = vmatprep.subr.mxu0 0.0
    %3074 = vmatpush1.msra.mxu0 0.0
    %3075 = vmatprep.subr.mxu0 0.0
    %3076 = vmatpush1.msra.mxu0 0.0
    %3077 = vmatprep.subr.mxu0 0.0
    %3078 = vmatpush1.msra.mxu0 0.0
    %3079 = vmatprep.subr.mxu0 0.0
    %3080 = vmatpush1.msra.mxu0 0.0
    %3081 = vmatprep.subr.mxu0 0.0
    %3082 = vmatpush1.msra.mxu0 0.0
    %3083 = vmatprep.subr.mxu0 0.0
    %3084 = vmatpush1.msra.mxu0 0.0
    %3085 = vmatprep.subr.mxu0 0.0
    %3086 = vmatpush1.msra.mxu0 0.0
    %3087 = vmatprep.subr.mxu0 0.0
    %3088 = vmatpush1.msra.mxu0 0.0
    %3089 = vmatprep.subr.mxu0 0.0
    %3090 = vmatpush1.msra.mxu0 0.0
    %3091 = vmatprep.subr.mxu0 0.0
    %3092 = vmatpush1.msra.mxu0 0.0
    %3093 = vmatprep.subr.mxu0 0.0
    %3094 = vmatpush1.msra.mxu0 0.0
    %3095 = vmatprep.subr.mxu0 0.0
    %3096 = vmatpush1.msra.mxu0 0.0
    %3097 = vmatprep.subr.mxu0 0.0
    %3098 = vmatpush1.msra.mxu0 0.0
    %3099 = vmatprep.subr.mxu0 0.0
    %3100 = vmatpush1.msra.mxu0 0.0
    %3101 = vmatprep.subr.mxu0 0.0
    %3102 = vmatpush1.msra.mxu0 0.0
    %3103 = vmatprep.subr.mxu0 0.0
    %3104 = vmatpush1.msra.mxu0 0.0
    %3105 = vmatprep.mubr.f32.mxu0 0.0
    %3106 = vmatmul.mubr.f32.gmra.mrb[0].mxu0 %v2962
    %v3107 = vpop.f32.mrb[0].mxu0
    %v3108 = vadd.f32 %v2001, %v3107
    %v3109 = vpop.f32.mrb[0].mxu0
    %3110 = vdwg.mxu0
    %v3113 = vcombine.high %v522, %v522
    %v3115 = vsel %vm2041, %v123, 0
    %v3117 = vsel %vm2045, %v522, 0
    %v3119 = vsel %vm2045, %v3113, 0
    %v3121 = vsel %vm2045, %v523, 0
    %3123 = vmatprep.subr.mxu0 %v3119
    %3124 = vmatpush1.msra.mxu0 %v3117
    %3125 = vmatprep.subr.mxu0 0.0
    %3126 = vmatpush1.msra.mxu0 0.0
    %3127 = vmatprep.subr.mxu0 0.0
    %3128 = vmatpush1.msra.mxu0 0.0
    %3129 = vmatprep.subr.mxu0 0.0
    %3130 = vmatpush1.msra.mxu0 0.0
    %3131 = vmatprep.subr.mxu0 0.0
    %3132 = vmatpush1.msra.mxu0 0.0
    %3133 = vmatprep.subr.mxu0 0.0
    %3134 = vmatpush1.msra.mxu0 0.0
    %3135 = vmatprep.subr.mxu0 0.0
    %3136 = vmatpush1.msra.mxu0 0.0
    %3137 = vmatprep.subr.mxu0 0.0
    %3138 = vmatpush1.msra.mxu0 0.0
    %3139 = vmatprep.subr.mxu0 0.0
    %3140 = vmatpush1.msra.mxu0 0.0
    %3141 = vmatprep.subr.mxu0 0.0
    %3142 = vmatpush1.msra.mxu0 0.0
    %3143 = vmatprep.subr.mxu0 0.0
    %3144 = vmatpush1.msra.mxu0 0.0
    %3145 = vmatprep.subr.mxu0 0.0
    %3146 = vmatpush1.msra.mxu0 0.0
    %3147 = vmatprep.subr.mxu0 0.0
    %3148 = vmatpush1.msra.mxu0 0.0
    %3149 = vmatprep.subr.mxu0 0.0
    %3150 = vmatpush1.msra.mxu0 0.0
    %3151 = vmatprep.subr.mxu0 0.0
    %3152 = vmatpush1.msra.mxu0 0.0
    %3153 = vmatprep.subr.mxu0 0.0
    %3154 = vmatpush1.msra.mxu0 0.0
    %3155 = vmatprep.subr.mxu0 0.0
    %3156 = vmatpush1.msra.mxu0 0.0
    %3157 = vmatprep.subr.mxu0 0.0
    %3158 = vmatpush1.msra.mxu0 0.0
    %3159 = vmatprep.subr.mxu0 0.0
    %3160 = vmatpush1.msra.mxu0 0.0
    %3161 = vmatprep.subr.mxu0 0.0
    %3162 = vmatpush1.msra.mxu0 0.0
    %3163 = vmatprep.subr.mxu0 0.0
    %3164 = vmatpush1.msra.mxu0 0.0
    %3165 = vmatprep.subr.mxu0 0.0
    %3166 = vmatpush1.msra.mxu0 0.0
    %3167 = vmatprep.subr.mxu0 0.0
    %3168 = vmatpush1.msra.mxu0 0.0
    %3169 = vmatprep.subr.mxu0 0.0
    %3170 = vmatpush1.msra.mxu0 0.0
    %3171 = vmatprep.subr.mxu0 0.0
    %3172 = vmatpush1.msra.mxu0 0.0
    %3173 = vmatprep.subr.mxu0 0.0
    %3174 = vmatpush1.msra.mxu0 0.0
    %3175 = vmatprep.subr.mxu0 0.0
    %3176 = vmatpush1.msra.mxu0 0.0
    %3177 = vmatprep.subr.mxu0 0.0
    %3178 = vmatpush1.msra.mxu0 0.0
    %3179 = vmatprep.subr.mxu0 0.0
    %3180 = vmatpush1.msra.mxu0 0.0
    %3181 = vmatprep.subr.mxu0 0.0
    %3182 = vmatpush1.msra.mxu0 0.0
    %3183 = vmatprep.subr.mxu0 0.0
    %3184 = vmatpush1.msra.mxu0 0.0
    %3185 = vmatprep.subr.mxu0 0.0
    %3186 = vmatpush1.msra.mxu0 0.0
    %3187 = vmatprep.mubr.f32.mxu0 0.0
    %3188 = vmatmul.mubr.f32.gmra.mrb[0].mxu0 %v3115
    %v3189 = vpop.f32.mrb[0].mxu0
    %v3190 = vadd.f32 %v2005, %v3189
    %v3191 = vpop.f32.mrb[0].mxu0
    %v3192 = vadd.f32 %v2009, %v3191
    %3193 = vdwg.mxu0
    %3194 = vmatprep.subr.mxu0 0.0
    %3195 = vmatpush1.msra.mxu0 %v3121
    %3196 = vmatprep.subr.mxu0 0.0
    %3197 = vmatpush1.msra.mxu0 0.0
    %3198 = vmatprep.subr.mxu0 0.0
    %3199 = vmatpush1.msra.mxu0 0.0
    %3200 = vmatprep.subr.mxu0 0.0
    %3201 = vmatpush1.msra.mxu0 0.0
    %3202 = vmatprep.subr.mxu0 0.0
    %3203 = vmatpush1.msra.mxu0 0.0
    %3204 = vmatprep.subr.mxu0 0.0
    %3205 = vmatpush1.msra.mxu0 0.0
    %3206 = vmatprep.subr.mxu0 0.0
    %3207 = vmatpush1.msra.mxu0 0.0
    %3208 = vmatprep.subr.mxu0 0.0
    %3209 = vmatpush1.msra.mxu0 0.0
    %3210 = vmatprep.subr.mxu0 0.0
    %3211 = vmatpush1.msra.mxu0 0.0
    %3212 = vmatprep.subr.mxu0 0.0
    %3213 = vmatpush1.msra.mxu0 0.0
    %3214 = vmatprep.subr.mxu0 0.0
    %3215 = vmatpush1.msra.mxu0 0.0
    %3216 = vmatprep.subr.mxu0 0.0
    %3217 = vmatpush1.msra.mxu0 0.0
    %3218 = vmatprep.subr.mxu0 0.0
    %3219 = vmatpush1.msra.mxu0 0.0
    %3220 = vmatprep.subr.mxu0 0.0
    %3221 = vmatpush1.msra.mxu0 0.0
    %3222 = vmatprep.subr.mxu0 0.0
    %3223 = vmatpush1.msra.mxu0 0.0
    %3224 = vmatprep.subr.mxu0 0.0
    %3225 = vmatpush1.msra.mxu0 0.0
    %3226 = vmatprep.subr.mxu0 0.0
    %3227 = vmatpush1.msra.mxu0 0.0
    %3228 = vmatprep.subr.mxu0 0.0
    %3229 = vmatpush1.msra.mxu0 0.0
    %3230 = vmatprep.subr.mxu0 0.0
    %3231 = vmatpush1.msra.mxu0 0.0
    %3232 = vmatprep.subr.mxu0 0.0
    %3233 = vmatpush1.msra.mxu0 0.0
    %3234 = vmatprep.subr.mxu0 0.0
    %3235 = vmatpush1.msra.mxu0 0.0
    %3236 = vmatprep.subr.mxu0 0.0
    %3237 = vmatpush1.msra.mxu0 0.0
    %3238 = vmatprep.subr.mxu0 0.0
    %3239 = vmatpush1.msra.mxu0 0.0
    %3240 = vmatprep.subr.mxu0 0.0
    %3241 = vmatpush1.msra.mxu0 0.0
    %3242 = vmatprep.subr.mxu0 0.0
    %3243 = vmatpush1.msra.mxu0 0.0
    %3244 = vmatprep.subr.mxu0 0.0
    %3245 = vmatpush1.msra.mxu0 0.0
    %3246 = vmatprep.subr.mxu0 0.0
    %3247 = vmatpush1.msra.mxu0 0.0
    %3248 = vmatprep.subr.mxu0 0.0
    %3249 = vmatpush1.msra.mxu0 0.0
    %3250 = vmatprep.subr.mxu0 0.0
    %3251 = vmatpush1.msra.mxu0 0.0
    %3252 = vmatprep.subr.mxu0 0.0
    %3253 = vmatpush1.msra.mxu0 0.0
    %3254 = vmatprep.subr.mxu0 0.0
    %3255 = vmatpush1.msra.mxu0 0.0
    %3256 = vmatprep.subr.mxu0 0.0
    %3257 = vmatpush1.msra.mxu0 0.0
    %3258 = vmatprep.mubr.f32.mxu0 0.0
    %3259 = vmatmul.mubr.f32.gmra.mrb[0].mxu0 %v3115
    %v3260 = vpop.f32.mrb[0].mxu0
    %v3261 = vadd.f32 %v2013, %v3260
    %v3262 = vpop.f32.mrb[0].mxu0
    %3263 = vdwg.mxu0
    %v3264 = vadd.f32 %v857, %v2119
    %v3265 = vadd.f32 %v998, %v2272
    %v3266 = vadd.f32 %v1139, %v2425
    %v3267 = vadd.f32 %v1280, %v2578
    %v3268 = vadd.f32 %v1421, %v2731
    %v3269 = vadd.f32 %v1562, %v2884
    %v3270 = vadd.f32 %v1703, %v3037
    %v3271 = vadd.f32 %v1844, %v3190
    %v3272 = vxor.u32 %v3264, 2147483648
    %v3273 = vxor.u32 %v3265, 2147483648
    %v3274 = vxor.u32 %v3266, 2147483648
    %v3275 = vxor.u32 %v3267, 2147483648
    %v3276 = vxor.u32 %v3268, 2147483648
    %v3277 = vxor.u32 %v3269, 2147483648
    %v3278 = vxor.u32 %v3270, 2147483648
    %v3279 = vxor.u32 %v3271, 2147483648
    %v3280 = vmul.f32 %v3272, 1.442695
    %v3281 = vpow.pop %v3280
    %v3282 = vmul.f32 %v3273, 1.442695
    %v3283 = vpow.pop %v3282
    %v3284 = vmul.f32 %v3274, 1.442695
    %v3285 = vpow.pop %v3284
    %v3286 = vmul.f32 %v3275, 1.442695
    %v3287 = vpow.pop %v3286
    %v3288 = vmul.f32 %v3276, 1.442695
    %v3289 = vpow.pop %v3288
    %v3290 = vmul.f32 %v3277, 1.442695
    %v3291 = vpow.pop %v3290
    %v3292 = vmul.f32 %v3278, 1.442695
    %v3293 = vpow.pop %v3292
    %v3294 = vmul.f32 %v3279, 1.442695
    %v3295 = vpow.pop %v3294
    %v3296 = vadd.f32 %v3281, 1.0
    %v3297 = vadd.f32 %v3283, 1.0
    %v3298 = vadd.f32 %v3285, 1.0
    %v3299 = vadd.f32 %v3287, 1.0
    %v3300 = vadd.f32 %v3289, 1.0
    %v3301 = vadd.f32 %v3291, 1.0
    %v3302 = vadd.f32 %v3293, 1.0
    %v3303 = vadd.f32 %v3295, 1.0
    %v3304 = vrcp.pop %v3296
    %v3305 = vmul.f32 1.0, %v3304
    %v3306 = vrcp.pop %v3297
    %v3307 = vmul.f32 1.0, %v3306
    %v3308 = vrcp.pop %v3298
    %v3309 = vmul.f32 1.0, %v3308
    %v3310 = vrcp.pop %v3299
    %v3311 = vmul.f32 1.0, %v3310
    %v3312 = vrcp.pop %v3300
    %v3313 = vmul.f32 1.0, %v3312
    %v3314 = vrcp.pop %v3301
    %v3315 = vmul.f32 1.0, %v3314
    %v3316 = vrcp.pop %v3302
    %v3317 = vmul.f32 1.0, %v3316
    %v3318 = vrcp.pop %v3303
    %v3319 = vmul.f32 1.0, %v3318
    %v3320 = vadd.f32 %v859, %v2121
    %v3321 = vadd.f32 %v1000, %v2274
    %v3322 = vadd.f32 %v1141, %v2427
    %v3323 = vadd.f32 %v1282, %v2580
    %v3324 = vadd.f32 %v1423, %v2733
    %v3325 = vadd.f32 %v1564, %v2886
    %v3326 = vadd.f32 %v1705, %v3039
    %v3327 = vadd.f32 %v1846, %v3192
    %v3328 = vxor.u32 %v3320, 2147483648
    %v3329 = vxor.u32 %v3321, 2147483648
    %v3330 = vxor.u32 %v3322, 2147483648
    %v3331 = vxor.u32 %v3323, 2147483648
    %v3332 = vxor.u32 %v3324, 2147483648
    %v3333 = vxor.u32 %v3325, 2147483648
    %v3334 = vxor.u32 %v3326, 2147483648
    %v3335 = vxor.u32 %v3327, 2147483648
    %v3336 = vmul.f32 %v3328, 1.442695
    %v3337 = vpow.pop %v3336
    %v3338 = vmul.f32 %v3329, 1.442695
    %v3339 = vpow.pop %v3338
    %v3340 = vmul.f32 %v3330, 1.442695
    %v3341 = vpow.pop %v3340
    %v3342 = vmul.f32 %v3331, 1.442695
    %v3343 = vpow.pop %v3342
    %v3344 = vmul.f32 %v3332, 1.442695
    %v3345 = vpow.pop %v3344
    %v3346 = vmul.f32 %v3333, 1.442695
    %v3347 = vpow.pop %v3346
    %v3348 = vmul.f32 %v3334, 1.442695
    %v3349 = vpow.pop %v3348
    %v3350 = vmul.f32 %v3335, 1.442695
    %v3351 = vpow.pop %v3350
    %v3352 = vadd.f32 %v3337, 1.0
    %v3353 = vadd.f32 %v3339, 1.0
    %v3354 = vadd.f32 %v3341, 1.0
    %v3355 = vadd.f32 %v3343, 1.0
    %v3356 = vadd.f32 %v3345, 1.0
    %v3357 = vadd.f32 %v3347, 1.0
    %v3358 = vadd.f32 %v3349, 1.0
    %v3359 = vadd.f32 %v3351, 1.0
    %v3360 = vrcp.pop %v3352
    %v3361 = vmul.f32 1.0, %v3360
    %v3362 = vrcp.pop %v3353
    %v3363 = vmul.f32 1.0, %v3362
    %v3364 = vrcp.pop %v3354
    %v3365 = vmul.f32 1.0, %v3364
    %v3366 = vrcp.pop %v3355
    %v3367 = vmul.f32 1.0, %v3366
    %v3368 = vrcp.pop %v3356
    %v3369 = vmul.f32 1.0, %v3368
    %v3370 = vrcp.pop %v3357
    %v3371 = vmul.f32 1.0, %v3370
    %v3372 = vrcp.pop %v3358
    %v3373 = vmul.f32 1.0, %v3372
    %v3374 = vrcp.pop %v3359
    %v3375 = vmul.f32 1.0, %v3374
    %v3376 = vmul.f32 %v3305, %v928
    %v3377 = vmul.f32 %v3307, %v1069
    %v3378 = vmul.f32 %v3309, %v1210
    %v3379 = vmul.f32 %v3311, %v1351
    %v3380 = vmul.f32 %v3313, %v1492
    %v3381 = vmul.f32 %v3315, %v1633
    %v3382 = vmul.f32 %v3317, %v1774
    %v3383 = vmul.f32 %v3319, %v1915
    %v3384 = vadd.f32 %v3376, %v2190
    %v3385 = vadd.f32 %v3377, %v2343
    %v3386 = vadd.f32 %v3378, %v2496
    %v3387 = vadd.f32 %v3379, %v2649
    %v3388 = vadd.f32 %v3380, %v2802
    %v3389 = vadd.f32 %v3381, %v2955
    %v3390 = vadd.f32 %v3382, %v3108
    %v3391 = vadd.f32 %v3383, %v3261
    %v3392 = vtanh.pop %v3384
    %v3393 = vtanh.pop %v3385
    %v3394 = vtanh.pop %v3386
    %v3395 = vtanh.pop %v3387
    %v3396 = vtanh.pop %v3388
    %v3397 = vtanh.pop %v3389
    %v3398 = vtanh.pop %v3390
    %v3399 = vtanh.pop %v3391
    %v3400 = vsub.f32 1.0, %v3361
    %v3401 = vsub.f32 1.0, %v3363
    %v3402 = vsub.f32 1.0, %v3365
    %v3403 = vsub.f32 1.0, %v3367
    %v3404 = vsub.f32 1.0, %v3369
    %v3405 = vsub.f32 1.0, %v3371
    %v3406 = vsub.f32 1.0, %v3373
    %v3407 = vsub.f32 1.0, %v3375
    %v3408 = vmul.f32 %v3400, %v3392
    %v3409 = vmul.f32 %v3401, %v3393
    %v3410 = vmul.f32 %v3402, %v3394
    %v3411 = vmul.f32 %v3403, %v3395
    %v3412 = vmul.f32 %v3404, %v3396
    %v3413 = vmul.f32 %v3405, %v3397
    %v3414 = vmul.f32 %v3406, %v3398
    %v3415 = vmul.f32 %v3407, %v3399
    %v3416 = vmul.f32 %v3361, %v108
    %v3417 = vmul.f32 %v3363, %v109
    %v3418 = vmul.f32 %v3365, %v110
    %v3419 = vmul.f32 %v3367, %v111
    %v3420 = vmul.f32 %v3369, %v112
    %v3421 = vmul.f32 %v3371, %v113
    %v3422 = vmul.f32 %v3373, %v114
    %v3423 = vmul.f32 %v3375, %v115
    %v3424 = vadd.f32 %v3408, %v3416
    %v3425 = vadd.f32 %v3409, %v3417
    %v3426 = vadd.f32 %v3410, %v3418
    %v3427 = vadd.f32 %v3411, %v3419
    %v3428 = vadd.f32 %v3412, %v3420
    %v3429 = vadd.f32 %v3413, %v3421
    %v3430 = vadd.f32 %v3414, %v3422
    %v3431 = vadd.f32 %v3415, %v3423
    %3432 = vst [vmem:[#allocation2] sm:$0xff] %v3424
    %3433 = vst [vmem:[#allocation2 + $0x8] sm:$0xff] %v3425
    %3434 = vst [vmem:[#allocation2 + $0x10] sm:$0xff] %v3426
    %3435 = vst [vmem:[#allocation2 + $0x18] sm:$0xff] %v3427
    %3436 = vst [vmem:[#allocation2 + $0x20] sm:$0xff] %v3428
    %3437 = vst [vmem:[#allocation2 + $0x28] sm:$0xff] %v3429
    %3438 = vst [vmem:[#allocation2 + $0x30] sm:$0xff] %v3430
    %3439 = vst [vmem:[#allocation2 + $0x38] sm:$0xff] %v3431
    %3440 = vst [vmem:[#allocation12] sm:$0xff] %v3424
    %3441 = vst [vmem:[#allocation12 + $0x8] sm:$0xff] %v3425
    %3442 = vst [vmem:[#allocation12 + $0x10] sm:$0xff] %v3426
    %3443 = vst [vmem:[#allocation12 + $0x18] sm:$0xff] %v3427
    %3444 = vst [vmem:[#allocation12 + $0x20] sm:$0xff] %v3428
    %3445 = vst [vmem:[#allocation12 + $0x28] sm:$0xff] %v3429
    %3446 = vst [vmem:[#allocation12 + $0x30] sm:$0xff] %v3430
    %3447 = vst [vmem:[#allocation12 + $0x38] sm:$0xff] %v3431
    // Predicated region
    $region50: #{tpu_custom_call.1} parent=1 // pred_check
      _
    $region51: #{tpu_custom_call.1} parent=1 // pred_check_branch
      %3449 = sbr.rel (0) target = $region53
    $region52: #{tpu_custom_call.1} parent=1 // pred_region
      %s3451 = ssub.s32 1024, 1024
      %3452 = vsyncadd [#allocation5], %s3451
      %s3453 = sshll.u32 [#allocation12], 4
      %s3454 = int_to_ptr.vmem [resolvable:$true] %s3453
      %3459 = dma.vmem_to_hbm [thread:$0]  %s3454, 1024, %s6, [#allocation5], 128, 128, 8
    $region53: #{tpu_custom_call.1} parent=1 // pred_fallthru
      _
    // Predicated region
    $region54: #{tpu_custom_call.1} parent=1 // pred_check
      _
    $region55: #{tpu_custom_call.1} parent=1 // pred_check_branch
      %3461 = sbr.rel (0) target = $region57
    $region56: #{tpu_custom_call.1} parent=1 // pred_region
      %3462 = dma.done [#allocation5], 1024
    $region57: #{tpu_custom_call.1} parent=1 // pred_fallthru
      _
    %3463 = vsyncpa [#allocation4], 1
    %3464 = vsyncpa [#allocation7], 1
    %3465 = vsyncpa [#allocation10], 1
    %3466 = vsyncpa [#allocation5], 1

</llo_original>
